<compile_context>
chip_gen: v6e
topology: v6e:2x2x1
jax: 0.10.0
libtpu: 0.0.40
codegen_flags: <defaults>
</compile_context>

<pallas_src>
import math

import jax
import jax.numpy as jnp
from jax.experimental import pallas as pl
from jax.experimental.pallas import tpu as pltpu


def _vmem():
    return pl.BlockSpec(memory_space=pltpu.MemorySpace.VMEM)


# ----------------------------------------------------------------------------
# Fused forward kernel
# ----------------------------------------------------------------------------
def tvae_fused_kernel(
    x_ref, eps_ref,
    e_wih0_ref, e_whh0_ref, e_b0_ref, e_wcat1_ref, e_b1_ref,
    wa1_ref, ba1_ref, wa2_ref, ba2_ref, wmv_ref, bmv_ref,
    d_wih0_ref, d_whh0_ref, d_b0_ref, d_wcat1_ref, d_b1_ref,
    wfc_ref, bfc_ref,
    recon_ref, mu_ref, logvar_ref,
):
    f32 = jnp.float32
    bf16 = jnp.bfloat16
    x = x_ref[...]                                   # (B, T, In) f32
    B, T, In = x.shape
    H = e_whh0_ref.shape[0]
    H4 = 4 * H
    L = eps_ref.shape[1]

    # Gate order along the 4H axis: PyTorch's [i, f, g, o].  Activation runs on
    # the whole (B, 4H) vreg (full-width sigmoid + tanh pushes) and the g slab
    # is selected with a hoisted lane mask instead of pre-slicing sub-vreg
    # pieces for the EUP.
    lane = jax.lax.broadcasted_iota(jnp.int32, (B, H4), 1)
    g_mask = jnp.logical_and(lane >= 2 * H, lane < 3 * H)

    def gate_apply(gates, c):
        act = jnp.where(g_mask, jnp.tanh(gates), jax.nn.sigmoid(gates))
        i = act[:, 0 * H:1 * H]
        f = act[:, 1 * H:2 * H]
        g = act[:, 2 * H:3 * H]
        o = act[:, 3 * H:4 * H]
        c_new = f * c + i * g
        h_new = o * jnp.tanh(c_new)
        return h_new, c_new

    def run_lstm2(in4h_fn, whh0_bf, wcat1_bf, b1):
        """Two stacked LSTM layers, statically unrolled over T.

        in4h_fn(t) returns the precomputed layer-0 input projection
        (x_t @ W_ih0 + b0), shape (B, 4H).  Returns the list of per-step
        layer-1 hidden states (kept as values; no scratch stores).
        """
        h0 = c0 = h1 = c1 = jnp.zeros((B, H), f32)
        h1_seq = []
        for t in range(T):                           # static unroll (T small)
            g0 = in4h_fn(t)
            if t > 0:                                # h0 == 0 at t == 0
                g0 = g0 + jnp.dot(h0.astype(bf16), whh0_bf,
                                  preferred_element_type=f32)
            h0, c0 = gate_apply(g0, c0)
            # Fused layer-1 recurrence: single (B,2H)@(2H,4H) matmul per step.
            hcat = jnp.concatenate([h0, h1], axis=1).astype(bf16)
            g1 = jnp.dot(hcat, wcat1_bf, preferred_element_type=f32) + b1
            h1, c1 = gate_apply(g1, c1)
            h1_seq.append(h1)
        return h1_seq

    # ------------------------------ encoder ----------------------------------
    # Hoisted layer-0 input projection (+ bias) for all timesteps: one matmul.
    x4h = (jnp.dot(x.reshape(B * T, In).astype(bf16), e_wih0_ref[...],
                   preferred_element_type=f32)
           + e_b0_ref[...]).reshape(B, T, H4)
    e_b1 = jnp.broadcast_to(e_b1_ref[...], (B, H4))  # hoisted bias broadcast
    enc_seq = run_lstm2(lambda t: x4h[:, t, :],
                        e_whh0_ref[...], e_wcat1_ref[...], e_b1)
    enc_bth = jnp.stack(enc_seq, axis=1)             # (B, T, H) as a value
    flat = enc_bth.reshape(B * T, H)

    # ----------------------- attention + mu / log_var ------------------------
    a = jnp.tanh(jnp.dot(flat.astype(bf16), wa1_ref[...],
                         preferred_element_type=f32) + ba1_ref[...])
    # Width-1 projection as VPU multiply + lane reduction (no MXU round-trip).
    scores = (jnp.sum(a * wa2_ref[...], axis=-1, keepdims=True)
              + ba2_ref[...]).reshape(B, T)
    m = jnp.max(scores, axis=1, keepdims=True)       # softmax over time
    ex = jnp.exp(scores - m)
    w = ex / jnp.sum(ex, axis=1, keepdims=True)      # (B, T)
    context = jnp.sum(enc_bth * w[:, :, None], axis=1)    # (B, H)

    mv = (jnp.dot(context.astype(bf16), wmv_ref[...],
                  preferred_element_type=f32)
          + bmv_ref[...])                            # (B, 2L): [mu | log_var]
    mu = mv[:, :L]
    logvar = mv[:, L:]
    mu_ref[...] = mu
    logvar_ref[...] = logvar

    # ---------------------------- reparameterize -----------------------------
    z = mu + eps_ref[...] * jnp.exp(0.5 * logvar)    # (B, L)

    # ------------------------------ decoder ----------------------------------
    # z is repeated over time -> layer-0 input projection computed once.
    z4h = (jnp.dot(z.astype(bf16), d_wih0_ref[...], preferred_element_type=f32)
           + d_b0_ref[...])                          # (B, 4H)
    d_b1 = jnp.broadcast_to(d_b1_ref[...], (B, H4))
    dec_seq = run_lstm2(lambda t: z4h,
                        d_whh0_ref[...], d_wcat1_ref[...], d_b1)
    dec_flat = jnp.stack(dec_seq, axis=1).reshape(B * T, H)

    # Final FC as one batched matmul (not T tiny ones).
    recon = (jnp.dot(dec_flat.astype(bf16), wfc_ref[...],
                     preferred_element_type=f32)
             + bfc_ref[...]).reshape(B, T, In)
    recon_ref[...] = recon


# ----------------------------------------------------------------------------
# Wrapper
# ----------------------------------------------------------------------------
def temporal_vae_forward(params, x, key):
    """x: (B, T, input_size) float32 -> (reconstruction, mu, log_var)."""
    B, T, In = x.shape
    enc, dec, head = params["enc"], params["dec"], params["head"]
    H = enc["whh0"].shape[0]
    L = head["w_muvar"].shape[1] // 2
    eps = jax.random.normal(key, (B, L), jnp.float32)

    bf16 = jnp.bfloat16
    # Fused layer-1 weights + bf16 pre-cast for all MXU operands.  Biases and
    # the width-1 attention row stay f32 (VPU/EUP path).
    e_wcat1 = jnp.concatenate([enc["wih1"], enc["whh1"]], axis=0).astype(bf16)
    d_wcat1 = jnp.concatenate([dec["wih1"], dec["whh1"]], axis=0).astype(bf16)

    operands = (
        x, eps,
        enc["wih0"].astype(bf16), enc["whh0"].astype(bf16), enc["b0"],
        e_wcat1, enc["b1"],
        head["wa1"].astype(bf16), head["ba1"],
        head["wa2"].reshape(1, H), head["ba2"],      # wa2 as (1, H) f32 row
        head["w_muvar"].astype(bf16), head["b_muvar"],
        dec["wih0"].astype(bf16), dec["whh0"].astype(bf16), dec["b0"],
        d_wcat1, dec["b1"],
        params["dec_fc_w"].astype(bf16), params["dec_fc_b"],
    )

    recon, mu, logvar = pl.pallas_call(
        tvae_fused_kernel,
        out_shape=(
            jax.ShapeDtypeStruct((B, T, In), jnp.float32),
            jax.ShapeDtypeStruct((B, L), jnp.float32),
            jax.ShapeDtypeStruct((B, L), jnp.float32),
        ),
        in_specs=[_vmem() for _ in operands],
        out_specs=(_vmem(), _vmem(), _vmem()),
    )(*operands)
    return recon, mu, logvar


# ----------------------------------------------------------------------------
# Pure-JAX (f32) reference, used only for a loose numerical sanity check.
# ----------------------------------------------------------------------------
def _cell_ref(x_t, h, c, wih, whh, b):
    gates = x_t @ wih + h @ whh + b
    H = h.shape[1]
    i = jax.nn.sigmoid(gates[:, 0 * H:1 * H])
    f = jax.nn.sigmoid(gates[:, 1 * H:2 * H])
    g = jnp.tanh(gates[:, 2 * H:3 * H])
    o = jax.nn.sigmoid(gates[:, 3 * H:4 * H])
    c = f * c + i * g
    return o * jnp.tanh(c), c


def _lstm2_ref(xs, p):
    B, T, _ = xs.shape
    H = p["whh0"].shape[0]
    h0 = c0 = h1 = c1 = jnp.zeros((B, H), jnp.float32)
    outs = []
    for t in range(T):
        h0, c0 = _cell_ref(xs[:, t, :], h0, c0, p["wih0"], p["whh0"], p["b0"])
        h1, c1 = _cell_ref(h0, h1, c1, p["wih1"], p["whh1"], p["b1"])
        outs.append(h1)
    return jnp.stack(outs, axis=1)


def temporal_vae_reference(params, x, key):
    B, T, In = x.shape
    head = params["head"]
    L = head["w_muvar"].shape[1] // 2
    eps = jax.random.normal(key, (B, L), jnp.float32)
    enc_out = _lstm2_ref(x, params["enc"])                        # (B, T, H)
    a = jnp.tanh(enc_out @ head["wa1"] + head["ba1"])
    scores = a @ head["wa2"] + head["ba2"]                        # (B, T, 1)
    w = jax.nn.softmax(scores, axis=1)
    context = jnp.sum(enc_out * w, axis=1)                        # (B, H)
    mv = context @ head["w_muvar"] + head["b_muvar"]
    mu, logvar = mv[:, :L], mv[:, L:]
    z = mu + eps * jnp.exp(0.5 * logvar)
    z_rep = jnp.broadcast_to(z[:, None, :], (B, T, L))
    dec_out = _lstm2_ref(z_rep, params["dec"])
    recon = dec_out @ params["dec_fc_w"] + params["dec_fc_b"]
    return recon, mu, logvar


# ----------------------------------------------------------------------------
# Deterministic parameter init (PyTorch-style uniform(-1/sqrt(fan), 1/sqrt(fan)))
# ----------------------------------------------------------------------------
def _uniform(key, shape, bound):
    return jax.random.uniform(key, shape, jnp.float32, -bound, bound)


def _init_lstm2(key, in_size, hidden):
    # Weights stored transposed (in, 4H); combined bias (1, 4H) = b_ih + b_hh.
    # Gate order along the 4H axis is PyTorch's [i, f, g, o].
    k = 1.0 / math.sqrt(hidden)
    keys = jax.random.split(key, 8)
    return {
        "wih0": _uniform(keys[0], (in_size, 4 * hidden), k),
        "whh0": _uniform(keys[1], (hidden, 4 * hidden), k),
        "b0": (_uniform(keys[2], (1, 4 * hidden), k)
               + _uniform(keys[3], (1, 4 * hidden), k)),
        "wih1": _uniform(keys[4], (hidden, 4 * hidden), k),
        "whh1": _uniform(keys[5], (hidden, 4 * hidden), k),
        "b1": (_uniform(keys[6], (1, 4 * hidden), k)
               + _uniform(keys[7], (1, 4 * hidden), k)),
    }


def _init_linear(key, in_f, out_f):
    k = 1.0 / math.sqrt(in_f)
    kw, kb = jax.random.split(key)
    return _uniform(kw, (in_f, out_f), k), _uniform(kb, (1, out_f), k)


def init_params(key, input_size, hidden_size, latent_size):
    ks = jax.random.split(key, 8)
    wa1, ba1 = _init_linear(ks[2], hidden_size, hidden_size)
    wa2, ba2 = _init_linear(ks[3], hidden_size, 1)
    wmu, bmu = _init_linear(ks[4], hidden_size, latent_size)
    wvar, bvar = _init_linear(ks[5], hidden_size, latent_size)
    wd, bd = _init_linear(ks[6], hidden_size, input_size)
    return {
        "enc": _init_lstm2(ks[0], input_size, hidden_size),
        "dec": _init_lstm2(ks[1], latent_size, hidden_size),
        "head": {
            "wa1": wa1, "ba1": ba1, "wa2": wa2, "ba2": ba2,
            # mu and log_var projections fused into one (H, 2L) matmul
            "w_muvar": jnp.concatenate([wmu, wvar], axis=1),
            "b_muvar": jnp.concatenate([bmu, bvar], axis=1),
        },
        "dec_fc_w": wd,
        "dec_fc_b": bd,
    }


# ----------------------------------------------------------------------------
if __name__ == "__main__":
    INPUT_SIZE = 4
    SEQ_LEN = 8
    HIDDEN = 32
    LATENT = 14
    BATCH = 2

    root = jax.random.PRNGKey(0)
    k_param, k_data, k_eps = jax.random.split(root, 3)

    params = init_params(k_param, INPUT_SIZE, HIDDEN, LATENT)
    x = jax.random.normal(k_data, (BATCH, SEQ_LEN, INPUT_SIZE), jnp.float32)

    fwd = jax.jit(temporal_vae_forward)
    recon, mu, log_var = fwd(params, x, k_eps)
    jax.block_until_ready((recon, mu, log_var))

    assert recon.shape == (BATCH, SEQ_LEN, INPUT_SIZE)
    assert mu.shape == (BATCH, LATENT)
    assert log_var.shape == (BATCH, LATENT)
    assert bool(jnp.isfinite(recon).all())
    assert bool(jnp.isfinite(mu).all())
    assert bool(jnp.isfinite(log_var).all())

    # Loose sanity check vs. pure-JAX f32 reference (bf16 MXU inputs drift a
    # little over the 8-step x 2-layer recurrence).
    r_ref, mu_ref, lv_ref = temporal_vae_reference(params, x, k_eps)
    assert float(jnp.max(jnp.abs(recon - r_ref))) < 5e-2
    assert float(jnp.max(jnp.abs(mu - mu_ref))) < 5e-2
    assert float(jnp.max(jnp.abs(log_var - lv_ref))) < 5e-2

    print("KERNEL_OK")
</pallas_src>

<mosaic_0001>
module attributes {stable_mosaic.version = 11 : i64} {
  func.func @tvae_fused_kernel(%arg0: memref<2x8x4xf32, #tpu.memory_space<vmem>>, %arg1: memref<2x14xf32, #tpu.memory_space<vmem>>, %arg2: memref<4x128xbf16, #tpu.memory_space<vmem>>, %arg3: memref<32x128xbf16, #tpu.memory_space<vmem>>, %arg4: memref<1x128xf32, #tpu.memory_space<vmem>>, %arg5: memref<64x128xbf16, #tpu.memory_space<vmem>>, %arg6: memref<1x128xf32, #tpu.memory_space<vmem>>, %arg7: memref<32x32xbf16, #tpu.memory_space<vmem>>, %arg8: memref<1x32xf32, #tpu.memory_space<vmem>>, %arg9: memref<1x32xf32, #tpu.memory_space<vmem>>, %arg10: memref<1x1xf32, #tpu.memory_space<vmem>>, %arg11: memref<32x28xbf16, #tpu.memory_space<vmem>>, %arg12: memref<1x28xf32, #tpu.memory_space<vmem>>, %arg13: memref<14x128xbf16, #tpu.memory_space<vmem>>, %arg14: memref<32x128xbf16, #tpu.memory_space<vmem>>, %arg15: memref<1x128xf32, #tpu.memory_space<vmem>>, %arg16: memref<64x128xbf16, #tpu.memory_space<vmem>>, %arg17: memref<1x128xf32, #tpu.memory_space<vmem>>, %arg18: memref<32x4xbf16, #tpu.memory_space<vmem>>, %arg19: memref<1x4xf32, #tpu.memory_space<vmem>>, %arg20: memref<2x8x4xf32, #tpu.memory_space<vmem>>, %arg21: memref<2x14xf32, #tpu.memory_space<vmem>>, %arg22: memref<2x14xf32, #tpu.memory_space<vmem>>) attributes {dimension_semantics = [], scalar_prefetch = 0 : i64, scratch_operands = 0 : i64, tpu.core_type = #tpu.core_type<tc>} {
    %c0 = arith.constant 0 : index
    %c0_0 = arith.constant 0 : index
    %c0_1 = arith.constant 0 : index
    %0 = vector.load %arg0[%c0, %c0_0, %c0_1] : memref<2x8x4xf32, #tpu.memory_space<vmem>>, vector<2x8x4xf32>
    %1 = tpu.iota {dimensions = array<i32: 1>} : vector<2x128xi32>
    %c64_i32 = arith.constant 64 : i32
    %2 = vector.broadcast %c64_i32 : i32 to vector<2x128xi32>
    %3 = arith.cmpi sge, %1, %2 : vector<2x128xi32>
    %c96_i32 = arith.constant 96 : i32
    %4 = vector.broadcast %c96_i32 : i32 to vector<2x128xi32>
    %5 = arith.cmpi slt, %1, %4 : vector<2x128xi32>
    %6 = arith.andi %3, %5 : vector<2x128xi1>
    %7 = vector.shape_cast %0 : vector<2x8x4xf32> to vector<16x4xf32>
    %8 = arith.truncf %7 : vector<16x4xf32> to vector<16x4xbf16>
    %c0_2 = arith.constant 0 : index
    %c0_3 = arith.constant 0 : index
    %9 = vector.load %arg2[%c0_2, %c0_3] : memref<4x128xbf16, #tpu.memory_space<vmem>>, vector<4x128xbf16>
    %cst = arith.constant dense<0.000000e+00> : vector<16x128xf32>
    %10 = tpu.matmul %8, %9, %cst {dimension_numbers = #tpu.dot_dimension_numbers<[1], [0], [0], [1], [0, 0, 1, 1], [], []>} : vector<16x4xbf16>, vector<4x128xbf16>, vector<16x128xf32> -> vector<16x128xf32>
    %c0_4 = arith.constant 0 : index
    %c0_5 = arith.constant 0 : index
    %11 = vector.load %arg4[%c0_4, %c0_5] : memref<1x128xf32, #tpu.memory_space<vmem>>, vector<1x128xf32>
    %12 = vector.broadcast %11 : vector<1x128xf32> to vector<16x128xf32>
    %13 = arith.addf %10, %12 : vector<16x128xf32>
    %14 = vector.shape_cast %13 : vector<16x128xf32> to vector<2x8x128xf32>
    %c0_6 = arith.constant 0 : index
    %c0_7 = arith.constant 0 : index
    %15 = vector.load %arg6[%c0_6, %c0_7] : memref<1x128xf32, #tpu.memory_space<vmem>>, vector<1x128xf32>
    %16 = vector.shape_cast %15 : vector<1x128xf32> to vector<1x128xf32>
    %17 = vector.broadcast %16 : vector<1x128xf32> to vector<2x128xf32>
    %c0_8 = arith.constant 0 : index
    %c0_9 = arith.constant 0 : index
    %18 = vector.load %arg3[%c0_8, %c0_9] : memref<32x128xbf16, #tpu.memory_space<vmem>>, vector<32x128xbf16>
    %c0_10 = arith.constant 0 : index
    %c0_11 = arith.constant 0 : index
    %19 = vector.load %arg5[%c0_10, %c0_11] : memref<64x128xbf16, #tpu.memory_space<vmem>>, vector<64x128xbf16>
    %cst_12 = arith.constant 0.000000e+00 : f32
    %20 = vector.broadcast %cst_12 : f32 to vector<2x32xf32>
    %21 = vector.extract_strided_slice %14 {offsets = [0, 0, 0], sizes = [2, 1, 128], strides = [1, 1, 1]} : vector<2x8x128xf32> to vector<2x1x128xf32>
    %22 = vector.shape_cast %21 : vector<2x1x128xf32> to vector<2x128xf32>
    %23 = math.tanh %22 : vector<2x128xf32>
    %24 = arith.negf %22 : vector<2x128xf32>
    %25 = math.exp %24 : vector<2x128xf32>
    %cst_13 = arith.constant 1.000000e+00 : f32
    %26 = vector.broadcast %cst_13 : f32 to vector<2x128xf32>
    %27 = arith.addf %26, %25 : vector<2x128xf32>
    %28 = arith.divf %26, %27 : vector<2x128xf32>
    %29 = arith.select %6, %23, %28 : vector<2x128xi1>, vector<2x128xf32>
    %30 = vector.extract_strided_slice %29 {offsets = [0, 0], sizes = [2, 32], strides = [1, 1]} : vector<2x128xf32> to vector<2x32xf32>
    %31 = vector.extract_strided_slice %29 {offsets = [0, 32], sizes = [2, 32], strides = [1, 1]} : vector<2x128xf32> to vector<2x32xf32>
    %32 = vector.extract_strided_slice %29 {offsets = [0, 64], sizes = [2, 32], strides = [1, 1]} : vector<2x128xf32> to vector<2x32xf32>
    %33 = vector.extract_strided_slice %29 {offsets = [0, 96], sizes = [2, 32], strides = [1, 1]} : vector<2x128xf32> to vector<2x32xf32>
    %34 = arith.mulf %31, %20 : vector<2x32xf32>
    %35 = arith.mulf %30, %32 : vector<2x32xf32>
    %36 = arith.addf %34, %35 : vector<2x32xf32>
    %37 = math.tanh %36 : vector<2x32xf32>
    %38 = arith.mulf %33, %37 : vector<2x32xf32>
    %39 = tpu.concatenate %38, %20 in 1 : vector<2x32xf32>, vector<2x32xf32> -> vector<2x64xf32>
    %40 = arith.truncf %39 : vector<2x64xf32> to vector<2x64xbf16>
    %cst_14 = arith.constant dense<0.000000e+00> : vector<2x128xf32>
    %41 = tpu.matmul %40, %19, %cst_14 {dimension_numbers = #tpu.dot_dimension_numbers<[1], [0], [0], [1], [0, 0, 1, 1], [], []>} : vector<2x64xbf16>, vector<64x128xbf16>, vector<2x128xf32> -> vector<2x128xf32>
    %42 = arith.addf %41, %17 : vector<2x128xf32>
    %43 = math.tanh %42 : vector<2x128xf32>
    %44 = arith.negf %42 : vector<2x128xf32>
    %45 = math.exp %44 : vector<2x128xf32>
    %cst_15 = arith.constant 1.000000e+00 : f32
    %46 = vector.broadcast %cst_15 : f32 to vector<2x128xf32>
    %47 = arith.addf %46, %45 : vector<2x128xf32>
    %48 = arith.divf %46, %47 : vector<2x128xf32>
    %49 = arith.select %6, %43, %48 : vector<2x128xi1>, vector<2x128xf32>
    %50 = vector.extract_strided_slice %49 {offsets = [0, 0], sizes = [2, 32], strides = [1, 1]} : vector<2x128xf32> to vector<2x32xf32>
    %51 = vector.extract_strided_slice %49 {offsets = [0, 32], sizes = [2, 32], strides = [1, 1]} : vector<2x128xf32> to vector<2x32xf32>
    %52 = vector.extract_strided_slice %49 {offsets = [0, 64], sizes = [2, 32], strides = [1, 1]} : vector<2x128xf32> to vector<2x32xf32>
    %53 = vector.extract_strided_slice %49 {offsets = [0, 96], sizes = [2, 32], strides = [1, 1]} : vector<2x128xf32> to vector<2x32xf32>
    %54 = arith.mulf %51, %20 : vector<2x32xf32>
    %55 = arith.mulf %50, %52 : vector<2x32xf32>
    %56 = arith.addf %54, %55 : vector<2x32xf32>
    %57 = math.tanh %56 : vector<2x32xf32>
    %58 = arith.mulf %53, %57 : vector<2x32xf32>
    %59 = vector.extract_strided_slice %14 {offsets = [0, 1, 0], sizes = [2, 1, 128], strides = [1, 1, 1]} : vector<2x8x128xf32> to vector<2x1x128xf32>
    %60 = vector.shape_cast %59 : vector<2x1x128xf32> to vector<2x128xf32>
    %61 = arith.truncf %38 : vector<2x32xf32> to vector<2x32xbf16>
    %cst_16 = arith.constant dense<0.000000e+00> : vector<2x128xf32>
    %62 = tpu.matmul %61, %18, %cst_16 {dimension_numbers = #tpu.dot_dimension_numbers<[1], [0], [0], [1], [0, 0, 1, 1], [], []>} : vector<2x32xbf16>, vector<32x128xbf16>, vector<2x128xf32> -> vector<2x128xf32>
    %63 = arith.addf %60, %62 : vector<2x128xf32>
    %64 = math.tanh %63 : vector<2x128xf32>
    %65 = arith.negf %63 : vector<2x128xf32>
    %66 = math.exp %65 : vector<2x128xf32>
    %cst_17 = arith.constant 1.000000e+00 : f32
    %67 = vector.broadcast %cst_17 : f32 to vector<2x128xf32>
    %68 = arith.addf %67, %66 : vector<2x128xf32>
    %69 = arith.divf %67, %68 : vector<2x128xf32>
    %70 = arith.select %6, %64, %69 : vector<2x128xi1>, vector<2x128xf32>
    %71 = vector.extract_strided_slice %70 {offsets = [0, 0], sizes = [2, 32], strides = [1, 1]} : vector<2x128xf32> to vector<2x32xf32>
    %72 = vector.extract_strided_slice %70 {offsets = [0, 32], sizes = [2, 32], strides = [1, 1]} : vector<2x128xf32> to vector<2x32xf32>
    %73 = vector.extract_strided_slice %70 {offsets = [0, 64], sizes = [2, 32], strides = [1, 1]} : vector<2x128xf32> to vector<2x32xf32>
    %74 = vector.extract_strided_slice %70 {offsets = [0, 96], sizes = [2, 32], strides = [1, 1]} : vector<2x128xf32> to vector<2x32xf32>
    %75 = arith.mulf %72, %36 : vector<2x32xf32>
    %76 = arith.mulf %71, %73 : vector<2x32xf32>
    %77 = arith.addf %75, %76 : vector<2x32xf32>
    %78 = math.tanh %77 : vector<2x32xf32>
    %79 = arith.mulf %74, %78 : vector<2x32xf32>
    %80 = tpu.concatenate %79, %58 in 1 : vector<2x32xf32>, vector<2x32xf32> -> vector<2x64xf32>
    %81 = arith.truncf %80 : vector<2x64xf32> to vector<2x64xbf16>
    %cst_18 = arith.constant dense<0.000000e+00> : vector<2x128xf32>
    %82 = tpu.matmul %81, %19, %cst_18 {dimension_numbers = #tpu.dot_dimension_numbers<[1], [0], [0], [1], [0, 0, 1, 1], [], []>} : vector<2x64xbf16>, vector<64x128xbf16>, vector<2x128xf32> -> vector<2x128xf32>
    %83 = arith.addf %82, %17 : vector<2x128xf32>
    %84 = math.tanh %83 : vector<2x128xf32>
    %85 = arith.negf %83 : vector<2x128xf32>
    %86 = math.exp %85 : vector<2x128xf32>
    %cst_19 = arith.constant 1.000000e+00 : f32
    %87 = vector.broadcast %cst_19 : f32 to vector<2x128xf32>
    %88 = arith.addf %87, %86 : vector<2x128xf32>
    %89 = arith.divf %87, %88 : vector<2x128xf32>
    %90 = arith.select %6, %84, %89 : vector<2x128xi1>, vector<2x128xf32>
    %91 = vector.extract_strided_slice %90 {offsets = [0, 0], sizes = [2, 32], strides = [1, 1]} : vector<2x128xf32> to vector<2x32xf32>
    %92 = vector.extract_strided_slice %90 {offsets = [0, 32], sizes = [2, 32], strides = [1, 1]} : vector<2x128xf32> to vector<2x32xf32>
    %93 = vector.extract_strided_slice %90 {offsets = [0, 64], sizes = [2, 32], strides = [1, 1]} : vector<2x128xf32> to vector<2x32xf32>
    %94 = vector.extract_strided_slice %90 {offsets = [0, 96], sizes = [2, 32], strides = [1, 1]} : vector<2x128xf32> to vector<2x32xf32>
    %95 = arith.mulf %92, %56 : vector<2x32xf32>
    %96 = arith.mulf %91, %93 : vector<2x32xf32>
    %97 = arith.addf %95, %96 : vector<2x32xf32>
    %98 = math.tanh %97 : vector<2x32xf32>
    %99 = arith.mulf %94, %98 : vector<2x32xf32>
    %100 = vector.extract_strided_slice %14 {offsets = [0, 2, 0], sizes = [2, 1, 128], strides = [1, 1, 1]} : vector<2x8x128xf32> to vector<2x1x128xf32>
    %101 = vector.shape_cast %100 : vector<2x1x128xf32> to vector<2x128xf32>
    %102 = arith.truncf %79 : vector<2x32xf32> to vector<2x32xbf16>
    %cst_20 = arith.constant dense<0.000000e+00> : vector<2x128xf32>
    %103 = tpu.matmul %102, %18, %cst_20 {dimension_numbers = #tpu.dot_dimension_numbers<[1], [0], [0], [1], [0, 0, 1, 1], [], []>} : vector<2x32xbf16>, vector<32x128xbf16>, vector<2x128xf32> -> vector<2x128xf32>
    %104 = arith.addf %101, %103 : vector<2x128xf32>
    %105 = math.tanh %104 : vector<2x128xf32>
    %106 = arith.negf %104 : vector<2x128xf32>
    %107 = math.exp %106 : vector<2x128xf32>
    %cst_21 = arith.constant 1.000000e+00 : f32
    %108 = vector.broadcast %cst_21 : f32 to vector<2x128xf32>
    %109 = arith.addf %108, %107 : vector<2x128xf32>
    %110 = arith.divf %108, %109 : vector<2x128xf32>
    %111 = arith.select %6, %105, %110 : vector<2x128xi1>, vector<2x128xf32>
    %112 = vector.extract_strided_slice %111 {offsets = [0, 0], sizes = [2, 32], strides = [1, 1]} : vector<2x128xf32> to vector<2x32xf32>
    %113 = vector.extract_strided_slice %111 {offsets = [0, 32], sizes = [2, 32], strides = [1, 1]} : vector<2x128xf32> to vector<2x32xf32>
    %114 = vector.extract_strided_slice %111 {offsets = [0, 64], sizes = [2, 32], strides = [1, 1]} : vector<2x128xf32> to vector<2x32xf32>
    %115 = vector.extract_strided_slice %111 {offsets = [0, 96], sizes = [2, 32], strides = [1, 1]} : vector<2x128xf32> to vector<2x32xf32>
    %116 = arith.mulf %113, %77 : vector<2x32xf32>
    %117 = arith.mulf %112, %114 : vector<2x32xf32>
    %118 = arith.addf %116, %117 : vector<2x32xf32>
    %119 = math.tanh %118 : vector<2x32xf32>
    %120 = arith.mulf %115, %119 : vector<2x32xf32>
    %121 = tpu.concatenate %120, %99 in 1 : vector<2x32xf32>, vector<2x32xf32> -> vector<2x64xf32>
    %122 = arith.truncf %121 : vector<2x64xf32> to vector<2x64xbf16>
    %cst_22 = arith.constant dense<0.000000e+00> : vector<2x128xf32>
    %123 = tpu.matmul %122, %19, %cst_22 {dimension_numbers = #tpu.dot_dimension_numbers<[1], [0], [0], [1], [0, 0, 1, 1], [], []>} : vector<2x64xbf16>, vector<64x128xbf16>, vector<2x128xf32> -> vector<2x128xf32>
    %124 = arith.addf %123, %17 : vector<2x128xf32>
    %125 = math.tanh %124 : vector<2x128xf32>
    %126 = arith.negf %124 : vector<2x128xf32>
    %127 = math.exp %126 : vector<2x128xf32>
    %cst_23 = arith.constant 1.000000e+00 : f32
    %128 = vector.broadcast %cst_23 : f32 to vector<2x128xf32>
    %129 = arith.addf %128, %127 : vector<2x128xf32>
    %130 = arith.divf %128, %129 : vector<2x128xf32>
    %131 = arith.select %6, %125, %130 : vector<2x128xi1>, vector<2x128xf32>
    %132 = vector.extract_strided_slice %131 {offsets = [0, 0], sizes = [2, 32], strides = [1, 1]} : vector<2x128xf32> to vector<2x32xf32>
    %133 = vector.extract_strided_slice %131 {offsets = [0, 32], sizes = [2, 32], strides = [1, 1]} : vector<2x128xf32> to vector<2x32xf32>
    %134 = vector.extract_strided_slice %131 {offsets = [0, 64], sizes = [2, 32], strides = [1, 1]} : vector<2x128xf32> to vector<2x32xf32>
    %135 = vector.extract_strided_slice %131 {offsets = [0, 96], sizes = [2, 32], strides = [1, 1]} : vector<2x128xf32> to vector<2x32xf32>
    %136 = arith.mulf %133, %97 : vector<2x32xf32>
    %137 = arith.mulf %132, %134 : vector<2x32xf32>
    %138 = arith.addf %136, %137 : vector<2x32xf32>
    %139 = math.tanh %138 : vector<2x32xf32>
    %140 = arith.mulf %135, %139 : vector<2x32xf32>
    %141 = vector.extract_strided_slice %14 {offsets = [0, 3, 0], sizes = [2, 1, 128], strides = [1, 1, 1]} : vector<2x8x128xf32> to vector<2x1x128xf32>
    %142 = vector.shape_cast %141 : vector<2x1x128xf32> to vector<2x128xf32>
    %143 = arith.truncf %120 : vector<2x32xf32> to vector<2x32xbf16>
    %cst_24 = arith.constant dense<0.000000e+00> : vector<2x128xf32>
    %144 = tpu.matmul %143, %18, %cst_24 {dimension_numbers = #tpu.dot_dimension_numbers<[1], [0], [0], [1], [0, 0, 1, 1], [], []>} : vector<2x32xbf16>, vector<32x128xbf16>, vector<2x128xf32> -> vector<2x128xf32>
    %145 = arith.addf %142, %144 : vector<2x128xf32>
    %146 = math.tanh %145 : vector<2x128xf32>
    %147 = arith.negf %145 : vector<2x128xf32>
    %148 = math.exp %147 : vector<2x128xf32>
    %cst_25 = arith.constant 1.000000e+00 : f32
    %149 = vector.broadcast %cst_25 : f32 to vector<2x128xf32>
    %150 = arith.addf %149, %148 : vector<2x128xf32>
    %151 = arith.divf %149, %150 : vector<2x128xf32>
    %152 = arith.select %6, %146, %151 : vector<2x128xi1>, vector<2x128xf32>
    %153 = vector.extract_strided_slice %152 {offsets = [0, 0], sizes = [2, 32], strides = [1, 1]} : vector<2x128xf32> to vector<2x32xf32>
    %154 = vector.extract_strided_slice %152 {offsets = [0, 32], sizes = [2, 32], strides = [1, 1]} : vector<2x128xf32> to vector<2x32xf32>
    %155 = vector.extract_strided_slice %152 {offsets = [0, 64], sizes = [2, 32], strides = [1, 1]} : vector<2x128xf32> to vector<2x32xf32>
    %156 = vector.extract_strided_slice %152 {offsets = [0, 96], sizes = [2, 32], strides = [1, 1]} : vector<2x128xf32> to vector<2x32xf32>
    %157 = arith.mulf %154, %118 : vector<2x32xf32>
    %158 = arith.mulf %153, %155 : vector<2x32xf32>
    %159 = arith.addf %157, %158 : vector<2x32xf32>
    %160 = math.tanh %159 : vector<2x32xf32>
    %161 = arith.mulf %156, %160 : vector<2x32xf32>
    %162 = tpu.concatenate %161, %140 in 1 : vector<2x32xf32>, vector<2x32xf32> -> vector<2x64xf32>
    %163 = arith.truncf %162 : vector<2x64xf32> to vector<2x64xbf16>
    %cst_26 = arith.constant dense<0.000000e+00> : vector<2x128xf32>
    %164 = tpu.matmul %163, %19, %cst_26 {dimension_numbers = #tpu.dot_dimension_numbers<[1], [0], [0], [1], [0, 0, 1, 1], [], []>} : vector<2x64xbf16>, vector<64x128xbf16>, vector<2x128xf32> -> vector<2x128xf32>
    %165 = arith.addf %164, %17 : vector<2x128xf32>
    %166 = math.tanh %165 : vector<2x128xf32>
    %167 = arith.negf %165 : vector<2x128xf32>
    %168 = math.exp %167 : vector<2x128xf32>
    %cst_27 = arith.constant 1.000000e+00 : f32
    %169 = vector.broadcast %cst_27 : f32 to vector<2x128xf32>
    %170 = arith.addf %169, %168 : vector<2x128xf32>
    %171 = arith.divf %169, %170 : vector<2x128xf32>
    %172 = arith.select %6, %166, %171 : vector<2x128xi1>, vector<2x128xf32>
    %173 = vector.extract_strided_slice %172 {offsets = [0, 0], sizes = [2, 32], strides = [1, 1]} : vector<2x128xf32> to vector<2x32xf32>
    %174 = vector.extract_strided_slice %172 {offsets = [0, 32], sizes = [2, 32], strides = [1, 1]} : vector<2x128xf32> to vector<2x32xf32>
    %175 = vector.extract_strided_slice %172 {offsets = [0, 64], sizes = [2, 32], strides = [1, 1]} : vector<2x128xf32> to vector<2x32xf32>
    %176 = vector.extract_strided_slice %172 {offsets = [0, 96], sizes = [2, 32], strides = [1, 1]} : vector<2x128xf32> to vector<2x32xf32>
    %177 = arith.mulf %174, %138 : vector<2x32xf32>
    %178 = arith.mulf %173, %175 : vector<2x32xf32>
    %179 = arith.addf %177, %178 : vector<2x32xf32>
    %180 = math.tanh %179 : vector<2x32xf32>
    %181 = arith.mulf %176, %180 : vector<2x32xf32>
    %182 = vector.extract_strided_slice %14 {offsets = [0, 4, 0], sizes = [2, 1, 128], strides = [1, 1, 1]} : vector<2x8x128xf32> to vector<2x1x128xf32>
    %183 = vector.shape_cast %182 : vector<2x1x128xf32> to vector<2x128xf32>
    %184 = arith.truncf %161 : vector<2x32xf32> to vector<2x32xbf16>
    %cst_28 = arith.constant dense<0.000000e+00> : vector<2x128xf32>
    %185 = tpu.matmul %184, %18, %cst_28 {dimension_numbers = #tpu.dot_dimension_numbers<[1], [0], [0], [1], [0, 0, 1, 1], [], []>} : vector<2x32xbf16>, vector<32x128xbf16>, vector<2x128xf32> -> vector<2x128xf32>
    %186 = arith.addf %183, %185 : vector<2x128xf32>
    %187 = math.tanh %186 : vector<2x128xf32>
    %188 = arith.negf %186 : vector<2x128xf32>
    %189 = math.exp %188 : vector<2x128xf32>
    %cst_29 = arith.constant 1.000000e+00 : f32
    %190 = vector.broadcast %cst_29 : f32 to vector<2x128xf32>
    %191 = arith.addf %190, %189 : vector<2x128xf32>
    %192 = arith.divf %190, %191 : vector<2x128xf32>
    %193 = arith.select %6, %187, %192 : vector<2x128xi1>, vector<2x128xf32>
    %194 = vector.extract_strided_slice %193 {offsets = [0, 0], sizes = [2, 32], strides = [1, 1]} : vector<2x128xf32> to vector<2x32xf32>
    %195 = vector.extract_strided_slice %193 {offsets = [0, 32], sizes = [2, 32], strides = [1, 1]} : vector<2x128xf32> to vector<2x32xf32>
    %196 = vector.extract_strided_slice %193 {offsets = [0, 64], sizes = [2, 32], strides = [1, 1]} : vector<2x128xf32> to vector<2x32xf32>
    %197 = vector.extract_strided_slice %193 {offsets = [0, 96], sizes = [2, 32], strides = [1, 1]} : vector<2x128xf32> to vector<2x32xf32>
    %198 = arith.mulf %195, %159 : vector<2x32xf32>
    %199 = arith.mulf %194, %196 : vector<2x32xf32>
    %200 = arith.addf %198, %199 : vector<2x32xf32>
    %201 = math.tanh %200 : vector<2x32xf32>
    %202 = arith.mulf %197, %201 : vector<2x32xf32>
    %203 = tpu.concatenate %202, %181 in 1 : vector<2x32xf32>, vector<2x32xf32> -> vector<2x64xf32>
    %204 = arith.truncf %203 : vector<2x64xf32> to vector<2x64xbf16>
    %cst_30 = arith.constant dense<0.000000e+00> : vector<2x128xf32>
    %205 = tpu.matmul %204, %19, %cst_30 {dimension_numbers = #tpu.dot_dimension_numbers<[1], [0], [0], [1], [0, 0, 1, 1], [], []>} : vector<2x64xbf16>, vector<64x128xbf16>, vector<2x128xf32> -> vector<2x128xf32>
    %206 = arith.addf %205, %17 : vector<2x128xf32>
    %207 = math.tanh %206 : vector<2x128xf32>
    %208 = arith.negf %206 : vector<2x128xf32>
    %209 = math.exp %208 : vector<2x128xf32>
    %cst_31 = arith.constant 1.000000e+00 : f32
    %210 = vector.broadcast %cst_31 : f32 to vector<2x128xf32>
    %211 = arith.addf %210, %209 : vector<2x128xf32>
    %212 = arith.divf %210, %211 : vector<2x128xf32>
    %213 = arith.select %6, %207, %212 : vector<2x128xi1>, vector<2x128xf32>
    %214 = vector.extract_strided_slice %213 {offsets = [0, 0], sizes = [2, 32], strides = [1, 1]} : vector<2x128xf32> to vector<2x32xf32>
    %215 = vector.extract_strided_slice %213 {offsets = [0, 32], sizes = [2, 32], strides = [1, 1]} : vector<2x128xf32> to vector<2x32xf32>
    %216 = vector.extract_strided_slice %213 {offsets = [0, 64], sizes = [2, 32], strides = [1, 1]} : vector<2x128xf32> to vector<2x32xf32>
    %217 = vector.extract_strided_slice %213 {offsets = [0, 96], sizes = [2, 32], strides = [1, 1]} : vector<2x128xf32> to vector<2x32xf32>
    %218 = arith.mulf %215, %179 : vector<2x32xf32>
    %219 = arith.mulf %214, %216 : vector<2x32xf32>
    %220 = arith.addf %218, %219 : vector<2x32xf32>
    %221 = math.tanh %220 : vector<2x32xf32>
    %222 = arith.mulf %217, %221 : vector<2x32xf32>
    %223 = vector.extract_strided_slice %14 {offsets = [0, 5, 0], sizes = [2, 1, 128], strides = [1, 1, 1]} : vector<2x8x128xf32> to vector<2x1x128xf32>
    %224 = vector.shape_cast %223 : vector<2x1x128xf32> to vector<2x128xf32>
    %225 = arith.truncf %202 : vector<2x32xf32> to vector<2x32xbf16>
    %cst_32 = arith.constant dense<0.000000e+00> : vector<2x128xf32>
    %226 = tpu.matmul %225, %18, %cst_32 {dimension_numbers = #tpu.dot_dimension_numbers<[1], [0], [0], [1], [0, 0, 1, 1], [], []>} : vector<2x32xbf16>, vector<32x128xbf16>, vector<2x128xf32> -> vector<2x128xf32>
    %227 = arith.addf %224, %226 : vector<2x128xf32>
    %228 = math.tanh %227 : vector<2x128xf32>
    %229 = arith.negf %227 : vector<2x128xf32>
    %230 = math.exp %229 : vector<2x128xf32>
    %cst_33 = arith.constant 1.000000e+00 : f32
    %231 = vector.broadcast %cst_33 : f32 to vector<2x128xf32>
    %232 = arith.addf %231, %230 : vector<2x128xf32>
    %233 = arith.divf %231, %232 : vector<2x128xf32>
    %234 = arith.select %6, %228, %233 : vector<2x128xi1>, vector<2x128xf32>
    %235 = vector.extract_strided_slice %234 {offsets = [0, 0], sizes = [2, 32], strides = [1, 1]} : vector<2x128xf32> to vector<2x32xf32>
    %236 = vector.extract_strided_slice %234 {offsets = [0, 32], sizes = [2, 32], strides = [1, 1]} : vector<2x128xf32> to vector<2x32xf32>
    %237 = vector.extract_strided_slice %234 {offsets = [0, 64], sizes = [2, 32], strides = [1, 1]} : vector<2x128xf32> to vector<2x32xf32>
    %238 = vector.extract_strided_slice %234 {offsets = [0, 96], sizes = [2, 32], strides = [1, 1]} : vector<2x128xf32> to vector<2x32xf32>
    %239 = arith.mulf %236, %200 : vector<2x32xf32>
    %240 = arith.mulf %235, %237 : vector<2x32xf32>
    %241 = arith.addf %239, %240 : vector<2x32xf32>
    %242 = math.tanh %241 : vector<2x32xf32>
    %243 = arith.mulf %238, %242 : vector<2x32xf32>
    %244 = tpu.concatenate %243, %222 in 1 : vector<2x32xf32>, vector<2x32xf32> -> vector<2x64xf32>
    %245 = arith.truncf %244 : vector<2x64xf32> to vector<2x64xbf16>
    %cst_34 = arith.constant dense<0.000000e+00> : vector<2x128xf32>
    %246 = tpu.matmul %245, %19, %cst_34 {dimension_numbers = #tpu.dot_dimension_numbers<[1], [0], [0], [1], [0, 0, 1, 1], [], []>} : vector<2x64xbf16>, vector<64x128xbf16>, vector<2x128xf32> -> vector<2x128xf32>
    %247 = arith.addf %246, %17 : vector<2x128xf32>
    %248 = math.tanh %247 : vector<2x128xf32>
    %249 = arith.negf %247 : vector<2x128xf32>
    %250 = math.exp %249 : vector<2x128xf32>
    %cst_35 = arith.constant 1.000000e+00 : f32
    %251 = vector.broadcast %cst_35 : f32 to vector<2x128xf32>
    %252 = arith.addf %251, %250 : vector<2x128xf32>
    %253 = arith.divf %251, %252 : vector<2x128xf32>
    %254 = arith.select %6, %248, %253 : vector<2x128xi1>, vector<2x128xf32>
    %255 = vector.extract_strided_slice %254 {offsets = [0, 0], sizes = [2, 32], strides = [1, 1]} : vector<2x128xf32> to vector<2x32xf32>
    %256 = vector.extract_strided_slice %254 {offsets = [0, 32], sizes = [2, 32], strides = [1, 1]} : vector<2x128xf32> to vector<2x32xf32>
    %257 = vector.extract_strided_slice %254 {offsets = [0, 64], sizes = [2, 32], strides = [1, 1]} : vector<2x128xf32> to vector<2x32xf32>
    %258 = vector.extract_strided_slice %254 {offsets = [0, 96], sizes = [2, 32], strides = [1, 1]} : vector<2x128xf32> to vector<2x32xf32>
    %259 = arith.mulf %256, %220 : vector<2x32xf32>
    %260 = arith.mulf %255, %257 : vector<2x32xf32>
    %261 = arith.addf %259, %260 : vector<2x32xf32>
    %262 = math.tanh %261 : vector<2x32xf32>
    %263 = arith.mulf %258, %262 : vector<2x32xf32>
    %264 = vector.extract_strided_slice %14 {offsets = [0, 6, 0], sizes = [2, 1, 128], strides = [1, 1, 1]} : vector<2x8x128xf32> to vector<2x1x128xf32>
    %265 = vector.shape_cast %264 : vector<2x1x128xf32> to vector<2x128xf32>
    %266 = arith.truncf %243 : vector<2x32xf32> to vector<2x32xbf16>
    %cst_36 = arith.constant dense<0.000000e+00> : vector<2x128xf32>
    %267 = tpu.matmul %266, %18, %cst_36 {dimension_numbers = #tpu.dot_dimension_numbers<[1], [0], [0], [1], [0, 0, 1, 1], [], []>} : vector<2x32xbf16>, vector<32x128xbf16>, vector<2x128xf32> -> vector<2x128xf32>
    %268 = arith.addf %265, %267 : vector<2x128xf32>
    %269 = math.tanh %268 : vector<2x128xf32>
    %270 = arith.negf %268 : vector<2x128xf32>
    %271 = math.exp %270 : vector<2x128xf32>
    %cst_37 = arith.constant 1.000000e+00 : f32
    %272 = vector.broadcast %cst_37 : f32 to vector<2x128xf32>
    %273 = arith.addf %272, %271 : vector<2x128xf32>
    %274 = arith.divf %272, %273 : vector<2x128xf32>
    %275 = arith.select %6, %269, %274 : vector<2x128xi1>, vector<2x128xf32>
    %276 = vector.extract_strided_slice %275 {offsets = [0, 0], sizes = [2, 32], strides = [1, 1]} : vector<2x128xf32> to vector<2x32xf32>
    %277 = vector.extract_strided_slice %275 {offsets = [0, 32], sizes = [2, 32], strides = [1, 1]} : vector<2x128xf32> to vector<2x32xf32>
    %278 = vector.extract_strided_slice %275 {offsets = [0, 64], sizes = [2, 32], strides = [1, 1]} : vector<2x128xf32> to vector<2x32xf32>
    %279 = vector.extract_strided_slice %275 {offsets = [0, 96], sizes = [2, 32], strides = [1, 1]} : vector<2x128xf32> to vector<2x32xf32>
    %280 = arith.mulf %277, %241 : vector<2x32xf32>
    %281 = arith.mulf %276, %278 : vector<2x32xf32>
    %282 = arith.addf %280, %281 : vector<2x32xf32>
    %283 = math.tanh %282 : vector<2x32xf32>
    %284 = arith.mulf %279, %283 : vector<2x32xf32>
    %285 = tpu.concatenate %284, %263 in 1 : vector<2x32xf32>, vector<2x32xf32> -> vector<2x64xf32>
    %286 = arith.truncf %285 : vector<2x64xf32> to vector<2x64xbf16>
    %cst_38 = arith.constant dense<0.000000e+00> : vector<2x128xf32>
    %287 = tpu.matmul %286, %19, %cst_38 {dimension_numbers = #tpu.dot_dimension_numbers<[1], [0], [0], [1], [0, 0, 1, 1], [], []>} : vector<2x64xbf16>, vector<64x128xbf16>, vector<2x128xf32> -> vector<2x128xf32>
    %288 = arith.addf %287, %17 : vector<2x128xf32>
    %289 = math.tanh %288 : vector<2x128xf32>
    %290 = arith.negf %288 : vector<2x128xf32>
    %291 = math.exp %290 : vector<2x128xf32>
    %cst_39 = arith.constant 1.000000e+00 : f32
    %292 = vector.broadcast %cst_39 : f32 to vector<2x128xf32>
    %293 = arith.addf %292, %291 : vector<2x128xf32>
    %294 = arith.divf %292, %293 : vector<2x128xf32>
    %295 = arith.select %6, %289, %294 : vector<2x128xi1>, vector<2x128xf32>
    %296 = vector.extract_strided_slice %295 {offsets = [0, 0], sizes = [2, 32], strides = [1, 1]} : vector<2x128xf32> to vector<2x32xf32>
    %297 = vector.extract_strided_slice %295 {offsets = [0, 32], sizes = [2, 32], strides = [1, 1]} : vector<2x128xf32> to vector<2x32xf32>
    %298 = vector.extract_strided_slice %295 {offsets = [0, 64], sizes = [2, 32], strides = [1, 1]} : vector<2x128xf32> to vector<2x32xf32>
    %299 = vector.extract_strided_slice %295 {offsets = [0, 96], sizes = [2, 32], strides = [1, 1]} : vector<2x128xf32> to vector<2x32xf32>
    %300 = arith.mulf %297, %261 : vector<2x32xf32>
    %301 = arith.mulf %296, %298 : vector<2x32xf32>
    %302 = arith.addf %300, %301 : vector<2x32xf32>
    %303 = math.tanh %302 : vector<2x32xf32>
    %304 = arith.mulf %299, %303 : vector<2x32xf32>
    %305 = vector.extract_strided_slice %14 {offsets = [0, 7, 0], sizes = [2, 1, 128], strides = [1, 1, 1]} : vector<2x8x128xf32> to vector<2x1x128xf32>
    %306 = vector.shape_cast %305 : vector<2x1x128xf32> to vector<2x128xf32>
    %307 = arith.truncf %284 : vector<2x32xf32> to vector<2x32xbf16>
    %cst_40 = arith.constant dense<0.000000e+00> : vector<2x128xf32>
    %308 = tpu.matmul %307, %18, %cst_40 {dimension_numbers = #tpu.dot_dimension_numbers<[1], [0], [0], [1], [0, 0, 1, 1], [], []>} : vector<2x32xbf16>, vector<32x128xbf16>, vector<2x128xf32> -> vector<2x128xf32>
    %309 = arith.addf %306, %308 : vector<2x128xf32>
    %310 = math.tanh %309 : vector<2x128xf32>
    %311 = arith.negf %309 : vector<2x128xf32>
    %312 = math.exp %311 : vector<2x128xf32>
    %cst_41 = arith.constant 1.000000e+00 : f32
    %313 = vector.broadcast %cst_41 : f32 to vector<2x128xf32>
    %314 = arith.addf %313, %312 : vector<2x128xf32>
    %315 = arith.divf %313, %314 : vector<2x128xf32>
    %316 = arith.select %6, %310, %315 : vector<2x128xi1>, vector<2x128xf32>
    %317 = vector.extract_strided_slice %316 {offsets = [0, 0], sizes = [2, 32], strides = [1, 1]} : vector<2x128xf32> to vector<2x32xf32>
    %318 = vector.extract_strided_slice %316 {offsets = [0, 32], sizes = [2, 32], strides = [1, 1]} : vector<2x128xf32> to vector<2x32xf32>
    %319 = vector.extract_strided_slice %316 {offsets = [0, 64], sizes = [2, 32], strides = [1, 1]} : vector<2x128xf32> to vector<2x32xf32>
    %320 = vector.extract_strided_slice %316 {offsets = [0, 96], sizes = [2, 32], strides = [1, 1]} : vector<2x128xf32> to vector<2x32xf32>
    %321 = arith.mulf %318, %282 : vector<2x32xf32>
    %322 = arith.mulf %317, %319 : vector<2x32xf32>
    %323 = arith.addf %321, %322 : vector<2x32xf32>
    %324 = math.tanh %323 : vector<2x32xf32>
    %325 = arith.mulf %320, %324 : vector<2x32xf32>
    %326 = tpu.concatenate %325, %304 in 1 : vector<2x32xf32>, vector<2x32xf32> -> vector<2x64xf32>
    %327 = arith.truncf %326 : vector<2x64xf32> to vector<2x64xbf16>
    %cst_42 = arith.constant dense<0.000000e+00> : vector<2x128xf32>
    %328 = tpu.matmul %327, %19, %cst_42 {dimension_numbers = #tpu.dot_dimension_numbers<[1], [0], [0], [1], [0, 0, 1, 1], [], []>} : vector<2x64xbf16>, vector<64x128xbf16>, vector<2x128xf32> -> vector<2x128xf32>
    %329 = arith.addf %328, %17 : vector<2x128xf32>
    %330 = math.tanh %329 : vector<2x128xf32>
    %331 = arith.negf %329 : vector<2x128xf32>
    %332 = math.exp %331 : vector<2x128xf32>
    %cst_43 = arith.constant 1.000000e+00 : f32
    %333 = vector.broadcast %cst_43 : f32 to vector<2x128xf32>
    %334 = arith.addf %333, %332 : vector<2x128xf32>
    %335 = arith.divf %333, %334 : vector<2x128xf32>
    %336 = arith.select %6, %330, %335 : vector<2x128xi1>, vector<2x128xf32>
    %337 = vector.extract_strided_slice %336 {offsets = [0, 0], sizes = [2, 32], strides = [1, 1]} : vector<2x128xf32> to vector<2x32xf32>
    %338 = vector.extract_strided_slice %336 {offsets = [0, 32], sizes = [2, 32], strides = [1, 1]} : vector<2x128xf32> to vector<2x32xf32>
    %339 = vector.extract_strided_slice %336 {offsets = [0, 64], sizes = [2, 32], strides = [1, 1]} : vector<2x128xf32> to vector<2x32xf32>
    %340 = vector.extract_strided_slice %336 {offsets = [0, 96], sizes = [2, 32], strides = [1, 1]} : vector<2x128xf32> to vector<2x32xf32>
    %341 = arith.mulf %338, %302 : vector<2x32xf32>
    %342 = arith.mulf %337, %339 : vector<2x32xf32>
    %343 = arith.addf %341, %342 : vector<2x32xf32>
    %344 = math.tanh %343 : vector<2x32xf32>
    %345 = arith.mulf %340, %344 : vector<2x32xf32>
    %346 = vector.shape_cast %58 : vector<2x32xf32> to vector<2x1x32xf32>
    %347 = vector.shape_cast %99 : vector<2x32xf32> to vector<2x1x32xf32>
    %348 = vector.shape_cast %140 : vector<2x32xf32> to vector<2x1x32xf32>
    %349 = vector.shape_cast %181 : vector<2x32xf32> to vector<2x1x32xf32>
    %350 = vector.shape_cast %222 : vector<2x32xf32> to vector<2x1x32xf32>
    %351 = vector.shape_cast %263 : vector<2x32xf32> to vector<2x1x32xf32>
    %352 = vector.shape_cast %304 : vector<2x32xf32> to vector<2x1x32xf32>
    %353 = vector.shape_cast %345 : vector<2x32xf32> to vector<2x1x32xf32>
    %354 = tpu.concatenate %346, %347, %348, %349, %350, %351, %352, %353 in 1 : vector<2x1x32xf32>, vector<2x1x32xf32>, vector<2x1x32xf32>, vector<2x1x32xf32>, vector<2x1x32xf32>, vector<2x1x32xf32>, vector<2x1x32xf32>, vector<2x1x32xf32> -> vector<2x8x32xf32>
    %355 = vector.shape_cast %354 : vector<2x8x32xf32> to vector<16x32xf32>
    %356 = arith.truncf %355 : vector<16x32xf32> to vector<16x32xbf16>
    %c0_44 = arith.constant 0 : index
    %c0_45 = arith.constant 0 : index
    %357 = vector.load %arg7[%c0_44, %c0_45] : memref<32x32xbf16, #tpu.memory_space<vmem>>, vector<32x32xbf16>
    %cst_46 = arith.constant dense<0.000000e+00> : vector<16x32xf32>
    %358 = tpu.matmul %356, %357, %cst_46 {dimension_numbers = #tpu.dot_dimension_numbers<[1], [0], [0], [1], [0, 0, 1, 1], [], []>} : vector<16x32xbf16>, vector<32x32xbf16>, vector<16x32xf32> -> vector<16x32xf32>
    %c0_47 = arith.constant 0 : index
    %c0_48 = arith.constant 0 : index
    %359 = vector.load %arg8[%c0_47, %c0_48] : memref<1x32xf32, #tpu.memory_space<vmem>>, vector<1x32xf32>
    %360 = vector.broadcast %359 : vector<1x32xf32> to vector<16x32xf32>
    %361 = arith.addf %358, %360 : vector<16x32xf32>
    %362 = math.tanh %361 : vector<16x32xf32>
    %c0_49 = arith.constant 0 : index
    %c0_50 = arith.constant 0 : index
    %363 = vector.load %arg9[%c0_49, %c0_50] : memref<1x32xf32, #tpu.memory_space<vmem>>, vector<1x32xf32>
    %364 = vector.broadcast %363 : vector<1x32xf32> to vector<16x32xf32>
    %365 = arith.mulf %362, %364 : vector<16x32xf32>
    %cst_51 = arith.constant dense<0.000000e+00> : vector<16xf32>
    %366 = vector.multi_reduction <add>, %365, %cst_51 [1] : vector<16x32xf32> to vector<16xf32>
    %367 = vector.shape_cast %366 : vector<16xf32> to vector<16x1xf32>
    %c0_52 = arith.constant 0 : index
    %c0_53 = arith.constant 0 : index
    %368 = vector.load %arg10[%c0_52, %c0_53] : memref<1x1xf32, #tpu.memory_space<vmem>>, vector<1x1xf32>
    %369 = vector.broadcast %368 : vector<1x1xf32> to vector<16x1xf32>
    %370 = arith.addf %367, %369 : vector<16x1xf32>
    %371 = vector.shape_cast %370 : vector<16x1xf32> to vector<2x8xf32>
    %cst_54 = arith.constant dense<0xFF800000> : vector<2xf32>
    %372 = vector.multi_reduction <maximumf>, %371, %cst_54 [1] : vector<2x8xf32> to vector<2xf32>
    %373 = vector.shape_cast %372 : vector<2xf32> to vector<2x1xf32>
    %374 = vector.broadcast %373 : vector<2x1xf32> to vector<2x8xf32>
    %375 = arith.subf %371, %374 : vector<2x8xf32>
    %376 = math.exp %375 : vector<2x8xf32>
    %cst_55 = arith.constant dense<0.000000e+00> : vector<2xf32>
    %377 = vector.multi_reduction <add>, %376, %cst_55 [1] : vector<2x8xf32> to vector<2xf32>
    %378 = vector.shape_cast %377 : vector<2xf32> to vector<2x1xf32>
    %379 = vector.broadcast %378 : vector<2x1xf32> to vector<2x8xf32>
    %380 = arith.divf %376, %379 : vector<2x8xf32>
    %381 = vector.shape_cast %380 : vector<2x8xf32> to vector<2x8x1xf32>
    %382 = vector.broadcast %381 : vector<2x8x1xf32> to vector<2x8x32xf32>
    %383 = arith.mulf %354, %382 : vector<2x8x32xf32>
    %cst_56 = arith.constant dense<0.000000e+00> : vector<2x32xf32>
    %384 = vector.multi_reduction <add>, %383, %cst_56 [1] : vector<2x8x32xf32> to vector<2x32xf32>
    %385 = arith.truncf %384 : vector<2x32xf32> to vector<2x32xbf16>
    %c0_57 = arith.constant 0 : index
    %c0_58 = arith.constant 0 : index
    %386 = vector.load %arg11[%c0_57, %c0_58] : memref<32x28xbf16, #tpu.memory_space<vmem>>, vector<32x28xbf16>
    %cst_59 = arith.constant dense<0.000000e+00> : vector<2x28xf32>
    %387 = tpu.matmul %385, %386, %cst_59 {dimension_numbers = #tpu.dot_dimension_numbers<[1], [0], [0], [1], [0, 0, 1, 1], [], []>} : vector<2x32xbf16>, vector<32x28xbf16>, vector<2x28xf32> -> vector<2x28xf32>
    %c0_60 = arith.constant 0 : index
    %c0_61 = arith.constant 0 : index
    %388 = vector.load %arg12[%c0_60, %c0_61] : memref<1x28xf32, #tpu.memory_space<vmem>>, vector<1x28xf32>
    %389 = vector.broadcast %388 : vector<1x28xf32> to vector<2x28xf32>
    %390 = arith.addf %387, %389 : vector<2x28xf32>
    %391 = vector.extract_strided_slice %390 {offsets = [0, 0], sizes = [2, 14], strides = [1, 1]} : vector<2x28xf32> to vector<2x14xf32>
    %392 = vector.extract_strided_slice %390 {offsets = [0, 14], sizes = [2, 14], strides = [1, 1]} : vector<2x28xf32> to vector<2x14xf32>
    %c0_62 = arith.constant 0 : index
    %c0_63 = arith.constant 0 : index
    %393 = vector.load %arg21[%c0_62, %c0_63] : memref<2x14xf32, #tpu.memory_space<vmem>>, vector<2x14xf32>
    tpu.vector_store %arg21[%c0_62, %c0_63], %391 {strides = array<i32>} : memref<2x14xf32, #tpu.memory_space<vmem>>, vector<2x14xf32>,
    %c0_64 = arith.constant 0 : index
    %c0_65 = arith.constant 0 : index
    %394 = vector.load %arg22[%c0_64, %c0_65] : memref<2x14xf32, #tpu.memory_space<vmem>>, vector<2x14xf32>
    tpu.vector_store %arg22[%c0_64, %c0_65], %392 {strides = array<i32>} : memref<2x14xf32, #tpu.memory_space<vmem>>, vector<2x14xf32>,
    %c0_66 = arith.constant 0 : index
    %c0_67 = arith.constant 0 : index
    %395 = vector.load %arg1[%c0_66, %c0_67] : memref<2x14xf32, #tpu.memory_space<vmem>>, vector<2x14xf32>
    %cst_68 = arith.constant 5.000000e-01 : f32
    %396 = vector.broadcast %cst_68 : f32 to vector<2x14xf32>
    %397 = arith.mulf %396, %392 : vector<2x14xf32>
    %398 = math.exp %397 : vector<2x14xf32>
    %399 = arith.mulf %395, %398 : vector<2x14xf32>
    %400 = arith.addf %391, %399 : vector<2x14xf32>
    %401 = arith.truncf %400 : vector<2x14xf32> to vector<2x14xbf16>
    %c0_69 = arith.constant 0 : index
    %c0_70 = arith.constant 0 : index
    %402 = vector.load %arg13[%c0_69, %c0_70] : memref<14x128xbf16, #tpu.memory_space<vmem>>, vector<14x128xbf16>
    %cst_71 = arith.constant dense<0.000000e+00> : vector<2x128xf32>
    %403 = tpu.matmul %401, %402, %cst_71 {dimension_numbers = #tpu.dot_dimension_numbers<[1], [0], [0], [1], [0, 0, 1, 1], [], []>} : vector<2x14xbf16>, vector<14x128xbf16>, vector<2x128xf32> -> vector<2x128xf32>
    %c0_72 = arith.constant 0 : index
    %c0_73 = arith.constant 0 : index
    %404 = vector.load %arg15[%c0_72, %c0_73] : memref<1x128xf32, #tpu.memory_space<vmem>>, vector<1x128xf32>
    %405 = vector.broadcast %404 : vector<1x128xf32> to vector<2x128xf32>
    %406 = arith.addf %403, %405 : vector<2x128xf32>
    %c0_74 = arith.constant 0 : index
    %c0_75 = arith.constant 0 : index
    %407 = vector.load %arg17[%c0_74, %c0_75] : memref<1x128xf32, #tpu.memory_space<vmem>>, vector<1x128xf32>
    %408 = vector.shape_cast %407 : vector<1x128xf32> to vector<1x128xf32>
    %409 = vector.broadcast %408 : vector<1x128xf32> to vector<2x128xf32>
    %c0_76 = arith.constant 0 : index
    %c0_77 = arith.constant 0 : index
    %410 = vector.load %arg14[%c0_76, %c0_77] : memref<32x128xbf16, #tpu.memory_space<vmem>>, vector<32x128xbf16>
    %c0_78 = arith.constant 0 : index
    %c0_79 = arith.constant 0 : index
    %411 = vector.load %arg16[%c0_78, %c0_79] : memref<64x128xbf16, #tpu.memory_space<vmem>>, vector<64x128xbf16>
    %cst_80 = arith.constant 0.000000e+00 : f32
    %412 = vector.broadcast %cst_80 : f32 to vector<2x32xf32>
    %413 = math.tanh %406 : vector<2x128xf32>
    %414 = arith.negf %406 : vector<2x128xf32>
    %415 = math.exp %414 : vector<2x128xf32>
    %cst_81 = arith.constant 1.000000e+00 : f32
    %416 = vector.broadcast %cst_81 : f32 to vector<2x128xf32>
    %417 = arith.addf %416, %415 : vector<2x128xf32>
    %418 = arith.divf %416, %417 : vector<2x128xf32>
    %419 = arith.select %6, %413, %418 : vector<2x128xi1>, vector<2x128xf32>
    %420 = vector.extract_strided_slice %419 {offsets = [0, 0], sizes = [2, 32], strides = [1, 1]} : vector<2x128xf32> to vector<2x32xf32>
    %421 = vector.extract_strided_slice %419 {offsets = [0, 32], sizes = [2, 32], strides = [1, 1]} : vector<2x128xf32> to vector<2x32xf32>
    %422 = vector.extract_strided_slice %419 {offsets = [0, 64], sizes = [2, 32], strides = [1, 1]} : vector<2x128xf32> to vector<2x32xf32>
    %423 = vector.extract_strided_slice %419 {offsets = [0, 96], sizes = [2, 32], strides = [1, 1]} : vector<2x128xf32> to vector<2x32xf32>
    %424 = arith.mulf %421, %412 : vector<2x32xf32>
    %425 = arith.mulf %420, %422 : vector<2x32xf32>
    %426 = arith.addf %424, %425 : vector<2x32xf32>
    %427 = math.tanh %426 : vector<2x32xf32>
    %428 = arith.mulf %423, %427 : vector<2x32xf32>
    %429 = tpu.concatenate %428, %412 in 1 : vector<2x32xf32>, vector<2x32xf32> -> vector<2x64xf32>
    %430 = arith.truncf %429 : vector<2x64xf32> to vector<2x64xbf16>
    %cst_82 = arith.constant dense<0.000000e+00> : vector<2x128xf32>
    %431 = tpu.matmul %430, %411, %cst_82 {dimension_numbers = #tpu.dot_dimension_numbers<[1], [0], [0], [1], [0, 0, 1, 1], [], []>} : vector<2x64xbf16>, vector<64x128xbf16>, vector<2x128xf32> -> vector<2x128xf32>
    %432 = arith.addf %431, %409 : vector<2x128xf32>
    %433 = math.tanh %432 : vector<2x128xf32>
    %434 = arith.negf %432 : vector<2x128xf32>
    %435 = math.exp %434 : vector<2x128xf32>
    %cst_83 = arith.constant 1.000000e+00 : f32
    %436 = vector.broadcast %cst_83 : f32 to vector<2x128xf32>
    %437 = arith.addf %436, %435 : vector<2x128xf32>
    %438 = arith.divf %436, %437 : vector<2x128xf32>
    %439 = arith.select %6, %433, %438 : vector<2x128xi1>, vector<2x128xf32>
    %440 = vector.extract_strided_slice %439 {offsets = [0, 0], sizes = [2, 32], strides = [1, 1]} : vector<2x128xf32> to vector<2x32xf32>
    %441 = vector.extract_strided_slice %439 {offsets = [0, 32], sizes = [2, 32], strides = [1, 1]} : vector<2x128xf32> to vector<2x32xf32>
    %442 = vector.extract_strided_slice %439 {offsets = [0, 64], sizes = [2, 32], strides = [1, 1]} : vector<2x128xf32> to vector<2x32xf32>
    %443 = vector.extract_strided_slice %439 {offsets = [0, 96], sizes = [2, 32], strides = [1, 1]} : vector<2x128xf32> to vector<2x32xf32>
    %444 = arith.mulf %441, %412 : vector<2x32xf32>
    %445 = arith.mulf %440, %442 : vector<2x32xf32>
    %446 = arith.addf %444, %445 : vector<2x32xf32>
    %447 = math.tanh %446 : vector<2x32xf32>
    %448 = arith.mulf %443, %447 : vector<2x32xf32>
    %449 = arith.truncf %428 : vector<2x32xf32> to vector<2x32xbf16>
    %cst_84 = arith.constant dense<0.000000e+00> : vector<2x128xf32>
    %450 = tpu.matmul %449, %410, %cst_84 {dimension_numbers = #tpu.dot_dimension_numbers<[1], [0], [0], [1], [0, 0, 1, 1], [], []>} : vector<2x32xbf16>, vector<32x128xbf16>, vector<2x128xf32> -> vector<2x128xf32>
    %451 = arith.addf %406, %450 : vector<2x128xf32>
    %452 = math.tanh %451 : vector<2x128xf32>
    %453 = arith.negf %451 : vector<2x128xf32>
    %454 = math.exp %453 : vector<2x128xf32>
    %cst_85 = arith.constant 1.000000e+00 : f32
    %455 = vector.broadcast %cst_85 : f32 to vector<2x128xf32>
    %456 = arith.addf %455, %454 : vector<2x128xf32>
    %457 = arith.divf %455, %456 : vector<2x128xf32>
    %458 = arith.select %6, %452, %457 : vector<2x128xi1>, vector<2x128xf32>
    %459 = vector.extract_strided_slice %458 {offsets = [0, 0], sizes = [2, 32], strides = [1, 1]} : vector<2x128xf32> to vector<2x32xf32>
    %460 = vector.extract_strided_slice %458 {offsets = [0, 32], sizes = [2, 32], strides = [1, 1]} : vector<2x128xf32> to vector<2x32xf32>
    %461 = vector.extract_strided_slice %458 {offsets = [0, 64], sizes = [2, 32], strides = [1, 1]} : vector<2x128xf32> to vector<2x32xf32>
    %462 = vector.extract_strided_slice %458 {offsets = [0, 96], sizes = [2, 32], strides = [1, 1]} : vector<2x128xf32> to vector<2x32xf32>
    %463 = arith.mulf %460, %426 : vector<2x32xf32>
    %464 = arith.mulf %459, %461 : vector<2x32xf32>
    %465 = arith.addf %463, %464 : vector<2x32xf32>
    %466 = math.tanh %465 : vector<2x32xf32>
    %467 = arith.mulf %462, %466 : vector<2x32xf32>
    %468 = tpu.concatenate %467, %448 in 1 : vector<2x32xf32>, vector<2x32xf32> -> vector<2x64xf32>
    %469 = arith.truncf %468 : vector<2x64xf32> to vector<2x64xbf16>
    %cst_86 = arith.constant dense<0.000000e+00> : vector<2x128xf32>
    %470 = tpu.matmul %469, %411, %cst_86 {dimension_numbers = #tpu.dot_dimension_numbers<[1], [0], [0], [1], [0, 0, 1, 1], [], []>} : vector<2x64xbf16>, vector<64x128xbf16>, vector<2x128xf32> -> vector<2x128xf32>
    %471 = arith.addf %470, %409 : vector<2x128xf32>
    %472 = math.tanh %471 : vector<2x128xf32>
    %473 = arith.negf %471 : vector<2x128xf32>
    %474 = math.exp %473 : vector<2x128xf32>
    %cst_87 = arith.constant 1.000000e+00 : f32
    %475 = vector.broadcast %cst_87 : f32 to vector<2x128xf32>
    %476 = arith.addf %475, %474 : vector<2x128xf32>
    %477 = arith.divf %475, %476 : vector<2x128xf32>
    %478 = arith.select %6, %472, %477 : vector<2x128xi1>, vector<2x128xf32>
    %479 = vector.extract_strided_slice %478 {offsets = [0, 0], sizes = [2, 32], strides = [1, 1]} : vector<2x128xf32> to vector<2x32xf32>
    %480 = vector.extract_strided_slice %478 {offsets = [0, 32], sizes = [2, 32], strides = [1, 1]} : vector<2x128xf32> to vector<2x32xf32>
    %481 = vector.extract_strided_slice %478 {offsets = [0, 64], sizes = [2, 32], strides = [1, 1]} : vector<2x128xf32> to vector<2x32xf32>
    %482 = vector.extract_strided_slice %478 {offsets = [0, 96], sizes = [2, 32], strides = [1, 1]} : vector<2x128xf32> to vector<2x32xf32>
    %483 = arith.mulf %480, %446 : vector<2x32xf32>
    %484 = arith.mulf %479, %481 : vector<2x32xf32>
    %485 = arith.addf %483, %484 : vector<2x32xf32>
    %486 = math.tanh %485 : vector<2x32xf32>
    %487 = arith.mulf %482, %486 : vector<2x32xf32>
    %488 = arith.truncf %467 : vector<2x32xf32> to vector<2x32xbf16>
    %cst_88 = arith.constant dense<0.000000e+00> : vector<2x128xf32>
    %489 = tpu.matmul %488, %410, %cst_88 {dimension_numbers = #tpu.dot_dimension_numbers<[1], [0], [0], [1], [0, 0, 1, 1], [], []>} : vector<2x32xbf16>, vector<32x128xbf16>, vector<2x128xf32> -> vector<2x128xf32>
    %490 = arith.addf %406, %489 : vector<2x128xf32>
    %491 = math.tanh %490 : vector<2x128xf32>
    %492 = arith.negf %490 : vector<2x128xf32>
    %493 = math.exp %492 : vector<2x128xf32>
    %cst_89 = arith.constant 1.000000e+00 : f32
    %494 = vector.broadcast %cst_89 : f32 to vector<2x128xf32>
    %495 = arith.addf %494, %493 : vector<2x128xf32>
    %496 = arith.divf %494, %495 : vector<2x128xf32>
    %497 = arith.select %6, %491, %496 : vector<2x128xi1>, vector<2x128xf32>
    %498 = vector.extract_strided_slice %497 {offsets = [0, 0], sizes = [2, 32], strides = [1, 1]} : vector<2x128xf32> to vector<2x32xf32>
    %499 = vector.extract_strided_slice %497 {offsets = [0, 32], sizes = [2, 32], strides = [1, 1]} : vector<2x128xf32> to vector<2x32xf32>
    %500 = vector.extract_strided_slice %497 {offsets = [0, 64], sizes = [2, 32], strides = [1, 1]} : vector<2x128xf32> to vector<2x32xf32>
    %501 = vector.extract_strided_slice %497 {offsets = [0, 96], sizes = [2, 32], strides = [1, 1]} : vector<2x128xf32> to vector<2x32xf32>
    %502 = arith.mulf %499, %465 : vector<2x32xf32>
    %503 = arith.mulf %498, %500 : vector<2x32xf32>
    %504 = arith.addf %502, %503 : vector<2x32xf32>
    %505 = math.tanh %504 : vector<2x32xf32>
    %506 = arith.mulf %501, %505 : vector<2x32xf32>
    %507 = tpu.concatenate %506, %487 in 1 : vector<2x32xf32>, vector<2x32xf32> -> vector<2x64xf32>
    %508 = arith.truncf %507 : vector<2x64xf32> to vector<2x64xbf16>
    %cst_90 = arith.constant dense<0.000000e+00> : vector<2x128xf32>
    %509 = tpu.matmul %508, %411, %cst_90 {dimension_numbers = #tpu.dot_dimension_numbers<[1], [0], [0], [1], [0, 0, 1, 1], [], []>} : vector<2x64xbf16>, vector<64x128xbf16>, vector<2x128xf32> -> vector<2x128xf32>
    %510 = arith.addf %509, %409 : vector<2x128xf32>
    %511 = math.tanh %510 : vector<2x128xf32>
    %512 = arith.negf %510 : vector<2x128xf32>
    %513 = math.exp %512 : vector<2x128xf32>
    %cst_91 = arith.constant 1.000000e+00 : f32
    %514 = vector.broadcast %cst_91 : f32 to vector<2x128xf32>
    %515 = arith.addf %514, %513 : vector<2x128xf32>
    %516 = arith.divf %514, %515 : vector<2x128xf32>
    %517 = arith.select %6, %511, %516 : vector<2x128xi1>, vector<2x128xf32>
    %518 = vector.extract_strided_slice %517 {offsets = [0, 0], sizes = [2, 32], strides = [1, 1]} : vector<2x128xf32> to vector<2x32xf32>
    %519 = vector.extract_strided_slice %517 {offsets = [0, 32], sizes = [2, 32], strides = [1, 1]} : vector<2x128xf32> to vector<2x32xf32>
    %520 = vector.extract_strided_slice %517 {offsets = [0, 64], sizes = [2, 32], strides = [1, 1]} : vector<2x128xf32> to vector<2x32xf32>
    %521 = vector.extract_strided_slice %517 {offsets = [0, 96], sizes = [2, 32], strides = [1, 1]} : vector<2x128xf32> to vector<2x32xf32>
    %522 = arith.mulf %519, %485 : vector<2x32xf32>
    %523 = arith.mulf %518, %520 : vector<2x32xf32>
    %524 = arith.addf %522, %523 : vector<2x32xf32>
    %525 = math.tanh %524 : vector<2x32xf32>
    %526 = arith.mulf %521, %525 : vector<2x32xf32>
    %527 = arith.truncf %506 : vector<2x32xf32> to vector<2x32xbf16>
    %cst_92 = arith.constant dense<0.000000e+00> : vector<2x128xf32>
    %528 = tpu.matmul %527, %410, %cst_92 {dimension_numbers = #tpu.dot_dimension_numbers<[1], [0], [0], [1], [0, 0, 1, 1], [], []>} : vector<2x32xbf16>, vector<32x128xbf16>, vector<2x128xf32> -> vector<2x128xf32>
    %529 = arith.addf %406, %528 : vector<2x128xf32>
    %530 = math.tanh %529 : vector<2x128xf32>
    %531 = arith.negf %529 : vector<2x128xf32>
    %532 = math.exp %531 : vector<2x128xf32>
    %cst_93 = arith.constant 1.000000e+00 : f32
    %533 = vector.broadcast %cst_93 : f32 to vector<2x128xf32>
    %534 = arith.addf %533, %532 : vector<2x128xf32>
    %535 = arith.divf %533, %534 : vector<2x128xf32>
    %536 = arith.select %6, %530, %535 : vector<2x128xi1>, vector<2x128xf32>
    %537 = vector.extract_strided_slice %536 {offsets = [0, 0], sizes = [2, 32], strides = [1, 1]} : vector<2x128xf32> to vector<2x32xf32>
    %538 = vector.extract_strided_slice %536 {offsets = [0, 32], sizes = [2, 32], strides = [1, 1]} : vector<2x128xf32> to vector<2x32xf32>
    %539 = vector.extract_strided_slice %536 {offsets = [0, 64], sizes = [2, 32], strides = [1, 1]} : vector<2x128xf32> to vector<2x32xf32>
    %540 = vector.extract_strided_slice %536 {offsets = [0, 96], sizes = [2, 32], strides = [1, 1]} : vector<2x128xf32> to vector<2x32xf32>
    %541 = arith.mulf %538, %504 : vector<2x32xf32>
    %542 = arith.mulf %537, %539 : vector<2x32xf32>
    %543 = arith.addf %541, %542 : vector<2x32xf32>
    %544 = math.tanh %543 : vector<2x32xf32>
    %545 = arith.mulf %540, %544 : vector<2x32xf32>
    %546 = tpu.concatenate %545, %526 in 1 : vector<2x32xf32>, vector<2x32xf32> -> vector<2x64xf32>
    %547 = arith.truncf %546 : vector<2x64xf32> to vector<2x64xbf16>
    %cst_94 = arith.constant dense<0.000000e+00> : vector<2x128xf32>
    %548 = tpu.matmul %547, %411, %cst_94 {dimension_numbers = #tpu.dot_dimension_numbers<[1], [0], [0], [1], [0, 0, 1, 1], [], []>} : vector<2x64xbf16>, vector<64x128xbf16>, vector<2x128xf32> -> vector<2x128xf32>
    %549 = arith.addf %548, %409 : vector<2x128xf32>
    %550 = math.tanh %549 : vector<2x128xf32>
    %551 = arith.negf %549 : vector<2x128xf32>
    %552 = math.exp %551 : vector<2x128xf32>
    %cst_95 = arith.constant 1.000000e+00 : f32
    %553 = vector.broadcast %cst_95 : f32 to vector<2x128xf32>
    %554 = arith.addf %553, %552 : vector<2x128xf32>
    %555 = arith.divf %553, %554 : vector<2x128xf32>
    %556 = arith.select %6, %550, %555 : vector<2x128xi1>, vector<2x128xf32>
    %557 = vector.extract_strided_slice %556 {offsets = [0, 0], sizes = [2, 32], strides = [1, 1]} : vector<2x128xf32> to vector<2x32xf32>
    %558 = vector.extract_strided_slice %556 {offsets = [0, 32], sizes = [2, 32], strides = [1, 1]} : vector<2x128xf32> to vector<2x32xf32>
    %559 = vector.extract_strided_slice %556 {offsets = [0, 64], sizes = [2, 32], strides = [1, 1]} : vector<2x128xf32> to vector<2x32xf32>
    %560 = vector.extract_strided_slice %556 {offsets = [0, 96], sizes = [2, 32], strides = [1, 1]} : vector<2x128xf32> to vector<2x32xf32>
    %561 = arith.mulf %558, %524 : vector<2x32xf32>
    %562 = arith.mulf %557, %559 : vector<2x32xf32>
    %563 = arith.addf %561, %562 : vector<2x32xf32>
    %564 = math.tanh %563 : vector<2x32xf32>
    %565 = arith.mulf %560, %564 : vector<2x32xf32>
    %566 = arith.truncf %545 : vector<2x32xf32> to vector<2x32xbf16>
    %cst_96 = arith.constant dense<0.000000e+00> : vector<2x128xf32>
    %567 = tpu.matmul %566, %410, %cst_96 {dimension_numbers = #tpu.dot_dimension_numbers<[1], [0], [0], [1], [0, 0, 1, 1], [], []>} : vector<2x32xbf16>, vector<32x128xbf16>, vector<2x128xf32> -> vector<2x128xf32>
    %568 = arith.addf %406, %567 : vector<2x128xf32>
    %569 = math.tanh %568 : vector<2x128xf32>
    %570 = arith.negf %568 : vector<2x128xf32>
    %571 = math.exp %570 : vector<2x128xf32>
    %cst_97 = arith.constant 1.000000e+00 : f32
    %572 = vector.broadcast %cst_97 : f32 to vector<2x128xf32>
    %573 = arith.addf %572, %571 : vector<2x128xf32>
    %574 = arith.divf %572, %573 : vector<2x128xf32>
    %575 = arith.select %6, %569, %574 : vector<2x128xi1>, vector<2x128xf32>
    %576 = vector.extract_strided_slice %575 {offsets = [0, 0], sizes = [2, 32], strides = [1, 1]} : vector<2x128xf32> to vector<2x32xf32>
    %577 = vector.extract_strided_slice %575 {offsets = [0, 32], sizes = [2, 32], strides = [1, 1]} : vector<2x128xf32> to vector<2x32xf32>
    %578 = vector.extract_strided_slice %575 {offsets = [0, 64], sizes = [2, 32], strides = [1, 1]} : vector<2x128xf32> to vector<2x32xf32>
    %579 = vector.extract_strided_slice %575 {offsets = [0, 96], sizes = [2, 32], strides = [1, 1]} : vector<2x128xf32> to vector<2x32xf32>
    %580 = arith.mulf %577, %543 : vector<2x32xf32>
    %581 = arith.mulf %576, %578 : vector<2x32xf32>
    %582 = arith.addf %580, %581 : vector<2x32xf32>
    %583 = math.tanh %582 : vector<2x32xf32>
    %584 = arith.mulf %579, %583 : vector<2x32xf32>
    %585 = tpu.concatenate %584, %565 in 1 : vector<2x32xf32>, vector<2x32xf32> -> vector<2x64xf32>
    %586 = arith.truncf %585 : vector<2x64xf32> to vector<2x64xbf16>
    %cst_98 = arith.constant dense<0.000000e+00> : vector<2x128xf32>
    %587 = tpu.matmul %586, %411, %cst_98 {dimension_numbers = #tpu.dot_dimension_numbers<[1], [0], [0], [1], [0, 0, 1, 1], [], []>} : vector<2x64xbf16>, vector<64x128xbf16>, vector<2x128xf32> -> vector<2x128xf32>
    %588 = arith.addf %587, %409 : vector<2x128xf32>
    %589 = math.tanh %588 : vector<2x128xf32>
    %590 = arith.negf %588 : vector<2x128xf32>
    %591 = math.exp %590 : vector<2x128xf32>
    %cst_99 = arith.constant 1.000000e+00 : f32
    %592 = vector.broadcast %cst_99 : f32 to vector<2x128xf32>
    %593 = arith.addf %592, %591 : vector<2x128xf32>
    %594 = arith.divf %592, %593 : vector<2x128xf32>
    %595 = arith.select %6, %589, %594 : vector<2x128xi1>, vector<2x128xf32>
    %596 = vector.extract_strided_slice %595 {offsets = [0, 0], sizes = [2, 32], strides = [1, 1]} : vector<2x128xf32> to vector<2x32xf32>
    %597 = vector.extract_strided_slice %595 {offsets = [0, 32], sizes = [2, 32], strides = [1, 1]} : vector<2x128xf32> to vector<2x32xf32>
    %598 = vector.extract_strided_slice %595 {offsets = [0, 64], sizes = [2, 32], strides = [1, 1]} : vector<2x128xf32> to vector<2x32xf32>
    %599 = vector.extract_strided_slice %595 {offsets = [0, 96], sizes = [2, 32], strides = [1, 1]} : vector<2x128xf32> to vector<2x32xf32>
    %600 = arith.mulf %597, %563 : vector<2x32xf32>
    %601 = arith.mulf %596, %598 : vector<2x32xf32>
    %602 = arith.addf %600, %601 : vector<2x32xf32>
    %603 = math.tanh %602 : vector<2x32xf32>
    %604 = arith.mulf %599, %603 : vector<2x32xf32>
    %605 = arith.truncf %584 : vector<2x32xf32> to vector<2x32xbf16>
    %cst_100 = arith.constant dense<0.000000e+00> : vector<2x128xf32>
    %606 = tpu.matmul %605, %410, %cst_100 {dimension_numbers = #tpu.dot_dimension_numbers<[1], [0], [0], [1], [0, 0, 1, 1], [], []>} : vector<2x32xbf16>, vector<32x128xbf16>, vector<2x128xf32> -> vector<2x128xf32>
    %607 = arith.addf %406, %606 : vector<2x128xf32>
    %608 = math.tanh %607 : vector<2x128xf32>
    %609 = arith.negf %607 : vector<2x128xf32>
    %610 = math.exp %609 : vector<2x128xf32>
    %cst_101 = arith.constant 1.000000e+00 : f32
    %611 = vector.broadcast %cst_101 : f32 to vector<2x128xf32>
    %612 = arith.addf %611, %610 : vector<2x128xf32>
    %613 = arith.divf %611, %612 : vector<2x128xf32>
    %614 = arith.select %6, %608, %613 : vector<2x128xi1>, vector<2x128xf32>
    %615 = vector.extract_strided_slice %614 {offsets = [0, 0], sizes = [2, 32], strides = [1, 1]} : vector<2x128xf32> to vector<2x32xf32>
    %616 = vector.extract_strided_slice %614 {offsets = [0, 32], sizes = [2, 32], strides = [1, 1]} : vector<2x128xf32> to vector<2x32xf32>
    %617 = vector.extract_strided_slice %614 {offsets = [0, 64], sizes = [2, 32], strides = [1, 1]} : vector<2x128xf32> to vector<2x32xf32>
    %618 = vector.extract_strided_slice %614 {offsets = [0, 96], sizes = [2, 32], strides = [1, 1]} : vector<2x128xf32> to vector<2x32xf32>
    %619 = arith.mulf %616, %582 : vector<2x32xf32>
    %620 = arith.mulf %615, %617 : vector<2x32xf32>
    %621 = arith.addf %619, %620 : vector<2x32xf32>
    %622 = math.tanh %621 : vector<2x32xf32>
    %623 = arith.mulf %618, %622 : vector<2x32xf32>
    %624 = tpu.concatenate %623, %604 in 1 : vector<2x32xf32>, vector<2x32xf32> -> vector<2x64xf32>
    %625 = arith.truncf %624 : vector<2x64xf32> to vector<2x64xbf16>
    %cst_102 = arith.constant dense<0.000000e+00> : vector<2x128xf32>
    %626 = tpu.matmul %625, %411, %cst_102 {dimension_numbers = #tpu.dot_dimension_numbers<[1], [0], [0], [1], [0, 0, 1, 1], [], []>} : vector<2x64xbf16>, vector<64x128xbf16>, vector<2x128xf32> -> vector<2x128xf32>
    %627 = arith.addf %626, %409 : vector<2x128xf32>
    %628 = math.tanh %627 : vector<2x128xf32>
    %629 = arith.negf %627 : vector<2x128xf32>
    %630 = math.exp %629 : vector<2x128xf32>
    %cst_103 = arith.constant 1.000000e+00 : f32
    %631 = vector.broadcast %cst_103 : f32 to vector<2x128xf32>
    %632 = arith.addf %631, %630 : vector<2x128xf32>
    %633 = arith.divf %631, %632 : vector<2x128xf32>
    %634 = arith.select %6, %628, %633 : vector<2x128xi1>, vector<2x128xf32>
    %635 = vector.extract_strided_slice %634 {offsets = [0, 0], sizes = [2, 32], strides = [1, 1]} : vector<2x128xf32> to vector<2x32xf32>
    %636 = vector.extract_strided_slice %634 {offsets = [0, 32], sizes = [2, 32], strides = [1, 1]} : vector<2x128xf32> to vector<2x32xf32>
    %637 = vector.extract_strided_slice %634 {offsets = [0, 64], sizes = [2, 32], strides = [1, 1]} : vector<2x128xf32> to vector<2x32xf32>
    %638 = vector.extract_strided_slice %634 {offsets = [0, 96], sizes = [2, 32], strides = [1, 1]} : vector<2x128xf32> to vector<2x32xf32>
    %639 = arith.mulf %636, %602 : vector<2x32xf32>
    %640 = arith.mulf %635, %637 : vector<2x32xf32>
    %641 = arith.addf %639, %640 : vector<2x32xf32>
    %642 = math.tanh %641 : vector<2x32xf32>
    %643 = arith.mulf %638, %642 : vector<2x32xf32>
    %644 = arith.truncf %623 : vector<2x32xf32> to vector<2x32xbf16>
    %cst_104 = arith.constant dense<0.000000e+00> : vector<2x128xf32>
    %645 = tpu.matmul %644, %410, %cst_104 {dimension_numbers = #tpu.dot_dimension_numbers<[1], [0], [0], [1], [0, 0, 1, 1], [], []>} : vector<2x32xbf16>, vector<32x128xbf16>, vector<2x128xf32> -> vector<2x128xf32>
    %646 = arith.addf %406, %645 : vector<2x128xf32>
    %647 = math.tanh %646 : vector<2x128xf32>
    %648 = arith.negf %646 : vector<2x128xf32>
    %649 = math.exp %648 : vector<2x128xf32>
    %cst_105 = arith.constant 1.000000e+00 : f32
    %650 = vector.broadcast %cst_105 : f32 to vector<2x128xf32>
    %651 = arith.addf %650, %649 : vector<2x128xf32>
    %652 = arith.divf %650, %651 : vector<2x128xf32>
    %653 = arith.select %6, %647, %652 : vector<2x128xi1>, vector<2x128xf32>
    %654 = vector.extract_strided_slice %653 {offsets = [0, 0], sizes = [2, 32], strides = [1, 1]} : vector<2x128xf32> to vector<2x32xf32>
    %655 = vector.extract_strided_slice %653 {offsets = [0, 32], sizes = [2, 32], strides = [1, 1]} : vector<2x128xf32> to vector<2x32xf32>
    %656 = vector.extract_strided_slice %653 {offsets = [0, 64], sizes = [2, 32], strides = [1, 1]} : vector<2x128xf32> to vector<2x32xf32>
    %657 = vector.extract_strided_slice %653 {offsets = [0, 96], sizes = [2, 32], strides = [1, 1]} : vector<2x128xf32> to vector<2x32xf32>
    %658 = arith.mulf %655, %621 : vector<2x32xf32>
    %659 = arith.mulf %654, %656 : vector<2x32xf32>
    %660 = arith.addf %658, %659 : vector<2x32xf32>
    %661 = math.tanh %660 : vector<2x32xf32>
    %662 = arith.mulf %657, %661 : vector<2x32xf32>
    %663 = tpu.concatenate %662, %643 in 1 : vector<2x32xf32>, vector<2x32xf32> -> vector<2x64xf32>
    %664 = arith.truncf %663 : vector<2x64xf32> to vector<2x64xbf16>
    %cst_106 = arith.constant dense<0.000000e+00> : vector<2x128xf32>
    %665 = tpu.matmul %664, %411, %cst_106 {dimension_numbers = #tpu.dot_dimension_numbers<[1], [0], [0], [1], [0, 0, 1, 1], [], []>} : vector<2x64xbf16>, vector<64x128xbf16>, vector<2x128xf32> -> vector<2x128xf32>
    %666 = arith.addf %665, %409 : vector<2x128xf32>
    %667 = math.tanh %666 : vector<2x128xf32>
    %668 = arith.negf %666 : vector<2x128xf32>
    %669 = math.exp %668 : vector<2x128xf32>
    %cst_107 = arith.constant 1.000000e+00 : f32
    %670 = vector.broadcast %cst_107 : f32 to vector<2x128xf32>
    %671 = arith.addf %670, %669 : vector<2x128xf32>
    %672 = arith.divf %670, %671 : vector<2x128xf32>
    %673 = arith.select %6, %667, %672 : vector<2x128xi1>, vector<2x128xf32>
    %674 = vector.extract_strided_slice %673 {offsets = [0, 0], sizes = [2, 32], strides = [1, 1]} : vector<2x128xf32> to vector<2x32xf32>
    %675 = vector.extract_strided_slice %673 {offsets = [0, 32], sizes = [2, 32], strides = [1, 1]} : vector<2x128xf32> to vector<2x32xf32>
    %676 = vector.extract_strided_slice %673 {offsets = [0, 64], sizes = [2, 32], strides = [1, 1]} : vector<2x128xf32> to vector<2x32xf32>
    %677 = vector.extract_strided_slice %673 {offsets = [0, 96], sizes = [2, 32], strides = [1, 1]} : vector<2x128xf32> to vector<2x32xf32>
    %678 = arith.mulf %675, %641 : vector<2x32xf32>
    %679 = arith.mulf %674, %676 : vector<2x32xf32>
    %680 = arith.addf %678, %679 : vector<2x32xf32>
    %681 = math.tanh %680 : vector<2x32xf32>
    %682 = arith.mulf %677, %681 : vector<2x32xf32>
    %683 = arith.truncf %662 : vector<2x32xf32> to vector<2x32xbf16>
    %cst_108 = arith.constant dense<0.000000e+00> : vector<2x128xf32>
    %684 = tpu.matmul %683, %410, %cst_108 {dimension_numbers = #tpu.dot_dimension_numbers<[1], [0], [0], [1], [0, 0, 1, 1], [], []>} : vector<2x32xbf16>, vector<32x128xbf16>, vector<2x128xf32> -> vector<2x128xf32>
    %685 = arith.addf %406, %684 : vector<2x128xf32>
    %686 = math.tanh %685 : vector<2x128xf32>
    %687 = arith.negf %685 : vector<2x128xf32>
    %688 = math.exp %687 : vector<2x128xf32>
    %cst_109 = arith.constant 1.000000e+00 : f32
    %689 = vector.broadcast %cst_109 : f32 to vector<2x128xf32>
    %690 = arith.addf %689, %688 : vector<2x128xf32>
    %691 = arith.divf %689, %690 : vector<2x128xf32>
    %692 = arith.select %6, %686, %691 : vector<2x128xi1>, vector<2x128xf32>
    %693 = vector.extract_strided_slice %692 {offsets = [0, 0], sizes = [2, 32], strides = [1, 1]} : vector<2x128xf32> to vector<2x32xf32>
    %694 = vector.extract_strided_slice %692 {offsets = [0, 32], sizes = [2, 32], strides = [1, 1]} : vector<2x128xf32> to vector<2x32xf32>
    %695 = vector.extract_strided_slice %692 {offsets = [0, 64], sizes = [2, 32], strides = [1, 1]} : vector<2x128xf32> to vector<2x32xf32>
    %696 = vector.extract_strided_slice %692 {offsets = [0, 96], sizes = [2, 32], strides = [1, 1]} : vector<2x128xf32> to vector<2x32xf32>
    %697 = arith.mulf %694, %660 : vector<2x32xf32>
    %698 = arith.mulf %693, %695 : vector<2x32xf32>
    %699 = arith.addf %697, %698 : vector<2x32xf32>
    %700 = math.tanh %699 : vector<2x32xf32>
    %701 = arith.mulf %696, %700 : vector<2x32xf32>
    %702 = tpu.concatenate %701, %682 in 1 : vector<2x32xf32>, vector<2x32xf32> -> vector<2x64xf32>
    %703 = arith.truncf %702 : vector<2x64xf32> to vector<2x64xbf16>
    %cst_110 = arith.constant dense<0.000000e+00> : vector<2x128xf32>
    %704 = tpu.matmul %703, %411, %cst_110 {dimension_numbers = #tpu.dot_dimension_numbers<[1], [0], [0], [1], [0, 0, 1, 1], [], []>} : vector<2x64xbf16>, vector<64x128xbf16>, vector<2x128xf32> -> vector<2x128xf32>
    %705 = arith.addf %704, %409 : vector<2x128xf32>
    %706 = math.tanh %705 : vector<2x128xf32>
    %707 = arith.negf %705 : vector<2x128xf32>
    %708 = math.exp %707 : vector<2x128xf32>
    %cst_111 = arith.constant 1.000000e+00 : f32
    %709 = vector.broadcast %cst_111 : f32 to vector<2x128xf32>
    %710 = arith.addf %709, %708 : vector<2x128xf32>
    %711 = arith.divf %709, %710 : vector<2x128xf32>
    %712 = arith.select %6, %706, %711 : vector<2x128xi1>, vector<2x128xf32>
    %713 = vector.extract_strided_slice %712 {offsets = [0, 0], sizes = [2, 32], strides = [1, 1]} : vector<2x128xf32> to vector<2x32xf32>
    %714 = vector.extract_strided_slice %712 {offsets = [0, 32], sizes = [2, 32], strides = [1, 1]} : vector<2x128xf32> to vector<2x32xf32>
    %715 = vector.extract_strided_slice %712 {offsets = [0, 64], sizes = [2, 32], strides = [1, 1]} : vector<2x128xf32> to vector<2x32xf32>
    %716 = vector.extract_strided_slice %712 {offsets = [0, 96], sizes = [2, 32], strides = [1, 1]} : vector<2x128xf32> to vector<2x32xf32>
    %717 = arith.mulf %714, %680 : vector<2x32xf32>
    %718 = arith.mulf %713, %715 : vector<2x32xf32>
    %719 = arith.addf %717, %718 : vector<2x32xf32>
    %720 = math.tanh %719 : vector<2x32xf32>
    %721 = arith.mulf %716, %720 : vector<2x32xf32>
    %722 = vector.shape_cast %448 : vector<2x32xf32> to vector<2x1x32xf32>
    %723 = vector.shape_cast %487 : vector<2x32xf32> to vector<2x1x32xf32>
    %724 = vector.shape_cast %526 : vector<2x32xf32> to vector<2x1x32xf32>
    %725 = vector.shape_cast %565 : vector<2x32xf32> to vector<2x1x32xf32>
    %726 = vector.shape_cast %604 : vector<2x32xf32> to vector<2x1x32xf32>
    %727 = vector.shape_cast %643 : vector<2x32xf32> to vector<2x1x32xf32>
    %728 = vector.shape_cast %682 : vector<2x32xf32> to vector<2x1x32xf32>
    %729 = vector.shape_cast %721 : vector<2x32xf32> to vector<2x1x32xf32>
    %730 = tpu.concatenate %722, %723, %724, %725, %726, %727, %728, %729 in 1 : vector<2x1x32xf32>, vector<2x1x32xf32>, vector<2x1x32xf32>, vector<2x1x32xf32>, vector<2x1x32xf32>, vector<2x1x32xf32>, vector<2x1x32xf32>, vector<2x1x32xf32> -> vector<2x8x32xf32>
    %731 = vector.shape_cast %730 : vector<2x8x32xf32> to vector<16x32xf32>
    %732 = arith.truncf %731 : vector<16x32xf32> to vector<16x32xbf16>
    %c0_112 = arith.constant 0 : index
    %c0_113 = arith.constant 0 : index
    %733 = vector.load %arg18[%c0_112, %c0_113] : memref<32x4xbf16, #tpu.memory_space<vmem>>, vector<32x4xbf16>
    %cst_114 = arith.constant dense<0.000000e+00> : vector<16x4xf32>
    %734 = tpu.matmul %732, %733, %cst_114 {dimension_numbers = #tpu.dot_dimension_numbers<[1], [0], [0], [1], [0, 0, 1, 1], [], []>} : vector<16x32xbf16>, vector<32x4xbf16>, vector<16x4xf32> -> vector<16x4xf32>
    %c0_115 = arith.constant 0 : index
    %c0_116 = arith.constant 0 : index
    %735 = vector.load %arg19[%c0_115, %c0_116] : memref<1x4xf32, #tpu.memory_space<vmem>>, vector<1x4xf32>
    %736 = vector.broadcast %735 : vector<1x4xf32> to vector<16x4xf32>
    %737 = arith.addf %734, %736 : vector<16x4xf32>
    %738 = vector.shape_cast %737 : vector<16x4xf32> to vector<2x8x4xf32>
    %c0_117 = arith.constant 0 : index
    %c0_118 = arith.constant 0 : index
    %c0_119 = arith.constant 0 : index
    %739 = vector.load %arg20[%c0_117, %c0_118, %c0_119] : memref<2x8x4xf32, #tpu.memory_space<vmem>>, vector<2x8x4xf32>
    tpu.vector_store %arg20[%c0_117, %c0_118, %c0_119], %738 {strides = array<i32>} : memref<2x8x4xf32, #tpu.memory_space<vmem>>, vector<2x8x4xf32>,
    return
  }
}

</mosaic_0001>

<llo_original>
// kernel: temporal_vae_forward.1
$region0: #{temporal_vae_forward.1}
  #allocation0 [shape = 'u32[]', space=smem, size = 0x4, offset = 0x4, fixed_abs, tag = 'smem constant byte address 0x4 - core index']
  #allocation1 [shape = 'u32[144,128]{1,0:T(1,128)}', space=vmem, size = 0x12000, scoped, tag = 'internal scratch']
  #allocation2 [shape = 'f32[1,1]{1,0:T(1,128)S(1)}', space=vmem, size = 0x200, scoped, tag = 'scoped memory for temporal_vae_forward.1']
  %s0 = inlined_call_operand.vmem [shape: f32[2,8,4], index: 0, kind: input, shape index: {}]
  %s1 = inlined_call_operand.vmem [shape: f32[2,14], index: 1, kind: input, shape index: {}]
  %s2 = inlined_call_operand.vmem [shape: bf16[4,128], index: 2, kind: input, shape index: {}]
  %s3 = inlined_call_operand.vmem [shape: bf16[32,128], index: 3, kind: input, shape index: {}]
  %s4 = inlined_call_operand.vmem [shape: f32[1,128], index: 4, kind: input, shape index: {}]
  %s5 = inlined_call_operand.vmem [shape: bf16[64,128], index: 5, kind: input, shape index: {}]
  %s6 = inlined_call_operand.vmem [shape: f32[1,128], index: 6, kind: input, shape index: {}]
  %s7 = inlined_call_operand.vmem [shape: bf16[32,32], index: 7, kind: input, shape index: {}]
  %s8 = inlined_call_operand.vmem [shape: f32[1,32], index: 8, kind: input, shape index: {}]
  %s9 = inlined_call_operand.vmem [shape: f32[1,32], index: 9, kind: input, shape index: {}]
  %s10 = inlined_call_operand.<no memory space> [shape: f32[1,1], index: 10, kind: input, shape index: {}]
  %s11 = inlined_call_operand.vmem [shape: bf16[32,28], index: 11, kind: input, shape index: {}]
  %s12 = inlined_call_operand.vmem [shape: f32[1,28], index: 12, kind: input, shape index: {}]
  %s13 = inlined_call_operand.vmem [shape: bf16[14,128], index: 13, kind: input, shape index: {}]
  %s14 = inlined_call_operand.vmem [shape: bf16[32,128], index: 14, kind: input, shape index: {}]
  %s15 = inlined_call_operand.vmem [shape: f32[1,128], index: 15, kind: input, shape index: {}]
  %s16 = inlined_call_operand.vmem [shape: bf16[64,128], index: 16, kind: input, shape index: {}]
  %s17 = inlined_call_operand.vmem [shape: f32[1,128], index: 17, kind: input, shape index: {}]
  %s18 = inlined_call_operand.vmem [shape: bf16[32,4], index: 18, kind: input, shape index: {}]
  %s19 = inlined_call_operand.vmem [shape: f32[1,4], index: 19, kind: input, shape index: {}]
  %s20 = inlined_call_operand.vmem [shape: f32[2,8,4], index: 20, kind: output, shape index: {0}]
  %s21 = inlined_call_operand.hbm [shape: f32[2,14], index: 21, kind: output, shape index: {1}]
  %s22 = inlined_call_operand.hbm [shape: f32[2,14], index: 22, kind: output, shape index: {2}]
  %23 = xla_tuple %s20, %s21, %s22
  %s24 = sld [smem:[#allocation0]]
  $region106: #{temporal_vae_forward.1} parent=0
    _
  %s26 = ssub.s32 1, %s24
  %s27 = scalar_select 0, %s26, %s24
  %v28 = vstv %s10
  %29 = vst [vmem:[#allocation2] sm:$0x1] %v28
  $region1: #{temporal_vae_forward.1} parent=0
    #allocation3 [shape = 'u8[1024]{0}', space=vmem, size = 0x400, scoped, tag = 'output window, operand 1, single buffered']
    #allocation4 [shape = 's32[1]{0}', space=sflag, size = 0x4, scoped, tag = 'scoped memory for temporal_vae_forward.1']
    #allocation5 [shape = 'u8[1024]{0}', space=vmem, size = 0x400, scoped, tag = 'output window, operand 2, single buffered']
    #allocation6 [shape = 's32[1]{0}', space=sflag, size = 0x4, scoped, tag = 'scoped memory for temporal_vae_forward.1']
    %30 = vsyncpa [#allocation4], 0
    %31 = vsyncpa [#allocation6], 0
    // Predicated region
    $region2: #{temporal_vae_forward.1} parent=1 // pred_check
      _
    $region3: #{temporal_vae_forward.1} parent=1 // pred_check_branch
      %33 = sbr.rel (0) target = $region5
    $region4: #{temporal_vae_forward.1} parent=1 // pred_region
      _
    $region5: #{temporal_vae_forward.1} parent=1 // pred_fallthru
      _
    // Predicated region
    $region6: #{temporal_vae_forward.1} parent=1 // pred_check
      _
    $region7: #{temporal_vae_forward.1} parent=1 // pred_check_branch
      %35 = sbr.rel (0) target = $region9
    $region8: #{temporal_vae_forward.1} parent=1 // pred_region
      _
    $region9: #{temporal_vae_forward.1} parent=1 // pred_fallthru
      _
    // Predicated region
    $region10: #{temporal_vae_forward.1} parent=1 // pred_check
      _
    $region11: #{temporal_vae_forward.1} parent=1 // pred_check_branch
      %37 = sbr.rel (0) target = $region13
    $region12: #{temporal_vae_forward.1} parent=1 // pred_region
      _
    $region13: #{temporal_vae_forward.1} parent=1 // pred_fallthru
      _
    // Predicated region
    $region14: #{temporal_vae_forward.1} parent=1 // pred_check
      _
    $region15: #{temporal_vae_forward.1} parent=1 // pred_check_branch
      %39 = sbr.rel (0) target = $region17
    $region16: #{temporal_vae_forward.1} parent=1 // pred_region
      _
    $region17: #{temporal_vae_forward.1} parent=1 // pred_fallthru
      _
    // Predicated region
    $region18: #{temporal_vae_forward.1} parent=1 // pred_check
      _
    $region19: #{temporal_vae_forward.1} parent=1 // pred_check_branch
      %41 = sbr.rel (0) target = $region21
    $region20: #{temporal_vae_forward.1} parent=1 // pred_region
      _
    $region21: #{temporal_vae_forward.1} parent=1 // pred_fallthru
      _
    // Predicated region
    $region22: #{temporal_vae_forward.1} parent=1 // pred_check
      _
    $region23: #{temporal_vae_forward.1} parent=1 // pred_check_branch
      %43 = sbr.rel (0) target = $region25
    $region24: #{temporal_vae_forward.1} parent=1 // pred_region
      _
    $region25: #{temporal_vae_forward.1} parent=1 // pred_fallthru
      _
    // Predicated region
    $region26: #{temporal_vae_forward.1} parent=1 // pred_check
      _
    $region27: #{temporal_vae_forward.1} parent=1 // pred_check_branch
      %45 = sbr.rel (0) target = $region29
    $region28: #{temporal_vae_forward.1} parent=1 // pred_region
      _
    $region29: #{temporal_vae_forward.1} parent=1 // pred_fallthru
      _
    // Predicated region
    $region30: #{temporal_vae_forward.1} parent=1 // pred_check
      _
    $region31: #{temporal_vae_forward.1} parent=1 // pred_check_branch
      %47 = sbr.rel (0) target = $region33
    $region32: #{temporal_vae_forward.1} parent=1 // pred_region
      _
    $region33: #{temporal_vae_forward.1} parent=1 // pred_fallthru
      _
    // Predicated region
    $region34: #{temporal_vae_forward.1} parent=1 // pred_check
      _
    $region35: #{temporal_vae_forward.1} parent=1 // pred_check_branch
      %49 = sbr.rel (0) target = $region37
    $region36: #{temporal_vae_forward.1} parent=1 // pred_region
      _
    $region37: #{temporal_vae_forward.1} parent=1 // pred_fallthru
      _
    // Predicated region
    $region38: #{temporal_vae_forward.1} parent=1 // pred_check
      _
    $region39: #{temporal_vae_forward.1} parent=1 // pred_check_branch
      %51 = sbr.rel (0) target = $region41
    $region40: #{temporal_vae_forward.1} parent=1 // pred_region
      _
    $region41: #{temporal_vae_forward.1} parent=1 // pred_fallthru
      _
    // Predicated region
    $region42: #{temporal_vae_forward.1} parent=1 // pred_check
      _
    $region43: #{temporal_vae_forward.1} parent=1 // pred_check_branch
      %53 = sbr.rel (0) target = $region45
    $region44: #{temporal_vae_forward.1} parent=1 // pred_region
      _
    $region45: #{temporal_vae_forward.1} parent=1 // pred_fallthru
      _
    // Predicated region
    $region46: #{temporal_vae_forward.1} parent=1 // pred_check
      _
    $region47: #{temporal_vae_forward.1} parent=1 // pred_check_branch
      %55 = sbr.rel (0) target = $region49
    $region48: #{temporal_vae_forward.1} parent=1 // pred_region
      _
    $region49: #{temporal_vae_forward.1} parent=1 // pred_fallthru
      _
    // Predicated region
    $region50: #{temporal_vae_forward.1} parent=1 // pred_check
      _
    $region51: #{temporal_vae_forward.1} parent=1 // pred_check_branch
      %57 = sbr.rel (0) target = $region53
    $region52: #{temporal_vae_forward.1} parent=1 // pred_region
      _
    $region53: #{temporal_vae_forward.1} parent=1 // pred_fallthru
      _
    // Predicated region
    $region54: #{temporal_vae_forward.1} parent=1 // pred_check
      _
    $region55: #{temporal_vae_forward.1} parent=1 // pred_check_branch
      %59 = sbr.rel (0) target = $region57
    $region56: #{temporal_vae_forward.1} parent=1 // pred_region
      _
    $region57: #{temporal_vae_forward.1} parent=1 // pred_fallthru
      _
    // Predicated region
    $region58: #{temporal_vae_forward.1} parent=1 // pred_check
      _
    $region59: #{temporal_vae_forward.1} parent=1 // pred_check_branch
      %61 = sbr.rel (0) target = $region61
    $region60: #{temporal_vae_forward.1} parent=1 // pred_region
      _
    $region61: #{temporal_vae_forward.1} parent=1 // pred_fallthru
      _
    // Predicated region
    $region62: #{temporal_vae_forward.1} parent=1 // pred_check
      _
    $region63: #{temporal_vae_forward.1} parent=1 // pred_check_branch
      %63 = sbr.rel (0) target = $region65
    $region64: #{temporal_vae_forward.1} parent=1 // pred_region
      _
    $region65: #{temporal_vae_forward.1} parent=1 // pred_fallthru
      _
    // Predicated region
    $region66: #{temporal_vae_forward.1} parent=1 // pred_check
      _
    $region67: #{temporal_vae_forward.1} parent=1 // pred_check_branch
      %65 = sbr.rel (0) target = $region69
    $region68: #{temporal_vae_forward.1} parent=1 // pred_region
      _
    $region69: #{temporal_vae_forward.1} parent=1 // pred_fallthru
      _
    // Predicated region
    $region70: #{temporal_vae_forward.1} parent=1 // pred_check
      _
    $region71: #{temporal_vae_forward.1} parent=1 // pred_check_branch
      %67 = sbr.rel (0) target = $region73
    $region72: #{temporal_vae_forward.1} parent=1 // pred_region
      _
    $region73: #{temporal_vae_forward.1} parent=1 // pred_fallthru
      _
    // Predicated region
    $region74: #{temporal_vae_forward.1} parent=1 // pred_check
      _
    $region75: #{temporal_vae_forward.1} parent=1 // pred_check_branch
      %69 = sbr.rel (0) target = $region77
    $region76: #{temporal_vae_forward.1} parent=1 // pred_region
      _
    $region77: #{temporal_vae_forward.1} parent=1 // pred_fallthru
      _
    // Predicated region
    $region78: #{temporal_vae_forward.1} parent=1 // pred_check
      _
    $region79: #{temporal_vae_forward.1} parent=1 // pred_check_branch
      %71 = sbr.rel (0) target = $region81
    $region80: #{temporal_vae_forward.1} parent=1 // pred_region
      _
    $region81: #{temporal_vae_forward.1} parent=1 // pred_fallthru
      _
    %v73 = vld [vmem:[%s0] sm:$0xff]
    %v74 = vld [vmem:[%s0 + $0x8] sm:$0xff]
    %v75 = vlaneseq
    %v76 = vand.u32 %v75, 127
    %vm77 = vcmp.ge.s32.totalorder %v76, 64
    %vm78 = vcmp.lt.s32.totalorder %v76, 96
    %vm79 = vmand %vm77, %vm78
    %v80 = vpack.c.bf16 %v74, %v73
    %v81 = vld [vmem:[%s2] sm:$0x3]
    %v82 = vld [vmem:[%s4] sm:$0x1]
    %v84 = vlaneseq
    %v85 = vshrl.u32 %v84, 7
    %v86 = vsub.s32 0, %v85
    %v87 = vrot.slane %v82, %v86
    %vm89 = vcmask 31744
    %v91 = vsel %vm89, %v80, 0
    %vm93 = vcmask 1041408
    %v95 = vsel %vm93, %v81, 0
    %97 = vmatprep.subr.bf16.mxu0 0
    %98 = vmatpush1.bf16.msra.mxu0 0
    %99 = vmatprep.subr.bf16.mxu0 0
    %100 = vmatpush1.bf16.msra.mxu0 0
    %101 = vmatprep.subr.bf16.mxu0 0
    %102 = vmatpush1.bf16.msra.mxu0 0
    %103 = vmatprep.subr.bf16.mxu0 0
    %104 = vmatpush1.bf16.msra.mxu0 0
    %105 = vmatprep.subr.bf16.mxu0 0
    %106 = vmatpush1.bf16.msra.mxu0 0
    %107 = vmatprep.subr.bf16.mxu0 0
    %108 = vmatpush1.bf16.msra.mxu0 0
    %109 = vmatprep.subr.bf16.mxu0 0
    %110 = vmatpush1.bf16.msra.mxu0 0
    %111 = vmatprep.subr.bf16.mxu0 0
    %112 = vmatpush1.bf16.msra.mxu0 %v95
    %113 = vmatprep.subr.bf16.mxu0 0
    %114 = vmatpush2.bf16.msra.mxu0 0
    %115 = vmatprep.subr.bf16.mxu0 0
    %116 = vmatpush2.bf16.msra.mxu0 0
    %117 = vmatprep.subr.bf16.mxu0 0
    %118 = vmatpush2.bf16.msra.mxu0 0
    %119 = vmatprep.subr.bf16.mxu0 0
    %120 = vmatpush2.bf16.msra.mxu0 0
    %121 = vmatprep.subr.bf16.mxu0 0
    %122 = vmatpush2.bf16.msra.mxu0 0
    %123 = vmatprep.subr.bf16.mxu0 0
    %124 = vmatpush2.bf16.msra.mxu0 0
    %125 = vmatprep.subr.bf16.mxu0 0
    %126 = vmatpush2.bf16.msra.mxu0 0
    %127 = vmatprep.subr.bf16.mxu0 0
    %128 = vmatpush2.bf16.msra.mxu0 0
    %129 = vmatprep.mubr.bf16.mxu0 0
    %130 = vmatmul.mubr.bf16.gmra.mxu0 %v91
    %v131 = vpop.f32.mrf.mxu0
    %v132 = vadd.f32 %v87, %v131
    %v133 = vpop.f32.mrf.mxu0
    %v134 = vpop.f32.mrf.mxu0
    %v135 = vadd.f32 %v87, %v134
    %v136 = vpop.f32.mrf.mxu0
    %137 = vdwg.mxu0
    %v138 = vld [vmem:[%s6] sm:$0x1]
    %v140 = vlaneseq
    %v141 = vshrl.u32 %v140, 7
    %v142 = vsub.s32 0, %v141
    %v143 = vrot.slane %v138, %v142
    %v145 = vld [vmem:[%s3] sm:$0xf]
    %v146 = vld [vmem:[%s3 + $0x4] sm:$0xf]
    %v147 = vld [vmem:[%s3 + $0x8] sm:$0xf]
    %v148 = vld [vmem:[%s3 + $0xc] sm:$0xf]
    %v149 = vld [vmem:[%s5] sm:$0xf]
    %v150 = vld [vmem:[%s5 + $0x4] sm:$0xf]
    %v151 = vld [vmem:[%s5 + $0x8] sm:$0xf]
    %v152 = vld [vmem:[%s5 + $0xc] sm:$0xf]
    %v153 = vld [vmem:[%s5 + $0x10] sm:$0xf]
    %v154 = vld [vmem:[%s5 + $0x14] sm:$0xf]
    %v155 = vld [vmem:[%s5 + $0x18] sm:$0xf]
    %v156 = vld [vmem:[%s5 + $0x1c] sm:$0xf]
    %v157 = vtanh.pop %v132
    %v158 = vtanh.pop %v135
    %v159 = vxor.u32 %v132, 2147483648
    %v160 = vxor.u32 %v135, 2147483648
    %v161 = vmul.f32 %v159, 1.442695
    %v162 = vpow.pop %v161
    %v163 = vmul.f32 %v160, 1.442695
    %v164 = vpow.pop %v163
    %v165 = vadd.f32 %v162, 1.0
    %v166 = vadd.f32 %v164, 1.0
    %v167 = vrcp.pop %v165
    %v168 = vmul.f32 1.0, %v167
    %v169 = vrcp.pop %v166
    %v170 = vmul.f32 1.0, %v169
    %v173 = vrot.slane %v158, 7
    %vm174 = vcmask 1041409
    %v175 = vsel %vm174, %v173, %v157
    %v179 = vrot.slane %v170, 7
    %v180 = vsel %vm174, %v179, %v168
    %v182 = vsel %vm79, %v175, %v180
    %v183 = vmul.f32 %v182, 0.0
    %185 = vrot.lane.b32.xlu0 %v182, 64
    %v186 = vpop.permute.xlu0 %185
    %v188 = vmul.f32 %v182, %v186
    %190 = vrot.lane.b32.xlu0 %v188, 32
    %v191 = vpop.permute.xlu0 %190
    %v193 = vadd.f32 %v183, %v191
    %v194 = vtanh.pop %v193
    %196 = vrot.lane.b32.xlu0 %v194, 64
    %v197 = vpop.permute.xlu0 %196
    %v199 = vmul.f32 %v182, %v197
    %201 = vrot.lane.b32.xlu0 %v199, 32
    %v202 = vpop.permute.xlu0 %201
    %vm204 = vcmask 261120
    %v205 = vsel %vm204, %v202, 0.0
    %v206 = vpack.c.bf16 %v205, %v205
    %v215 = vunpack.c.l.b16 %v149
    %v216 = vunpack.c.l.b16 %v150
    %v217 = vunpack.c.l.b16 %v151
    %v218 = vunpack.c.l.b16 %v152
    %v219 = vunpack.c.l.b16 %v153
    %v220 = vunpack.c.l.b16 %v154
    %v221 = vunpack.c.l.b16 %v155
    %v222 = vunpack.c.l.b16 %v156
    %v223 = vpack.c.b16 %v216, %v215
    %v224 = vpack.c.b16 %v218, %v217
    %v225 = vpack.c.b16 %v220, %v219
    %v226 = vpack.c.b16 %v222, %v221
    %vm231 = vcmask 523264
    %v233 = vsel %vm231, %v206, 0
    %235 = vmatprep.subr.bf16.mxu0 0
    %236 = vmatpush1.bf16.msra.mxu0 0
    %237 = vmatprep.subr.bf16.mxu0 0
    %238 = vmatpush1.bf16.msra.mxu0 0
    %239 = vmatprep.subr.bf16.mxu0 0
    %240 = vmatpush1.bf16.msra.mxu0 0
    %241 = vmatprep.subr.bf16.mxu0 0
    %242 = vmatpush1.bf16.msra.mxu0 0
    %243 = vmatprep.subr.bf16.mxu0 0
    %244 = vmatpush1.bf16.msra.mxu0 %v226
    %245 = vmatprep.subr.bf16.mxu0 0
    %246 = vmatpush1.bf16.msra.mxu0 %v225
    %247 = vmatprep.subr.bf16.mxu0 0
    %248 = vmatpush1.bf16.msra.mxu0 %v224
    %249 = vmatprep.subr.bf16.mxu0 0
    %250 = vmatpush1.bf16.msra.mxu0 %v223
    %251 = vmatprep.subr.bf16.mxu0 0
    %252 = vmatpush2.bf16.msra.mxu0 0
    %253 = vmatprep.subr.bf16.mxu0 0
    %254 = vmatpush2.bf16.msra.mxu0 0
    %255 = vmatprep.subr.bf16.mxu0 0
    %256 = vmatpush2.bf16.msra.mxu0 0
    %257 = vmatprep.subr.bf16.mxu0 0
    %258 = vmatpush2.bf16.msra.mxu0 0
    %259 = vmatprep.subr.bf16.mxu0 0
    %260 = vmatpush2.bf16.msra.mxu0 0
    %261 = vmatprep.subr.bf16.mxu0 0
    %262 = vmatpush2.bf16.msra.mxu0 0
    %263 = vmatprep.subr.bf16.mxu0 0
    %264 = vmatpush2.bf16.msra.mxu0 0
    %265 = vmatprep.subr.bf16.mxu0 0
    %266 = vmatpush2.bf16.msra.mxu0 0
    %267 = vmatprep.mubr.bf16.mxu0 0
    %268 = vmatmul.mubr.bf16.gmra.mxu0 %v233
    %v269 = vpop.f32.mrf.mxu0
    %v270 = vadd.f32 %v143, %v269
    %v271 = vpop.f32.mrf.mxu0
    %v272 = vpop.f32.mrf.mxu0
    %v273 = vpop.f32.mrf.mxu0
    %274 = vdwg.mxu0
    %v275 = vtanh.pop %v270
    %v276 = vxor.u32 %v270, 2147483648
    %v277 = vmul.f32 %v276, 1.442695
    %v278 = vpow.pop %v277
    %v279 = vadd.f32 %v278, 1.0
    %v280 = vrcp.pop %v279
    %v281 = vmul.f32 1.0, %v280
    %v282 = vsel %vm79, %v275, %v281
    %v283 = vmul.f32 %v282, 0.0
    %285 = vrot.lane.b32.xlu0 %v282, 64
    %v286 = vpop.permute.xlu0 %285
    %v288 = vmul.f32 %v282, %v286
    %290 = vrot.lane.b32.xlu0 %v288, 32
    %v291 = vpop.permute.xlu0 %290
    %v293 = vadd.f32 %v283, %v291
    %v294 = vtanh.pop %v293
    %296 = vrot.lane.b32.xlu0 %v294, 64
    %v297 = vpop.permute.xlu0 %296
    %v299 = vmul.f32 %v282, %v297
    %v300 = vpack.c.bf16 %v199, %v199
    %302 = vrot.lane.b32.xlu0 %v300, 32
    %v303 = vpop.permute.xlu0 %302
    %v308 = vunpack.c.l.b16 %v145
    %v309 = vunpack.c.l.b16 %v146
    %v310 = vunpack.c.l.b16 %v147
    %v311 = vunpack.c.l.b16 %v148
    %v312 = vpack.c.b16 %v309, %v308
    %v313 = vpack.c.b16 %v311, %v310
    %v317 = vsel %vm204, %v303, 0
    %319 = vmatprep.subr.bf16.mxu0 0
    %320 = vmatpush1.bf16.msra.mxu0 0
    %321 = vmatprep.subr.bf16.mxu0 0
    %322 = vmatpush1.bf16.msra.mxu0 0
    %323 = vmatprep.subr.bf16.mxu0 0
    %324 = vmatpush1.bf16.msra.mxu0 0
    %325 = vmatprep.subr.bf16.mxu0 0
    %326 = vmatpush1.bf16.msra.mxu0 0
    %327 = vmatprep.subr.bf16.mxu0 0
    %328 = vmatpush1.bf16.msra.mxu0 0
    %329 = vmatprep.subr.bf16.mxu0 0
    %330 = vmatpush1.bf16.msra.mxu0 0
    %331 = vmatprep.subr.bf16.mxu0 0
    %332 = vmatpush1.bf16.msra.mxu0 %v313
    %333 = vmatprep.subr.bf16.mxu0 0
    %334 = vmatpush1.bf16.msra.mxu0 %v312
    %335 = vmatprep.subr.bf16.mxu0 0
    %336 = vmatpush2.bf16.msra.mxu0 0
    %337 = vmatprep.subr.bf16.mxu0 0
    %338 = vmatpush2.bf16.msra.mxu0 0
    %339 = vmatprep.subr.bf16.mxu0 0
    %340 = vmatpush2.bf16.msra.mxu0 0
    %341 = vmatprep.subr.bf16.mxu0 0
    %342 = vmatpush2.bf16.msra.mxu0 0
    %343 = vmatprep.subr.bf16.mxu0 0
    %344 = vmatpush2.bf16.msra.mxu0 0
    %345 = vmatprep.subr.bf16.mxu0 0
    %346 = vmatpush2.bf16.msra.mxu0 0
    %347 = vmatprep.subr.bf16.mxu0 0
    %348 = vmatpush2.bf16.msra.mxu0 0
    %349 = vmatprep.subr.bf16.mxu0 0
    %350 = vmatpush2.bf16.msra.mxu0 0
    %351 = vmatprep.mubr.bf16.mxu0 0
    %352 = vmatmul.mubr.bf16.gmra.mxu0 %v317
    %v353 = vpop.f32.mrf.mxu0
    %v354 = vadd.f32 0.0, %v353
    %v355 = vpop.f32.mrf.mxu0
    %v356 = vpop.f32.mrf.mxu0
    %v357 = vpop.f32.mrf.mxu0
    %358 = vdwg.mxu0
    %v360 = vrot.slane %v354, 7
    %v363 = vadd.f32 %v132, %v360
    %v364 = vadd.f32 %v135, %v354
    %v365 = vtanh.pop %v363
    %v366 = vtanh.pop %v364
    %v367 = vxor.u32 %v363, 2147483648
    %v368 = vxor.u32 %v364, 2147483648
    %v369 = vmul.f32 %v367, 1.442695
    %v370 = vpow.pop %v369
    %v371 = vmul.f32 %v368, 1.442695
    %v372 = vpow.pop %v371
    %v373 = vadd.f32 %v370, 1.0
    %v374 = vadd.f32 %v372, 1.0
    %v375 = vrcp.pop %v373
    %v376 = vmul.f32 1.0, %v375
    %v377 = vrcp.pop %v374
    %v378 = vmul.f32 1.0, %v377
    %v381 = vrot.slane %v365, 1
    %v382 = vsel %vm174, %v366, %v381
    %v386 = vrot.slane %v376, 1
    %v387 = vsel %vm174, %v378, %v386
    %v389 = vsel %vm79, %v382, %v387
    %v390 = vmul.f32 %v389, %v193
    %392 = vrot.lane.b32.xlu0 %v389, 64
    %v393 = vpop.permute.xlu0 %392
    %v395 = vmul.f32 %v389, %v393
    %397 = vrot.lane.b32.xlu0 %v395, 32
    %v398 = vpop.permute.xlu0 %397
    %v400 = vadd.f32 %v390, %v398
    %v401 = vtanh.pop %v400
    %403 = vrot.lane.b32.xlu0 %v401, 64
    %v404 = vpop.permute.xlu0 %403
    %v406 = vmul.f32 %v389, %v404
    %408 = vrot.lane.b32.xlu0 %v406, 32
    %v409 = vpop.permute.xlu0 %408
    %412 = vrot.lane.b32.xlu0 %v299, 64
    %v413 = vpop.permute.xlu0 %412
    %v415 = vsel %vm204, %v409, %v413
    %v416 = vpack.c.bf16 %v415, %v415
    %v418 = vsel %vm231, %v416, 0
    %420 = vmatprep.subr.bf16.mxu0 0
    %421 = vmatpush1.bf16.msra.mxu0 0
    %422 = vmatprep.subr.bf16.mxu0 0
    %423 = vmatpush1.bf16.msra.mxu0 0
    %424 = vmatprep.subr.bf16.mxu0 0
    %425 = vmatpush1.bf16.msra.mxu0 0
    %426 = vmatprep.subr.bf16.mxu0 0
    %427 = vmatpush1.bf16.msra.mxu0 0
    %428 = vmatprep.subr.bf16.mxu0 0
    %429 = vmatpush1.bf16.msra.mxu0 %v226
    %430 = vmatprep.subr.bf16.mxu0 0
    %431 = vmatpush1.bf16.msra.mxu0 %v225
    %432 = vmatprep.subr.bf16.mxu0 0
    %433 = vmatpush1.bf16.msra.mxu0 %v224
    %434 = vmatprep.subr.bf16.mxu0 0
    %435 = vmatpush1.bf16.msra.mxu0 %v223
    %436 = vmatprep.subr.bf16.mxu0 0
    %437 = vmatpush2.bf16.msra.mxu0 0
    %438 = vmatprep.subr.bf16.mxu0 0
    %439 = vmatpush2.bf16.msra.mxu0 0
    %440 = vmatprep.subr.bf16.mxu0 0
    %441 = vmatpush2.bf16.msra.mxu0 0
    %442 = vmatprep.subr.bf16.mxu0 0
    %443 = vmatpush2.bf16.msra.mxu0 0
    %444 = vmatprep.subr.bf16.mxu0 0
    %445 = vmatpush2.bf16.msra.mxu0 0
    %446 = vmatprep.subr.bf16.mxu0 0
    %447 = vmatpush2.bf16.msra.mxu0 0
    %448 = vmatprep.subr.bf16.mxu0 0
    %449 = vmatpush2.bf16.msra.mxu0 0
    %450 = vmatprep.subr.bf16.mxu0 0
    %451 = vmatpush2.bf16.msra.mxu0 0
    %452 = vmatprep.mubr.bf16.mxu0 0
    %453 = vmatmul.mubr.bf16.gmra.mxu0 %v418
    %v454 = vpop.f32.mrf.mxu0
    %v455 = vadd.f32 %v143, %v454
    %v456 = vpop.f32.mrf.mxu0
    %v457 = vpop.f32.mrf.mxu0
    %v458 = vpop.f32.mrf.mxu0
    %459 = vdwg.mxu0
    %v460 = vtanh.pop %v455
    %v461 = vxor.u32 %v455, 2147483648
    %v462 = vmul.f32 %v461, 1.442695
    %v463 = vpow.pop %v462
    %v464 = vadd.f32 %v463, 1.0
    %v465 = vrcp.pop %v464
    %v466 = vmul.f32 1.0, %v465
    %v467 = vsel %vm79, %v460, %v466
    %v468 = vmul.f32 %v467, %v293
    %470 = vrot.lane.b32.xlu0 %v467, 64
    %v471 = vpop.permute.xlu0 %470
    %v473 = vmul.f32 %v467, %v471
    %475 = vrot.lane.b32.xlu0 %v473, 32
    %v476 = vpop.permute.xlu0 %475
    %v478 = vadd.f32 %v468, %v476
    %v479 = vtanh.pop %v478
    %481 = vrot.lane.b32.xlu0 %v479, 64
    %v482 = vpop.permute.xlu0 %481
    %v484 = vmul.f32 %v467, %v482
    %v485 = vpack.c.bf16 %v406, %v406
    %487 = vrot.lane.b32.xlu0 %v485, 32
    %v488 = vpop.permute.xlu0 %487
    %v490 = vsel %vm204, %v488, 0
    %492 = vmatprep.subr.bf16.mxu0 0
    %493 = vmatpush1.bf16.msra.mxu0 0
    %494 = vmatprep.subr.bf16.mxu0 0
    %495 = vmatpush1.bf16.msra.mxu0 0
    %496 = vmatprep.subr.bf16.mxu0 0
    %497 = vmatpush1.bf16.msra.mxu0 0
    %498 = vmatprep.subr.bf16.mxu0 0
    %499 = vmatpush1.bf16.msra.mxu0 0
    %500 = vmatprep.subr.bf16.mxu0 0
    %501 = vmatpush1.bf16.msra.mxu0 0
    %502 = vmatprep.subr.bf16.mxu0 0
    %503 = vmatpush1.bf16.msra.mxu0 0
    %504 = vmatprep.subr.bf16.mxu0 0
    %505 = vmatpush1.bf16.msra.mxu0 %v313
    %506 = vmatprep.subr.bf16.mxu0 0
    %507 = vmatpush1.bf16.msra.mxu0 %v312
    %508 = vmatprep.subr.bf16.mxu0 0
    %509 = vmatpush2.bf16.msra.mxu0 0
    %510 = vmatprep.subr.bf16.mxu0 0
    %511 = vmatpush2.bf16.msra.mxu0 0
    %512 = vmatprep.subr.bf16.mxu0 0
    %513 = vmatpush2.bf16.msra.mxu0 0
    %514 = vmatprep.subr.bf16.mxu0 0
    %515 = vmatpush2.bf16.msra.mxu0 0
    %516 = vmatprep.subr.bf16.mxu0 0
    %517 = vmatpush2.bf16.msra.mxu0 0
    %518 = vmatprep.subr.bf16.mxu0 0
    %519 = vmatpush2.bf16.msra.mxu0 0
    %520 = vmatprep.subr.bf16.mxu0 0
    %521 = vmatpush2.bf16.msra.mxu0 0
    %522 = vmatprep.subr.bf16.mxu0 0
    %523 = vmatpush2.bf16.msra.mxu0 0
    %524 = vmatprep.mubr.bf16.mxu0 0
    %525 = vmatmul.mubr.bf16.gmra.mxu0 %v490
    %v526 = vpop.f32.mrf.mxu0
    %v527 = vadd.f32 0.0, %v526
    %v528 = vpop.f32.mrf.mxu0
    %v529 = vpop.f32.mrf.mxu0
    %v530 = vpop.f32.mrf.mxu0
    %531 = vdwg.mxu0
    %v533 = vrot.slane %v527, 6
    %v534 = vrot.slane %v527, 7
    %v537 = vadd.f32 %v132, %v533
    %v538 = vadd.f32 %v135, %v534
    %v539 = vtanh.pop %v537
    %v540 = vtanh.pop %v538
    %v541 = vxor.u32 %v537, 2147483648
    %v542 = vxor.u32 %v538, 2147483648
    %v543 = vmul.f32 %v541, 1.442695
    %v544 = vpow.pop %v543
    %v545 = vmul.f32 %v542, 1.442695
    %v546 = vpow.pop %v545
    %v547 = vadd.f32 %v544, 1.0
    %v548 = vadd.f32 %v546, 1.0
    %v549 = vrcp.pop %v547
    %v550 = vmul.f32 1.0, %v549
    %v551 = vrcp.pop %v548
    %v552 = vmul.f32 1.0, %v551
    %v555 = vrot.slane %v539, 2
    %v556 = vrot.slane %v540, 1
    %v557 = vsel %vm174, %v556, %v555
    %v561 = vrot.slane %v550, 2
    %v562 = vrot.slane %v552, 1
    %v563 = vsel %vm174, %v562, %v561
    %v565 = vsel %vm79, %v557, %v563
    %v566 = vmul.f32 %v565, %v400
    %568 = vrot.lane.b32.xlu0 %v565, 64
    %v569 = vpop.permute.xlu0 %568
    %v571 = vmul.f32 %v565, %v569
    %573 = vrot.lane.b32.xlu0 %v571, 32
    %v574 = vpop.permute.xlu0 %573
    %v576 = vadd.f32 %v566, %v574
    %v577 = vtanh.pop %v576
    %579 = vrot.lane.b32.xlu0 %v577, 64
    %v580 = vpop.permute.xlu0 %579
    %v582 = vmul.f32 %v565, %v580
    %584 = vrot.lane.b32.xlu0 %v582, 32
    %v585 = vpop.permute.xlu0 %584
    %588 = vrot.lane.b32.xlu0 %v484, 64
    %v589 = vpop.permute.xlu0 %588
    %v591 = vsel %vm204, %v585, %v589
    %v592 = vpack.c.bf16 %v591, %v591
    %v594 = vsel %vm231, %v592, 0
    %596 = vmatprep.subr.bf16.mxu0 0
    %597 = vmatpush1.bf16.msra.mxu0 0
    %598 = vmatprep.subr.bf16.mxu0 0
    %599 = vmatpush1.bf16.msra.mxu0 0
    %600 = vmatprep.subr.bf16.mxu0 0
    %601 = vmatpush1.bf16.msra.mxu0 0
    %602 = vmatprep.subr.bf16.mxu0 0
    %603 = vmatpush1.bf16.msra.mxu0 0
    %604 = vmatprep.subr.bf16.mxu0 0
    %605 = vmatpush1.bf16.msra.mxu0 %v226
    %606 = vmatprep.subr.bf16.mxu0 0
    %607 = vmatpush1.bf16.msra.mxu0 %v225
    %608 = vmatprep.subr.bf16.mxu0 0
    %609 = vmatpush1.bf16.msra.mxu0 %v224
    %610 = vmatprep.subr.bf16.mxu0 0
    %611 = vmatpush1.bf16.msra.mxu0 %v223
    %612 = vmatprep.subr.bf16.mxu0 0
    %613 = vmatpush2.bf16.msra.mxu0 0
    %614 = vmatprep.subr.bf16.mxu0 0
    %615 = vmatpush2.bf16.msra.mxu0 0
    %616 = vmatprep.subr.bf16.mxu0 0
    %617 = vmatpush2.bf16.msra.mxu0 0
    %618 = vmatprep.subr.bf16.mxu0 0
    %619 = vmatpush2.bf16.msra.mxu0 0
    %620 = vmatprep.subr.bf16.mxu0 0
    %621 = vmatpush2.bf16.msra.mxu0 0
    %622 = vmatprep.subr.bf16.mxu0 0
    %623 = vmatpush2.bf16.msra.mxu0 0
    %624 = vmatprep.subr.bf16.mxu0 0
    %625 = vmatpush2.bf16.msra.mxu0 0
    %626 = vmatprep.subr.bf16.mxu0 0
    %627 = vmatpush2.bf16.msra.mxu0 0
    %628 = vmatprep.mubr.bf16.mxu0 0
    %629 = vmatmul.mubr.bf16.gmra.mxu0 %v594
    %v630 = vpop.f32.mrf.mxu0
    %v631 = vadd.f32 %v143, %v630
    %v632 = vpop.f32.mrf.mxu0
    %v633 = vpop.f32.mrf.mxu0
    %v634 = vpop.f32.mrf.mxu0
    %635 = vdwg.mxu0
    %v636 = vtanh.pop %v631
    %v637 = vxor.u32 %v631, 2147483648
    %v638 = vmul.f32 %v637, 1.442695
    %v639 = vpow.pop %v638
    %v640 = vadd.f32 %v639, 1.0
    %v641 = vrcp.pop %v640
    %v642 = vmul.f32 1.0, %v641
    %v643 = vsel %vm79, %v636, %v642
    %v644 = vmul.f32 %v643, %v478
    %646 = vrot.lane.b32.xlu0 %v643, 64
    %v647 = vpop.permute.xlu0 %646
    %v649 = vmul.f32 %v643, %v647
    %651 = vrot.lane.b32.xlu0 %v649, 32
    %v652 = vpop.permute.xlu0 %651
    %v654 = vadd.f32 %v644, %v652
    %v655 = vtanh.pop %v654
    %657 = vrot.lane.b32.xlu0 %v655, 64
    %v658 = vpop.permute.xlu0 %657
    %v660 = vmul.f32 %v643, %v658
    %v661 = vpack.c.bf16 %v582, %v582
    %663 = vrot.lane.b32.xlu0 %v661, 32
    %v664 = vpop.permute.xlu0 %663
    %v666 = vsel %vm204, %v664, 0
    %668 = vmatprep.subr.bf16.mxu0 0
    %669 = vmatpush1.bf16.msra.mxu0 0
    %670 = vmatprep.subr.bf16.mxu0 0
    %671 = vmatpush1.bf16.msra.mxu0 0
    %672 = vmatprep.subr.bf16.mxu0 0
    %673 = vmatpush1.bf16.msra.mxu0 0
    %674 = vmatprep.subr.bf16.mxu0 0
    %675 = vmatpush1.bf16.msra.mxu0 0
    %676 = vmatprep.subr.bf16.mxu0 0
    %677 = vmatpush1.bf16.msra.mxu0 0
    %678 = vmatprep.subr.bf16.mxu0 0
    %679 = vmatpush1.bf16.msra.mxu0 0
    %680 = vmatprep.subr.bf16.mxu0 0
    %681 = vmatpush1.bf16.msra.mxu0 %v313
    %682 = vmatprep.subr.bf16.mxu0 0
    %683 = vmatpush1.bf16.msra.mxu0 %v312
    %684 = vmatprep.subr.bf16.mxu0 0
    %685 = vmatpush2.bf16.msra.mxu0 0
    %686 = vmatprep.subr.bf16.mxu0 0
    %687 = vmatpush2.bf16.msra.mxu0 0
    %688 = vmatprep.subr.bf16.mxu0 0
    %689 = vmatpush2.bf16.msra.mxu0 0
    %690 = vmatprep.subr.bf16.mxu0 0
    %691 = vmatpush2.bf16.msra.mxu0 0
    %692 = vmatprep.subr.bf16.mxu0 0
    %693 = vmatpush2.bf16.msra.mxu0 0
    %694 = vmatprep.subr.bf16.mxu0 0
    %695 = vmatpush2.bf16.msra.mxu0 0
    %696 = vmatprep.subr.bf16.mxu0 0
    %697 = vmatpush2.bf16.msra.mxu0 0
    %698 = vmatprep.subr.bf16.mxu0 0
    %699 = vmatpush2.bf16.msra.mxu0 0
    %700 = vmatprep.mubr.bf16.mxu0 0
    %701 = vmatmul.mubr.bf16.gmra.mxu0 %v666
    %v702 = vpop.f32.mrf.mxu0
    %v703 = vadd.f32 0.0, %v702
    %v704 = vpop.f32.mrf.mxu0
    %v705 = vpop.f32.mrf.mxu0
    %v706 = vpop.f32.mrf.mxu0
    %707 = vdwg.mxu0
    %v709 = vrot.slane %v703, 5
    %v710 = vrot.slane %v703, 6
    %v713 = vadd.f32 %v132, %v709
    %v714 = vadd.f32 %v135, %v710
    %v715 = vtanh.pop %v713
    %v716 = vtanh.pop %v714
    %v717 = vxor.u32 %v713, 2147483648
    %v718 = vxor.u32 %v714, 2147483648
    %v719 = vmul.f32 %v717, 1.442695
    %v720 = vpow.pop %v719
    %v721 = vmul.f32 %v718, 1.442695
    %v722 = vpow.pop %v721
    %v723 = vadd.f32 %v720, 1.0
    %v724 = vadd.f32 %v722, 1.0
    %v725 = vrcp.pop %v723
    %v726 = vmul.f32 1.0, %v725
    %v727 = vrcp.pop %v724
    %v728 = vmul.f32 1.0, %v727
    %v731 = vrot.slane %v715, 3
    %v732 = vrot.slane %v716, 2
    %v733 = vsel %vm174, %v732, %v731
    %v737 = vrot.slane %v726, 3
    %v738 = vrot.slane %v728, 2
    %v739 = vsel %vm174, %v738, %v737
    %v741 = vsel %vm79, %v733, %v739
    %v742 = vmul.f32 %v741, %v576
    %744 = vrot.lane.b32.xlu0 %v741, 64
    %v745 = vpop.permute.xlu0 %744
    %v747 = vmul.f32 %v741, %v745
    %749 = vrot.lane.b32.xlu0 %v747, 32
    %v750 = vpop.permute.xlu0 %749
    %v752 = vadd.f32 %v742, %v750
    %v753 = vtanh.pop %v752
    %755 = vrot.lane.b32.xlu0 %v753, 64
    %v756 = vpop.permute.xlu0 %755
    %v758 = vmul.f32 %v741, %v756
    %760 = vrot.lane.b32.xlu0 %v758, 32
    %v761 = vpop.permute.xlu0 %760
    %764 = vrot.lane.b32.xlu0 %v660, 64
    %v765 = vpop.permute.xlu0 %764
    %v767 = vsel %vm204, %v761, %v765
    %v768 = vpack.c.bf16 %v767, %v767
    %v770 = vsel %vm231, %v768, 0
    %772 = vmatprep.subr.bf16.mxu0 0
    %773 = vmatpush1.bf16.msra.mxu0 0
    %774 = vmatprep.subr.bf16.mxu0 0
    %775 = vmatpush1.bf16.msra.mxu0 0
    %776 = vmatprep.subr.bf16.mxu0 0
    %777 = vmatpush1.bf16.msra.mxu0 0
    %778 = vmatprep.subr.bf16.mxu0 0
    %779 = vmatpush1.bf16.msra.mxu0 0
    %780 = vmatprep.subr.bf16.mxu0 0
    %781 = vmatpush1.bf16.msra.mxu0 %v226
    %782 = vmatprep.subr.bf16.mxu0 0
    %783 = vmatpush1.bf16.msra.mxu0 %v225
    %784 = vmatprep.subr.bf16.mxu0 0
    %785 = vmatpush1.bf16.msra.mxu0 %v224
    %786 = vmatprep.subr.bf16.mxu0 0
    %787 = vmatpush1.bf16.msra.mxu0 %v223
    %788 = vmatprep.subr.bf16.mxu0 0
    %789 = vmatpush2.bf16.msra.mxu0 0
    %790 = vmatprep.subr.bf16.mxu0 0
    %791 = vmatpush2.bf16.msra.mxu0 0
    %792 = vmatprep.subr.bf16.mxu0 0
    %793 = vmatpush2.bf16.msra.mxu0 0
    %794 = vmatprep.subr.bf16.mxu0 0
    %795 = vmatpush2.bf16.msra.mxu0 0
    %796 = vmatprep.subr.bf16.mxu0 0
    %797 = vmatpush2.bf16.msra.mxu0 0
    %798 = vmatprep.subr.bf16.mxu0 0
    %799 = vmatpush2.bf16.msra.mxu0 0
    %800 = vmatprep.subr.bf16.mxu0 0
    %801 = vmatpush2.bf16.msra.mxu0 0
    %802 = vmatprep.subr.bf16.mxu0 0
    %803 = vmatpush2.bf16.msra.mxu0 0
    %804 = vmatprep.mubr.bf16.mxu0 0
    %805 = vmatmul.mubr.bf16.gmra.mxu0 %v770
    %v806 = vpop.f32.mrf.mxu0
    %v807 = vadd.f32 %v143, %v806
    %v808 = vpop.f32.mrf.mxu0
    %v809 = vpop.f32.mrf.mxu0
    %v810 = vpop.f32.mrf.mxu0
    %811 = vdwg.mxu0
    %v812 = vtanh.pop %v807
    %v813 = vxor.u32 %v807, 2147483648
    %v814 = vmul.f32 %v813, 1.442695
    %v815 = vpow.pop %v814
    %v816 = vadd.f32 %v815, 1.0
    %v817 = vrcp.pop %v816
    %v818 = vmul.f32 1.0, %v817
    %v819 = vsel %vm79, %v812, %v818
    %v820 = vmul.f32 %v819, %v654
    %822 = vrot.lane.b32.xlu0 %v819, 64
    %v823 = vpop.permute.xlu0 %822
    %v825 = vmul.f32 %v819, %v823
    %827 = vrot.lane.b32.xlu0 %v825, 32
    %v828 = vpop.permute.xlu0 %827
    %v830 = vadd.f32 %v820, %v828
    %v831 = vtanh.pop %v830
    %833 = vrot.lane.b32.xlu0 %v831, 64
    %v834 = vpop.permute.xlu0 %833
    %v836 = vmul.f32 %v819, %v834
    %v837 = vpack.c.bf16 %v758, %v758
    %839 = vrot.lane.b32.xlu0 %v837, 32
    %v840 = vpop.permute.xlu0 %839
    %v842 = vsel %vm204, %v840, 0
    %844 = vmatprep.subr.bf16.mxu0 0
    %845 = vmatpush1.bf16.msra.mxu0 0
    %846 = vmatprep.subr.bf16.mxu0 0
    %847 = vmatpush1.bf16.msra.mxu0 0
    %848 = vmatprep.subr.bf16.mxu0 0
    %849 = vmatpush1.bf16.msra.mxu0 0
    %850 = vmatprep.subr.bf16.mxu0 0
    %851 = vmatpush1.bf16.msra.mxu0 0
    %852 = vmatprep.subr.bf16.mxu0 0
    %853 = vmatpush1.bf16.msra.mxu0 0
    %854 = vmatprep.subr.bf16.mxu0 0
    %855 = vmatpush1.bf16.msra.mxu0 0
    %856 = vmatprep.subr.bf16.mxu0 0
    %857 = vmatpush1.bf16.msra.mxu0 %v313
    %858 = vmatprep.subr.bf16.mxu0 0
    %859 = vmatpush1.bf16.msra.mxu0 %v312
    %860 = vmatprep.subr.bf16.mxu0 0
    %861 = vmatpush2.bf16.msra.mxu0 0
    %862 = vmatprep.subr.bf16.mxu0 0
    %863 = vmatpush2.bf16.msra.mxu0 0
    %864 = vmatprep.subr.bf16.mxu0 0
    %865 = vmatpush2.bf16.msra.mxu0 0
    %866 = vmatprep.subr.bf16.mxu0 0
    %867 = vmatpush2.bf16.msra.mxu0 0
    %868 = vmatprep.subr.bf16.mxu0 0
    %869 = vmatpush2.bf16.msra.mxu0 0
    %870 = vmatprep.subr.bf16.mxu0 0
    %871 = vmatpush2.bf16.msra.mxu0 0
    %872 = vmatprep.subr.bf16.mxu0 0
    %873 = vmatpush2.bf16.msra.mxu0 0
    %874 = vmatprep.subr.bf16.mxu0 0
    %875 = vmatpush2.bf16.msra.mxu0 0
    %876 = vmatprep.mubr.bf16.mxu0 0
    %877 = vmatmul.mubr.bf16.gmra.mxu0 %v842
    %v878 = vpop.f32.mrf.mxu0
    %v879 = vadd.f32 0.0, %v878
    %v880 = vpop.f32.mrf.mxu0
    %v881 = vpop.f32.mrf.mxu0
    %v882 = vpop.f32.mrf.mxu0
    %883 = vdwg.mxu0
    %v885 = vrot.slane %v879, 4
    %v886 = vrot.slane %v879, 5
    %v889 = vadd.f32 %v132, %v885
    %v890 = vadd.f32 %v135, %v886
    %v891 = vtanh.pop %v889
    %v892 = vtanh.pop %v890
    %v893 = vxor.u32 %v889, 2147483648
    %v894 = vxor.u32 %v890, 2147483648
    %v895 = vmul.f32 %v893, 1.442695
    %v896 = vpow.pop %v895
    %v897 = vmul.f32 %v894, 1.442695
    %v898 = vpow.pop %v897
    %v899 = vadd.f32 %v896, 1.0
    %v900 = vadd.f32 %v898, 1.0
    %v901 = vrcp.pop %v899
    %v902 = vmul.f32 1.0, %v901
    %v903 = vrcp.pop %v900
    %v904 = vmul.f32 1.0, %v903
    %v907 = vrot.slane %v891, 4
    %v908 = vrot.slane %v892, 3
    %v909 = vsel %vm174, %v908, %v907
    %v913 = vrot.slane %v902, 4
    %v914 = vrot.slane %v904, 3
    %v915 = vsel %vm174, %v914, %v913
    %v917 = vsel %vm79, %v909, %v915
    %v918 = vmul.f32 %v917, %v752
    %920 = vrot.lane.b32.xlu0 %v917, 64
    %v921 = vpop.permute.xlu0 %920
    %v923 = vmul.f32 %v917, %v921
    %925 = vrot.lane.b32.xlu0 %v923, 32
    %v926 = vpop.permute.xlu0 %925
    %v928 = vadd.f32 %v918, %v926
    %v929 = vtanh.pop %v928
    %931 = vrot.lane.b32.xlu0 %v929, 64
    %v932 = vpop.permute.xlu0 %931
    %v934 = vmul.f32 %v917, %v932
    %936 = vrot.lane.b32.xlu0 %v934, 32
    %v937 = vpop.permute.xlu0 %936
    %940 = vrot.lane.b32.xlu0 %v836, 64
    %v941 = vpop.permute.xlu0 %940
    %v943 = vsel %vm204, %v937, %v941
    %v944 = vpack.c.bf16 %v943, %v943
    %v946 = vsel %vm231, %v944, 0
    %948 = vmatprep.subr.bf16.mxu0 0
    %949 = vmatpush1.bf16.msra.mxu0 0
    %950 = vmatprep.subr.bf16.mxu0 0
    %951 = vmatpush1.bf16.msra.mxu0 0
    %952 = vmatprep.subr.bf16.mxu0 0
    %953 = vmatpush1.bf16.msra.mxu0 0
    %954 = vmatprep.subr.bf16.mxu0 0
    %955 = vmatpush1.bf16.msra.mxu0 0
    %956 = vmatprep.subr.bf16.mxu0 0
    %957 = vmatpush1.bf16.msra.mxu0 %v226
    %958 = vmatprep.subr.bf16.mxu0 0
    %959 = vmatpush1.bf16.msra.mxu0 %v225
    %960 = vmatprep.subr.bf16.mxu0 0
    %961 = vmatpush1.bf16.msra.mxu0 %v224
    %962 = vmatprep.subr.bf16.mxu0 0
    %963 = vmatpush1.bf16.msra.mxu0 %v223
    %964 = vmatprep.subr.bf16.mxu0 0
    %965 = vmatpush2.bf16.msra.mxu0 0
    %966 = vmatprep.subr.bf16.mxu0 0
    %967 = vmatpush2.bf16.msra.mxu0 0
    %968 = vmatprep.subr.bf16.mxu0 0
    %969 = vmatpush2.bf16.msra.mxu0 0
    %970 = vmatprep.subr.bf16.mxu0 0
    %971 = vmatpush2.bf16.msra.mxu0 0
    %972 = vmatprep.subr.bf16.mxu0 0
    %973 = vmatpush2.bf16.msra.mxu0 0
    %974 = vmatprep.subr.bf16.mxu0 0
    %975 = vmatpush2.bf16.msra.mxu0 0
    %976 = vmatprep.subr.bf16.mxu0 0
    %977 = vmatpush2.bf16.msra.mxu0 0
    %978 = vmatprep.subr.bf16.mxu0 0
    %979 = vmatpush2.bf16.msra.mxu0 0
    %980 = vmatprep.mubr.bf16.mxu0 0
    %981 = vmatmul.mubr.bf16.gmra.mxu0 %v946
    %v982 = vpop.f32.mrf.mxu0
    %v983 = vadd.f32 %v143, %v982
    %v984 = vpop.f32.mrf.mxu0
    %v985 = vpop.f32.mrf.mxu0
    %v986 = vpop.f32.mrf.mxu0
    %987 = vdwg.mxu0
    %v988 = vtanh.pop %v983
    %v989 = vxor.u32 %v983, 2147483648
    %v990 = vmul.f32 %v989, 1.442695
    %v991 = vpow.pop %v990
    %v992 = vadd.f32 %v991, 1.0
    %v993 = vrcp.pop %v992
    %v994 = vmul.f32 1.0, %v993
    %v995 = vsel %vm79, %v988, %v994
    %v996 = vmul.f32 %v995, %v830
    %998 = vrot.lane.b32.xlu0 %v995, 64
    %v999 = vpop.permute.xlu0 %998
    %v1001 = vmul.f32 %v995, %v999
    %1003 = vrot.lane.b32.xlu0 %v1001, 32
    %v1004 = vpop.permute.xlu0 %1003
    %v1006 = vadd.f32 %v996, %v1004
    %v1007 = vtanh.pop %v1006
    %1009 = vrot.lane.b32.xlu0 %v1007, 64
    %v1010 = vpop.permute.xlu0 %1009
    %v1012 = vmul.f32 %v995, %v1010
    %v1013 = vpack.c.bf16 %v934, %v934
    %1015 = vrot.lane.b32.xlu0 %v1013, 32
    %v1016 = vpop.permute.xlu0 %1015
    %v1018 = vsel %vm204, %v1016, 0
    %1020 = vmatprep.subr.bf16.mxu0 0
    %1021 = vmatpush1.bf16.msra.mxu0 0
    %1022 = vmatprep.subr.bf16.mxu0 0
    %1023 = vmatpush1.bf16.msra.mxu0 0
    %1024 = vmatprep.subr.bf16.mxu0 0
    %1025 = vmatpush1.bf16.msra.mxu0 0
    %1026 = vmatprep.subr.bf16.mxu0 0
    %1027 = vmatpush1.bf16.msra.mxu0 0
    %1028 = vmatprep.subr.bf16.mxu0 0
    %1029 = vmatpush1.bf16.msra.mxu0 0
    %1030 = vmatprep.subr.bf16.mxu0 0
    %1031 = vmatpush1.bf16.msra.mxu0 0
    %1032 = vmatprep.subr.bf16.mxu0 0
    %1033 = vmatpush1.bf16.msra.mxu0 %v313
    %1034 = vmatprep.subr.bf16.mxu0 0
    %1035 = vmatpush1.bf16.msra.mxu0 %v312
    %1036 = vmatprep.subr.bf16.mxu0 0
    %1037 = vmatpush2.bf16.msra.mxu0 0
    %1038 = vmatprep.subr.bf16.mxu0 0
    %1039 = vmatpush2.bf16.msra.mxu0 0
    %1040 = vmatprep.subr.bf16.mxu0 0
    %1041 = vmatpush2.bf16.msra.mxu0 0
    %1042 = vmatprep.subr.bf16.mxu0 0
    %1043 = vmatpush2.bf16.msra.mxu0 0
    %1044 = vmatprep.subr.bf16.mxu0 0
    %1045 = vmatpush2.bf16.msra.mxu0 0
    %1046 = vmatprep.subr.bf16.mxu0 0
    %1047 = vmatpush2.bf16.msra.mxu0 0
    %1048 = vmatprep.subr.bf16.mxu0 0
    %1049 = vmatpush2.bf16.msra.mxu0 0
    %1050 = vmatprep.subr.bf16.mxu0 0
    %1051 = vmatpush2.bf16.msra.mxu0 0
    %1052 = vmatprep.mubr.bf16.mxu0 0
    %1053 = vmatmul.mubr.bf16.gmra.mxu0 %v1018
    %v1054 = vpop.f32.mrf.mxu0
    %v1055 = vadd.f32 0.0, %v1054
    %v1056 = vpop.f32.mrf.mxu0
    %v1057 = vpop.f32.mrf.mxu0
    %v1058 = vpop.f32.mrf.mxu0
    %1059 = vdwg.mxu0
    %v1061 = vrot.slane %v1055, 3
    %v1062 = vrot.slane %v1055, 4
    %v1065 = vadd.f32 %v132, %v1061
    %v1066 = vadd.f32 %v135, %v1062
    %v1067 = vtanh.pop %v1065
    %v1068 = vtanh.pop %v1066
    %v1069 = vxor.u32 %v1065, 2147483648
    %v1070 = vxor.u32 %v1066, 2147483648
    %v1071 = vmul.f32 %v1069, 1.442695
    %v1072 = vpow.pop %v1071
    %v1073 = vmul.f32 %v1070, 1.442695
    %v1074 = vpow.pop %v1073
    %v1075 = vadd.f32 %v1072, 1.0
    %v1076 = vadd.f32 %v1074, 1.0
    %v1077 = vrcp.pop %v1075
    %v1078 = vmul.f32 1.0, %v1077
    %v1079 = vrcp.pop %v1076
    %v1080 = vmul.f32 1.0, %v1079
    %v1083 = vrot.slane %v1067, 5
    %v1084 = vrot.slane %v1068, 4
    %v1085 = vsel %vm174, %v1084, %v1083
    %v1089 = vrot.slane %v1078, 5
    %v1090 = vrot.slane %v1080, 4
    %v1091 = vsel %vm174, %v1090, %v1089
    %v1093 = vsel %vm79, %v1085, %v1091
    %v1094 = vmul.f32 %v1093, %v928
    %1096 = vrot.lane.b32.xlu0 %v1093, 64
    %v1097 = vpop.permute.xlu0 %1096
    %v1099 = vmul.f32 %v1093, %v1097
    %1101 = vrot.lane.b32.xlu0 %v1099, 32
    %v1102 = vpop.permute.xlu0 %1101
    %v1104 = vadd.f32 %v1094, %v1102
    %v1105 = vtanh.pop %v1104
    %1107 = vrot.lane.b32.xlu0 %v1105, 64
    %v1108 = vpop.permute.xlu0 %1107
    %v1110 = vmul.f32 %v1093, %v1108
    %1112 = vrot.lane.b32.xlu0 %v1110, 32
    %v1113 = vpop.permute.xlu0 %1112
    %1116 = vrot.lane.b32.xlu0 %v1012, 64
    %v1117 = vpop.permute.xlu0 %1116
    %v1119 = vsel %vm204, %v1113, %v1117
    %v1120 = vpack.c.bf16 %v1119, %v1119
    %v1122 = vsel %vm231, %v1120, 0
    %1124 = vmatprep.subr.bf16.mxu0 0
    %1125 = vmatpush1.bf16.msra.mxu0 0
    %1126 = vmatprep.subr.bf16.mxu0 0
    %1127 = vmatpush1.bf16.msra.mxu0 0
    %1128 = vmatprep.subr.bf16.mxu0 0
    %1129 = vmatpush1.bf16.msra.mxu0 0
    %1130 = vmatprep.subr.bf16.mxu0 0
    %1131 = vmatpush1.bf16.msra.mxu0 0
    %1132 = vmatprep.subr.bf16.mxu0 0
    %1133 = vmatpush1.bf16.msra.mxu0 %v226
    %1134 = vmatprep.subr.bf16.mxu0 0
    %1135 = vmatpush1.bf16.msra.mxu0 %v225
    %1136 = vmatprep.subr.bf16.mxu0 0
    %1137 = vmatpush1.bf16.msra.mxu0 %v224
    %1138 = vmatprep.subr.bf16.mxu0 0
    %1139 = vmatpush1.bf16.msra.mxu0 %v223
    %1140 = vmatprep.subr.bf16.mxu0 0
    %1141 = vmatpush2.bf16.msra.mxu0 0
    %1142 = vmatprep.subr.bf16.mxu0 0
    %1143 = vmatpush2.bf16.msra.mxu0 0
    %1144 = vmatprep.subr.bf16.mxu0 0
    %1145 = vmatpush2.bf16.msra.mxu0 0
    %1146 = vmatprep.subr.bf16.mxu0 0
    %1147 = vmatpush2.bf16.msra.mxu0 0
    %1148 = vmatprep.subr.bf16.mxu0 0
    %1149 = vmatpush2.bf16.msra.mxu0 0
    %1150 = vmatprep.subr.bf16.mxu0 0
    %1151 = vmatpush2.bf16.msra.mxu0 0
    %1152 = vmatprep.subr.bf16.mxu0 0
    %1153 = vmatpush2.bf16.msra.mxu0 0
    %1154 = vmatprep.subr.bf16.mxu0 0
    %1155 = vmatpush2.bf16.msra.mxu0 0
    %1156 = vmatprep.mubr.bf16.mxu0 0
    %1157 = vmatmul.mubr.bf16.gmra.mxu0 %v1122
    %v1158 = vpop.f32.mrf.mxu0
    %v1159 = vadd.f32 %v143, %v1158
    %v1160 = vpop.f32.mrf.mxu0
    %v1161 = vpop.f32.mrf.mxu0
    %v1162 = vpop.f32.mrf.mxu0
    %1163 = vdwg.mxu0
    %v1164 = vtanh.pop %v1159
    %v1165 = vxor.u32 %v1159, 2147483648
    %v1166 = vmul.f32 %v1165, 1.442695
    %v1167 = vpow.pop %v1166
    %v1168 = vadd.f32 %v1167, 1.0
    %v1169 = vrcp.pop %v1168
    %v1170 = vmul.f32 1.0, %v1169
    %v1171 = vsel %vm79, %v1164, %v1170
    %v1172 = vmul.f32 %v1171, %v1006
    %1174 = vrot.lane.b32.xlu0 %v1171, 64
    %v1175 = vpop.permute.xlu0 %1174
    %v1177 = vmul.f32 %v1171, %v1175
    %1179 = vrot.lane.b32.xlu0 %v1177, 32
    %v1180 = vpop.permute.xlu0 %1179
    %v1182 = vadd.f32 %v1172, %v1180
    %v1183 = vtanh.pop %v1182
    %1185 = vrot.lane.b32.xlu0 %v1183, 64
    %v1186 = vpop.permute.xlu0 %1185
    %v1188 = vmul.f32 %v1171, %v1186
    %v1189 = vpack.c.bf16 %v1110, %v1110
    %1191 = vrot.lane.b32.xlu0 %v1189, 32
    %v1192 = vpop.permute.xlu0 %1191
    %v1194 = vsel %vm204, %v1192, 0
    %1196 = vmatprep.subr.bf16.mxu0 0
    %1197 = vmatpush1.bf16.msra.mxu0 0
    %1198 = vmatprep.subr.bf16.mxu0 0
    %1199 = vmatpush1.bf16.msra.mxu0 0
    %1200 = vmatprep.subr.bf16.mxu0 0
    %1201 = vmatpush1.bf16.msra.mxu0 0
    %1202 = vmatprep.subr.bf16.mxu0 0
    %1203 = vmatpush1.bf16.msra.mxu0 0
    %1204 = vmatprep.subr.bf16.mxu0 0
    %1205 = vmatpush1.bf16.msra.mxu0 0
    %1206 = vmatprep.subr.bf16.mxu0 0
    %1207 = vmatpush1.bf16.msra.mxu0 0
    %1208 = vmatprep.subr.bf16.mxu0 0
    %1209 = vmatpush1.bf16.msra.mxu0 %v313
    %1210 = vmatprep.subr.bf16.mxu0 0
    %1211 = vmatpush1.bf16.msra.mxu0 %v312
    %1212 = vmatprep.subr.bf16.mxu0 0
    %1213 = vmatpush2.bf16.msra.mxu0 0
    %1214 = vmatprep.subr.bf16.mxu0 0
    %1215 = vmatpush2.bf16.msra.mxu0 0
    %1216 = vmatprep.subr.bf16.mxu0 0
    %1217 = vmatpush2.bf16.msra.mxu0 0
    %1218 = vmatprep.subr.bf16.mxu0 0
    %1219 = vmatpush2.bf16.msra.mxu0 0
    %1220 = vmatprep.subr.bf16.mxu0 0
    %1221 = vmatpush2.bf16.msra.mxu0 0
    %1222 = vmatprep.subr.bf16.mxu0 0
    %1223 = vmatpush2.bf16.msra.mxu0 0
    %1224 = vmatprep.subr.bf16.mxu0 0
    %1225 = vmatpush2.bf16.msra.mxu0 0
    %1226 = vmatprep.subr.bf16.mxu0 0
    %1227 = vmatpush2.bf16.msra.mxu0 0
    %1228 = vmatprep.mubr.bf16.mxu0 0
    %1229 = vmatmul.mubr.bf16.gmra.mxu0 %v1194
    %v1230 = vpop.f32.mrf.mxu0
    %v1231 = vadd.f32 0.0, %v1230
    %v1232 = vpop.f32.mrf.mxu0
    %v1233 = vpop.f32.mrf.mxu0
    %v1234 = vpop.f32.mrf.mxu0
    %1235 = vdwg.mxu0
    %v1237 = vrot.slane %v1231, 2
    %v1238 = vrot.slane %v1231, 3
    %v1241 = vadd.f32 %v132, %v1237
    %v1242 = vadd.f32 %v135, %v1238
    %v1243 = vtanh.pop %v1241
    %v1244 = vtanh.pop %v1242
    %v1245 = vxor.u32 %v1241, 2147483648
    %v1246 = vxor.u32 %v1242, 2147483648
    %v1247 = vmul.f32 %v1245, 1.442695
    %v1248 = vpow.pop %v1247
    %v1249 = vmul.f32 %v1246, 1.442695
    %v1250 = vpow.pop %v1249
    %v1251 = vadd.f32 %v1248, 1.0
    %v1252 = vadd.f32 %v1250, 1.0
    %v1253 = vrcp.pop %v1251
    %v1254 = vmul.f32 1.0, %v1253
    %v1255 = vrcp.pop %v1252
    %v1256 = vmul.f32 1.0, %v1255
    %v1259 = vrot.slane %v1243, 6
    %v1260 = vrot.slane %v1244, 5
    %v1261 = vsel %vm174, %v1260, %v1259
    %v1265 = vrot.slane %v1254, 6
    %v1266 = vrot.slane %v1256, 5
    %v1267 = vsel %vm174, %v1266, %v1265
    %v1269 = vsel %vm79, %v1261, %v1267
    %v1270 = vmul.f32 %v1269, %v1104
    %1272 = vrot.lane.b32.xlu0 %v1269, 64
    %v1273 = vpop.permute.xlu0 %1272
    %v1275 = vmul.f32 %v1269, %v1273
    %1277 = vrot.lane.b32.xlu0 %v1275, 32
    %v1278 = vpop.permute.xlu0 %1277
    %v1280 = vadd.f32 %v1270, %v1278
    %v1281 = vtanh.pop %v1280
    %1283 = vrot.lane.b32.xlu0 %v1281, 64
    %v1284 = vpop.permute.xlu0 %1283
    %v1286 = vmul.f32 %v1269, %v1284
    %1288 = vrot.lane.b32.xlu0 %v1286, 32
    %v1289 = vpop.permute.xlu0 %1288
    %1292 = vrot.lane.b32.xlu0 %v1188, 64
    %v1293 = vpop.permute.xlu0 %1292
    %v1295 = vsel %vm204, %v1289, %v1293
    %v1296 = vpack.c.bf16 %v1295, %v1295
    %v1298 = vsel %vm231, %v1296, 0
    %1300 = vmatprep.subr.bf16.mxu0 0
    %1301 = vmatpush1.bf16.msra.mxu0 0
    %1302 = vmatprep.subr.bf16.mxu0 0
    %1303 = vmatpush1.bf16.msra.mxu0 0
    %1304 = vmatprep.subr.bf16.mxu0 0
    %1305 = vmatpush1.bf16.msra.mxu0 0
    %1306 = vmatprep.subr.bf16.mxu0 0
    %1307 = vmatpush1.bf16.msra.mxu0 0
    %1308 = vmatprep.subr.bf16.mxu0 0
    %1309 = vmatpush1.bf16.msra.mxu0 %v226
    %1310 = vmatprep.subr.bf16.mxu0 0
    %1311 = vmatpush1.bf16.msra.mxu0 %v225
    %1312 = vmatprep.subr.bf16.mxu0 0
    %1313 = vmatpush1.bf16.msra.mxu0 %v224
    %1314 = vmatprep.subr.bf16.mxu0 0
    %1315 = vmatpush1.bf16.msra.mxu0 %v223
    %1316 = vmatprep.subr.bf16.mxu0 0
    %1317 = vmatpush2.bf16.msra.mxu0 0
    %1318 = vmatprep.subr.bf16.mxu0 0
    %1319 = vmatpush2.bf16.msra.mxu0 0
    %1320 = vmatprep.subr.bf16.mxu0 0
    %1321 = vmatpush2.bf16.msra.mxu0 0
    %1322 = vmatprep.subr.bf16.mxu0 0
    %1323 = vmatpush2.bf16.msra.mxu0 0
    %1324 = vmatprep.subr.bf16.mxu0 0
    %1325 = vmatpush2.bf16.msra.mxu0 0
    %1326 = vmatprep.subr.bf16.mxu0 0
    %1327 = vmatpush2.bf16.msra.mxu0 0
    %1328 = vmatprep.subr.bf16.mxu0 0
    %1329 = vmatpush2.bf16.msra.mxu0 0
    %1330 = vmatprep.subr.bf16.mxu0 0
    %1331 = vmatpush2.bf16.msra.mxu0 0
    %1332 = vmatprep.mubr.bf16.mxu0 0
    %1333 = vmatmul.mubr.bf16.gmra.mxu0 %v1298
    %v1334 = vpop.f32.mrf.mxu0
    %v1335 = vadd.f32 %v143, %v1334
    %v1336 = vpop.f32.mrf.mxu0
    %v1337 = vpop.f32.mrf.mxu0
    %v1338 = vpop.f32.mrf.mxu0
    %1339 = vdwg.mxu0
    %v1340 = vtanh.pop %v1335
    %v1341 = vxor.u32 %v1335, 2147483648
    %v1342 = vmul.f32 %v1341, 1.442695
    %v1343 = vpow.pop %v1342
    %v1344 = vadd.f32 %v1343, 1.0
    %v1345 = vrcp.pop %v1344
    %v1346 = vmul.f32 1.0, %v1345
    %v1347 = vsel %vm79, %v1340, %v1346
    %v1348 = vmul.f32 %v1347, %v1182
    %1350 = vrot.lane.b32.xlu0 %v1347, 64
    %v1351 = vpop.permute.xlu0 %1350
    %v1353 = vmul.f32 %v1347, %v1351
    %1355 = vrot.lane.b32.xlu0 %v1353, 32
    %v1356 = vpop.permute.xlu0 %1355
    %v1358 = vadd.f32 %v1348, %v1356
    %v1359 = vtanh.pop %v1358
    %1361 = vrot.lane.b32.xlu0 %v1359, 64
    %v1362 = vpop.permute.xlu0 %1361
    %v1364 = vmul.f32 %v1347, %v1362
    %v1365 = vpack.c.bf16 %v1286, %v1286
    %1367 = vrot.lane.b32.xlu0 %v1365, 32
    %v1368 = vpop.permute.xlu0 %1367
    %v1370 = vsel %vm204, %v1368, 0
    %1372 = vmatprep.subr.bf16.mxu0 0
    %1373 = vmatpush1.bf16.msra.mxu0 0
    %1374 = vmatprep.subr.bf16.mxu0 0
    %1375 = vmatpush1.bf16.msra.mxu0 0
    %1376 = vmatprep.subr.bf16.mxu0 0
    %1377 = vmatpush1.bf16.msra.mxu0 0
    %1378 = vmatprep.subr.bf16.mxu0 0
    %1379 = vmatpush1.bf16.msra.mxu0 0
    %1380 = vmatprep.subr.bf16.mxu0 0
    %1381 = vmatpush1.bf16.msra.mxu0 0
    %1382 = vmatprep.subr.bf16.mxu0 0
    %1383 = vmatpush1.bf16.msra.mxu0 0
    %1384 = vmatprep.subr.bf16.mxu0 0
    %1385 = vmatpush1.bf16.msra.mxu0 %v313
    %1386 = vmatprep.subr.bf16.mxu0 0
    %1387 = vmatpush1.bf16.msra.mxu0 %v312
    %1388 = vmatprep.subr.bf16.mxu0 0
    %1389 = vmatpush2.bf16.msra.mxu0 0
    %1390 = vmatprep.subr.bf16.mxu0 0
    %1391 = vmatpush2.bf16.msra.mxu0 0
    %1392 = vmatprep.subr.bf16.mxu0 0
    %1393 = vmatpush2.bf16.msra.mxu0 0
    %1394 = vmatprep.subr.bf16.mxu0 0
    %1395 = vmatpush2.bf16.msra.mxu0 0
    %1396 = vmatprep.subr.bf16.mxu0 0
    %1397 = vmatpush2.bf16.msra.mxu0 0
    %1398 = vmatprep.subr.bf16.mxu0 0
    %1399 = vmatpush2.bf16.msra.mxu0 0
    %1400 = vmatprep.subr.bf16.mxu0 0
    %1401 = vmatpush2.bf16.msra.mxu0 0
    %1402 = vmatprep.subr.bf16.mxu0 0
    %1403 = vmatpush2.bf16.msra.mxu0 0
    %1404 = vmatprep.mubr.bf16.mxu0 0
    %1405 = vmatmul.mubr.bf16.gmra.mxu0 %v1370
    %v1406 = vpop.f32.mrf.mxu0
    %v1407 = vadd.f32 0.0, %v1406
    %v1408 = vpop.f32.mrf.mxu0
    %v1409 = vpop.f32.mrf.mxu0
    %v1410 = vpop.f32.mrf.mxu0
    %1411 = vdwg.mxu0
    %v1413 = vrot.slane %v1407, 1
    %v1414 = vrot.slane %v1407, 2
    %v1417 = vadd.f32 %v132, %v1413
    %v1418 = vadd.f32 %v135, %v1414
    %v1419 = vtanh.pop %v1417
    %v1420 = vtanh.pop %v1418
    %v1421 = vxor.u32 %v1417, 2147483648
    %v1422 = vxor.u32 %v1418, 2147483648
    %v1423 = vmul.f32 %v1421, 1.442695
    %v1424 = vpow.pop %v1423
    %v1425 = vmul.f32 %v1422, 1.442695
    %v1426 = vpow.pop %v1425
    %v1427 = vadd.f32 %v1424, 1.0
    %v1428 = vadd.f32 %v1426, 1.0
    %v1429 = vrcp.pop %v1427
    %v1430 = vmul.f32 1.0, %v1429
    %v1431 = vrcp.pop %v1428
    %v1432 = vmul.f32 1.0, %v1431
    %v1435 = vrot.slane %v1419, 7
    %v1436 = vrot.slane %v1420, 6
    %v1437 = vsel %vm174, %v1436, %v1435
    %v1441 = vrot.slane %v1430, 7
    %v1442 = vrot.slane %v1432, 6
    %v1443 = vsel %vm174, %v1442, %v1441
    %v1445 = vsel %vm79, %v1437, %v1443
    %v1446 = vmul.f32 %v1445, %v1280
    %1448 = vrot.lane.b32.xlu0 %v1445, 64
    %v1449 = vpop.permute.xlu0 %1448
    %v1451 = vmul.f32 %v1445, %v1449
    %1453 = vrot.lane.b32.xlu0 %v1451, 32
    %v1454 = vpop.permute.xlu0 %1453
    %v1456 = vadd.f32 %v1446, %v1454
    %v1457 = vtanh.pop %v1456
    %1459 = vrot.lane.b32.xlu0 %v1457, 64
    %v1460 = vpop.permute.xlu0 %1459
    %v1462 = vmul.f32 %v1445, %v1460
    %1464 = vrot.lane.b32.xlu0 %v1462, 32
    %v1465 = vpop.permute.xlu0 %1464
    %1468 = vrot.lane.b32.xlu0 %v1364, 64
    %v1469 = vpop.permute.xlu0 %1468
    %v1471 = vsel %vm204, %v1465, %v1469
    %v1472 = vpack.c.bf16 %v1471, %v1471
    %v1474 = vsel %vm231, %v1472, 0
    %1476 = vmatprep.subr.bf16.mxu0 0
    %1477 = vmatpush1.bf16.msra.mxu0 0
    %1478 = vmatprep.subr.bf16.mxu0 0
    %1479 = vmatpush1.bf16.msra.mxu0 0
    %1480 = vmatprep.subr.bf16.mxu0 0
    %1481 = vmatpush1.bf16.msra.mxu0 0
    %1482 = vmatprep.subr.bf16.mxu0 0
    %1483 = vmatpush1.bf16.msra.mxu0 0
    %1484 = vmatprep.subr.bf16.mxu0 0
    %1485 = vmatpush1.bf16.msra.mxu0 %v226
    %1486 = vmatprep.subr.bf16.mxu0 0
    %1487 = vmatpush1.bf16.msra.mxu0 %v225
    %1488 = vmatprep.subr.bf16.mxu0 0
    %1489 = vmatpush1.bf16.msra.mxu0 %v224
    %1490 = vmatprep.subr.bf16.mxu0 0
    %1491 = vmatpush1.bf16.msra.mxu0 %v223
    %1492 = vmatprep.subr.bf16.mxu0 0
    %1493 = vmatpush2.bf16.msra.mxu0 0
    %1494 = vmatprep.subr.bf16.mxu0 0
    %1495 = vmatpush2.bf16.msra.mxu0 0
    %1496 = vmatprep.subr.bf16.mxu0 0
    %1497 = vmatpush2.bf16.msra.mxu0 0
    %1498 = vmatprep.subr.bf16.mxu0 0
    %1499 = vmatpush2.bf16.msra.mxu0 0
    %1500 = vmatprep.subr.bf16.mxu0 0
    %1501 = vmatpush2.bf16.msra.mxu0 0
    %1502 = vmatprep.subr.bf16.mxu0 0
    %1503 = vmatpush2.bf16.msra.mxu0 0
    %1504 = vmatprep.subr.bf16.mxu0 0
    %1505 = vmatpush2.bf16.msra.mxu0 0
    %1506 = vmatprep.subr.bf16.mxu0 0
    %1507 = vmatpush2.bf16.msra.mxu0 0
    %1508 = vmatprep.mubr.bf16.mxu0 0
    %1509 = vmatmul.mubr.bf16.gmra.mxu0 %v1474
    %v1510 = vpop.f32.mrf.mxu0
    %v1511 = vadd.f32 %v143, %v1510
    %v1512 = vpop.f32.mrf.mxu0
    %v1513 = vpop.f32.mrf.mxu0
    %v1514 = vpop.f32.mrf.mxu0
    %1515 = vdwg.mxu0
    %v1516 = vtanh.pop %v1511
    %v1517 = vxor.u32 %v1511, 2147483648
    %v1518 = vmul.f32 %v1517, 1.442695
    %v1519 = vpow.pop %v1518
    %v1520 = vadd.f32 %v1519, 1.0
    %v1521 = vrcp.pop %v1520
    %v1522 = vmul.f32 1.0, %v1521
    %v1523 = vsel %vm79, %v1516, %v1522
    %v1524 = vmul.f32 %v1523, %v1358
    %1526 = vrot.lane.b32.xlu0 %v1523, 64
    %v1527 = vpop.permute.xlu0 %1526
    %v1529 = vmul.f32 %v1523, %v1527
    %1531 = vrot.lane.b32.xlu0 %v1529, 32
    %v1532 = vpop.permute.xlu0 %1531
    %v1534 = vadd.f32 %v1524, %v1532
    %v1535 = vtanh.pop %v1534
    %1537 = vrot.lane.b32.xlu0 %v1535, 64
    %v1538 = vpop.permute.xlu0 %1537
    %v1540 = vmul.f32 %v1523, %v1538
    %v1542 = vunpack.c.l.s4 1966171168
    %v1543 = vunpack.c.0.s8 %v1542
    %v1544 = vlaneseq
    %v1545 = vshrl.u32 %v1544, 7
    %v1546 = vsub.s32 %v1543, %v1545
    %v1547 = vrot.slane %v299, %v1546
    %v1548 = vcombine.high %v1547, %v1547
    %v1550 = vunpack.c.l.s4 1966171168
    %v1551 = vunpack.c.0.s8 %v1550
    %v1552 = vlaneseq
    %v1553 = vshrl.u32 %v1552, 7
    %v1554 = vsub.s32 %v1551, %v1553
    %v1555 = vrot.slane %v1547, %v1554
    %v1557 = vunpack.c.l.s4 1966171168
    %v1558 = vunpack.c.0.s8 %v1557
    %v1559 = vlaneseq
    %v1560 = vshrl.u32 %v1559, 7
    %v1561 = vsub.s32 %v1558, %v1560
    %v1562 = vrot.slane %v1548, %v1561
    %v1566 = vunpack.c.l.s4 1966171168
    %v1567 = vunpack.c.0.s8 %v1566
    %v1568 = vlaneseq
    %v1569 = vshrl.u32 %v1568, 7
    %v1570 = vsub.s32 %v1567, %v1569
    %v1571 = vrot.slane %v484, %v1570
    %v1572 = vcombine.high %v1571, %v1571
    %v1574 = vunpack.c.l.s4 1966171168
    %v1575 = vunpack.c.0.s8 %v1574
    %v1576 = vlaneseq
    %v1577 = vshrl.u32 %v1576, 7
    %v1578 = vsub.s32 %v1575, %v1577
    %v1579 = vrot.slane %v1571, %v1578
    %v1581 = vunpack.c.l.s4 1966171168
    %v1582 = vunpack.c.0.s8 %v1581
    %v1583 = vlaneseq
    %v1584 = vshrl.u32 %v1583, 7
    %v1585 = vsub.s32 %v1582, %v1584
    %v1586 = vrot.slane %v1572, %v1585
    %v1588 = vunpack.c.l.s4 1966171168
    %v1589 = vunpack.c.0.s8 %v1588
    %v1590 = vlaneseq
    %v1591 = vshrl.u32 %v1590, 7
    %v1592 = vsub.s32 %v1589, %v1591
    %v1593 = vrot.slane %v660, %v1592
    %v1594 = vcombine.high %v1593, %v1593
    %v1596 = vunpack.c.l.s4 1966171168
    %v1597 = vunpack.c.0.s8 %v1596
    %v1598 = vlaneseq
    %v1599 = vshrl.u32 %v1598, 7
    %v1600 = vsub.s32 %v1597, %v1599
    %v1601 = vrot.slane %v1593, %v1600
    %v1603 = vunpack.c.l.s4 1966171168
    %v1604 = vunpack.c.0.s8 %v1603
    %v1605 = vlaneseq
    %v1606 = vshrl.u32 %v1605, 7
    %v1607 = vsub.s32 %v1604, %v1606
    %v1608 = vrot.slane %v1594, %v1607
    %v1610 = vunpack.c.l.s4 1966171168
    %v1611 = vunpack.c.0.s8 %v1610
    %v1612 = vlaneseq
    %v1613 = vshrl.u32 %v1612, 7
    %v1614 = vsub.s32 %v1611, %v1613
    %v1615 = vrot.slane %v836, %v1614
    %v1616 = vcombine.high %v1615, %v1615
    %v1618 = vunpack.c.l.s4 1966171168
    %v1619 = vunpack.c.0.s8 %v1618
    %v1620 = vlaneseq
    %v1621 = vshrl.u32 %v1620, 7
    %v1622 = vsub.s32 %v1619, %v1621
    %v1623 = vrot.slane %v1615, %v1622
    %v1625 = vunpack.c.l.s4 1966171168
    %v1626 = vunpack.c.0.s8 %v1625
    %v1627 = vlaneseq
    %v1628 = vshrl.u32 %v1627, 7
    %v1629 = vsub.s32 %v1626, %v1628
    %v1630 = vrot.slane %v1616, %v1629
    %v1632 = vunpack.c.l.s4 1966171168
    %v1633 = vunpack.c.0.s8 %v1632
    %v1634 = vlaneseq
    %v1635 = vshrl.u32 %v1634, 7
    %v1636 = vsub.s32 %v1633, %v1635
    %v1637 = vrot.slane %v1012, %v1636
    %v1638 = vcombine.high %v1637, %v1637
    %v1640 = vunpack.c.l.s4 1966171168
    %v1641 = vunpack.c.0.s8 %v1640
    %v1642 = vlaneseq
    %v1643 = vshrl.u32 %v1642, 7
    %v1644 = vsub.s32 %v1641, %v1643
    %v1645 = vrot.slane %v1637, %v1644
    %v1647 = vunpack.c.l.s4 1966171168
    %v1648 = vunpack.c.0.s8 %v1647
    %v1649 = vlaneseq
    %v1650 = vshrl.u32 %v1649, 7
    %v1651 = vsub.s32 %v1648, %v1650
    %v1652 = vrot.slane %v1638, %v1651
    %v1654 = vunpack.c.l.s4 1966171168
    %v1655 = vunpack.c.0.s8 %v1654
    %v1656 = vlaneseq
    %v1657 = vshrl.u32 %v1656, 7
    %v1658 = vsub.s32 %v1655, %v1657
    %v1659 = vrot.slane %v1188, %v1658
    %v1660 = vcombine.high %v1659, %v1659
    %v1662 = vunpack.c.l.s4 1966171168
    %v1663 = vunpack.c.0.s8 %v1662
    %v1664 = vlaneseq
    %v1665 = vshrl.u32 %v1664, 7
    %v1666 = vsub.s32 %v1663, %v1665
    %v1667 = vrot.slane %v1659, %v1666
    %v1669 = vunpack.c.l.s4 1966171168
    %v1670 = vunpack.c.0.s8 %v1669
    %v1671 = vlaneseq
    %v1672 = vshrl.u32 %v1671, 7
    %v1673 = vsub.s32 %v1670, %v1672
    %v1674 = vrot.slane %v1660, %v1673
    %v1676 = vunpack.c.l.s4 1966171168
    %v1677 = vunpack.c.0.s8 %v1676
    %v1678 = vlaneseq
    %v1679 = vshrl.u32 %v1678, 7
    %v1680 = vsub.s32 %v1677, %v1679
    %v1681 = vrot.slane %v1364, %v1680
    %v1682 = vcombine.high %v1681, %v1681
    %v1684 = vunpack.c.l.s4 1966171168
    %v1685 = vunpack.c.0.s8 %v1684
    %v1686 = vlaneseq
    %v1687 = vshrl.u32 %v1686, 7
    %v1688 = vsub.s32 %v1685, %v1687
    %v1689 = vrot.slane %v1681, %v1688
    %v1691 = vunpack.c.l.s4 1966171168
    %v1692 = vunpack.c.0.s8 %v1691
    %v1693 = vlaneseq
    %v1694 = vshrl.u32 %v1693, 7
    %v1695 = vsub.s32 %v1692, %v1694
    %v1696 = vrot.slane %v1682, %v1695
    %v1699 = vunpack.c.l.s4 1966171168
    %v1700 = vunpack.c.0.s8 %v1699
    %v1701 = vlaneseq
    %v1702 = vshrl.u32 %v1701, 7
    %v1703 = vsub.s32 %v1700, %v1702
    %v1704 = vrot.slane %v1540, %v1703
    %v1705 = vcombine.high %v1704, %v1704
    %v1707 = vunpack.c.l.s4 1966171168
    %v1708 = vunpack.c.0.s8 %v1707
    %v1709 = vlaneseq
    %v1710 = vshrl.u32 %v1709, 7
    %v1711 = vsub.s32 %v1708, %v1710
    %v1712 = vrot.slane %v1704, %v1711
    %v1714 = vunpack.c.l.s4 1966171168
    %v1715 = vunpack.c.0.s8 %v1714
    %v1716 = vlaneseq
    %v1717 = vshrl.u32 %v1716, 7
    %v1718 = vsub.s32 %v1715, %v1717
    %v1719 = vrot.slane %v1705, %v1718
    %v1720 = vlaneseq
    %v1721 = vshrl.u32 %v1720, 7
    %v1722 = vsub.s32 0, %v1721
    %v1723 = vrot.slane %v1579, %v1722
    %v1724 = vlaneseq
    %v1725 = vshrl.u32 %v1724, 7
    %v1726 = vsub.s32 0, %v1725
    %v1727 = vrot.slane %v1586, %v1726
    %v1730 = vlaneseq
    %v1731 = vshrl.u32 %v1730, 7
    %v1732 = vsub.s32 0, %v1731
    %v1733 = vrot.slane %v1601, %v1732
    %v1734 = vlaneseq
    %v1735 = vshrl.u32 %v1734, 7
    %v1736 = vsub.s32 0, %v1735
    %v1737 = vrot.slane %v1608, %v1736
    %v1740 = vlaneseq
    %v1741 = vshrl.u32 %v1740, 7
    %v1742 = vsub.s32 0, %v1741
    %v1743 = vrot.slane %v1623, %v1742
    %v1744 = vlaneseq
    %v1745 = vshrl.u32 %v1744, 7
    %v1746 = vsub.s32 0, %v1745
    %v1747 = vrot.slane %v1630, %v1746
    %v1750 = vlaneseq
    %v1751 = vshrl.u32 %v1750, 7
    %v1752 = vsub.s32 0, %v1751
    %v1753 = vrot.slane %v1645, %v1752
    %v1754 = vlaneseq
    %v1755 = vshrl.u32 %v1754, 7
    %v1756 = vsub.s32 0, %v1755
    %v1757 = vrot.slane %v1652, %v1756
    %v1760 = vlaneseq
    %v1761 = vshrl.u32 %v1760, 7
    %v1762 = vsub.s32 0, %v1761
    %v1763 = vrot.slane %v1667, %v1762
    %v1764 = vlaneseq
    %v1765 = vshrl.u32 %v1764, 7
    %v1766 = vsub.s32 0, %v1765
    %v1767 = vrot.slane %v1674, %v1766
    %v1770 = vlaneseq
    %v1771 = vshrl.u32 %v1770, 7
    %v1772 = vsub.s32 0, %v1771
    %v1773 = vrot.slane %v1689, %v1772
    %v1774 = vlaneseq
    %v1775 = vshrl.u32 %v1774, 7
    %v1776 = vsub.s32 0, %v1775
    %v1777 = vrot.slane %v1696, %v1776
    %v1780 = vlaneseq
    %v1781 = vshrl.u32 %v1780, 7
    %v1782 = vsub.s32 0, %v1781
    %v1783 = vrot.slane %v1712, %v1782
    %v1784 = vlaneseq
    %v1785 = vshrl.u32 %v1784, 7
    %v1786 = vsub.s32 0, %v1785
    %v1787 = vrot.slane %v1719, %v1786
    %vm1790 = vcmask 1040384
    %v1791 = vsel %vm1790, %v1555, %v1723
    %v1792 = vsel %vm1790, %v1562, %v1727
    %v1793 = vsel %vm93, %v1791, %v1733
    %v1794 = vsel %vm93, %v1792, %v1737
    %vm1795 = vcmask 1042432
    %v1796 = vsel %vm1795, %v1793, %v1743
    %v1797 = vsel %vm1795, %v1794, %v1747
    %vm1798 = vcmask 1043456
    %v1799 = vsel %vm1798, %v1796, %v1753
    %v1800 = vsel %vm1798, %v1797, %v1757
    %vm1801 = vcmask 1044480
    %v1802 = vsel %vm1801, %v1799, %v1763
    %v1803 = vsel %vm1801, %v1800, %v1767
    %vm1804 = vcmask 1045504
    %v1805 = vsel %vm1804, %v1802, %v1773
    %v1806 = vsel %vm1804, %v1803, %v1777
    %vm1807 = vcmask 1046528
    %v1808 = vsel %vm1807, %v1805, %v1783
    %v1809 = vsel %vm1807, %v1806, %v1787
    %v1810 = vpack.c.bf16 %v1809, %v1808
    %v1811 = vld [vmem:[%s7] sm:$0xf]
    %v1812 = vld [vmem:[%s7 + $0x4] sm:$0xf]
    %v1813 = vld [vmem:[%s7 + $0x8] sm:$0xf]
    %v1814 = vld [vmem:[%s7 + $0xc] sm:$0xf]
    %v1815 = vld [vmem:[%s8] sm:$0x1]
    %v1817 = vlaneseq
    %v1818 = vshrl.u32 %v1817, 7
    %v1819 = vsub.s32 0, %v1818
    %v1820 = vrot.slane %v1815, %v1819
    %1823 = vrot.lane.b32.xlu0 %v1810, 32
    %v1824 = vpop.permute.xlu0 %1823
    %v1829 = vunpack.c.l.b16 %v1811
    %v1830 = vunpack.c.l.b16 %v1812
    %v1831 = vunpack.c.l.b16 %v1813
    %v1832 = vunpack.c.l.b16 %v1814
    %v1833 = vpack.c.b16 %v1830, %v1829
    %v1834 = vpack.c.b16 %v1832, %v1831
    %v1838 = vsel %vm204, %v1824, 0
    %1840 = vmatprep.subr.bf16.mxu0 0
    %1841 = vmatpush1.bf16.msra.mxu0 0
    %1842 = vmatprep.subr.bf16.mxu0 0
    %1843 = vmatpush1.bf16.msra.mxu0 0
    %1844 = vmatprep.subr.bf16.mxu0 0
    %1845 = vmatpush1.bf16.msra.mxu0 0
    %1846 = vmatprep.subr.bf16.mxu0 0
    %1847 = vmatpush1.bf16.msra.mxu0 0
    %1848 = vmatprep.subr.bf16.mxu0 0
    %1849 = vmatpush1.bf16.msra.mxu0 0
    %1850 = vmatprep.subr.bf16.mxu0 0
    %1851 = vmatpush1.bf16.msra.mxu0 0
    %1852 = vmatprep.subr.bf16.mxu0 0
    %1853 = vmatpush1.bf16.msra.mxu0 %v1834
    %1854 = vmatprep.subr.bf16.mxu0 0
    %1855 = vmatpush1.bf16.msra.mxu0 %v1833
    %1856 = vmatprep.subr.bf16.mxu0 0
    %1857 = vmatpush2.bf16.msra.mxu0 0
    %1858 = vmatprep.subr.bf16.mxu0 0
    %1859 = vmatpush2.bf16.msra.mxu0 0
    %1860 = vmatprep.subr.bf16.mxu0 0
    %1861 = vmatpush2.bf16.msra.mxu0 0
    %1862 = vmatprep.subr.bf16.mxu0 0
    %1863 = vmatpush2.bf16.msra.mxu0 0
    %1864 = vmatprep.subr.bf16.mxu0 0
    %1865 = vmatpush2.bf16.msra.mxu0 0
    %1866 = vmatprep.subr.bf16.mxu0 0
    %1867 = vmatpush2.bf16.msra.mxu0 0
    %1868 = vmatprep.subr.bf16.mxu0 0
    %1869 = vmatpush2.bf16.msra.mxu0 0
    %1870 = vmatprep.subr.bf16.mxu0 0
    %1871 = vmatpush2.bf16.msra.mxu0 0
    %1872 = vmatprep.mubr.bf16.mxu0 0
    %1873 = vmatmul.mubr.bf16.gmra.mxu0 %v1838
    %v1874 = vpop.f32.mrf.mxu0
    %v1875 = vadd.f32 %v1820, %v1874
    %v1876 = vpop.f32.mrf.mxu0
    %v1877 = vpop.f32.mrf.mxu0
    %v1878 = vadd.f32 %v1820, %v1877
    %v1879 = vpop.f32.mrf.mxu0
    %1880 = vdwg.mxu0
    %v1881 = vtanh.pop %v1875
    %v1882 = vtanh.pop %v1878
    %v1883 = vld [vmem:[%s9] sm:$0x1]
    %v1885 = vlaneseq
    %v1886 = vshrl.u32 %v1885, 7
    %v1887 = vsub.s32 0, %v1886
    %v1888 = vrot.slane %v1883, %v1887
    %v1890 = vmul.f32 %v1881, %v1888
    %v1891 = vmul.f32 %v1882, %v1888
    %v1892 = vsel %vm204, %v1890, 0.0
    %1893 = vadd.xlane.f32.xlu0 %v1892
    %v1894 = vpop.xlane.xlu0 %1893
    %v1895 = vsel %vm204, %v1891, 0.0
    %1896 = vadd.xlane.f32.xlu0 %v1895
    %v1897 = vpop.xlane.xlu0 %1896
    %v1898 = vld [vmem:[#allocation2] sm:$0x1]
    %v1900 = vlaneseq
    %v1901 = vshrl.u32 %v1900, 7
    %v1902 = vsub.s32 0, %v1901
    %v1903 = vrot.slane %v1898, %v1902
    %v1905 = vadd.f32 %v1894, %v1903
    %v1906 = vadd.f32 %v1897, %v1903
    %1909 = vset.pattern.permute.xlu0 0
    %1910 = vperm.xlu0 %1909, %v1905
    %v1911 = vpop.permute.xlu0 %1910
    %1912 = vset.pattern.permute.xlu0 0
    %1913 = vperm.xlu0 %1912, %v1906
    %v1914 = vpop.permute.xlu0 %1913
    %v1915 = vlaneseq
    %v1916 = vshrl.u32 %v1915, 7
    %v1917 = vsub.s32 %v76, %v1916
    %v1918 = vrot.slane %v1911, %v1917
    %v1919 = vlaneseq
    %v1920 = vshrl.u32 %v1919, 7
    %v1921 = vsub.s32 %v76, %v1920
    %v1922 = vrot.slane %v1914, %v1921
    %v1923 = vsel %vm174, %v1922, %v1918
    %vm1925 = vcmask 58368
    %v1926 = vsel %vm1925, %v1923, -inf
    %1927 = vmax.xlane.f32.xlu0 %v1926
    %v1928 = vpop.xlane.xlu0 %1927
    %v1930 = vlaneseq
    %v1931 = vshrl.u32 %v1930, 7
    %v1932 = vsub.s32 0, %v1931
    %v1933 = vrot.slane %v1928, %v1932
    %v1934 = vlaneseq
    %v1935 = vshrl.u32 %v1934, 7
    %v1936 = vsub.s32 1, %v1935
    %v1937 = vrot.slane %v1928, %v1936
    %v1940 = vsub.f32 %v1905, %v1933
    %v1941 = vsub.f32 %v1906, %v1937
    %v1942 = vmul.f32 %v1940, 1.442695
    %v1943 = vpow.pop %v1942
    %v1944 = vmul.f32 %v1941, 1.442695
    %v1945 = vpow.pop %v1944
    %1948 = vset.pattern.permute.xlu0 0
    %1949 = vperm.xlu0 %1948, %v1943
    %v1950 = vpop.permute.xlu0 %1949
    %1951 = vset.pattern.permute.xlu0 0
    %1952 = vperm.xlu0 %1951, %v1945
    %v1953 = vpop.permute.xlu0 %1952
    %v1954 = vlaneseq
    %v1955 = vshrl.u32 %v1954, 7
    %v1956 = vsub.s32 %v76, %v1955
    %v1957 = vrot.slane %v1950, %v1956
    %v1958 = vlaneseq
    %v1959 = vshrl.u32 %v1958, 7
    %v1960 = vsub.s32 %v76, %v1959
    %v1961 = vrot.slane %v1953, %v1960
    %v1962 = vsel %vm174, %v1961, %v1957
    %v1964 = vsel %vm1925, %v1962, 0.0
    %1965 = vadd.xlane.f32.xlu0 %v1964
    %v1966 = vpop.xlane.xlu0 %1965
    %v1968 = vlaneseq
    %v1969 = vshrl.u32 %v1968, 7
    %v1970 = vsub.s32 0, %v1969
    %v1971 = vrot.slane %v1966, %v1970
    %v1972 = vlaneseq
    %v1973 = vshrl.u32 %v1972, 7
    %v1974 = vsub.s32 1, %v1973
    %v1975 = vrot.slane %v1966, %v1974
    %v1978 = vrcp.pop %v1971
    %v1979 = vmul.f32 %v1943, %v1978
    %v1980 = vrcp.pop %v1975
    %v1981 = vmul.f32 %v1945, %v1980
    %1983 = vset.pattern.permute.xlu0 0
    %1984 = vperm.xlu0 %1983, %v1979
    %v1985 = vpop.permute.xlu0 %1984
    %1988 = vset.pattern.permute.xlu0 0
    %1989 = vperm.xlu0 %1988, %v1981
    %v1990 = vpop.permute.xlu0 %1989
    %v1992 = vmul.f32 %v1808, %v1985
    %v1993 = vmul.f32 %v1809, %v1990
    %vm1994 = vcmask 1048320
    %v1995 = vsel %vm1994, %v1992, 0.0
    %v1996 = vrot.slane %v1995, 4
    %v1997 = vadd.f32 %v1995, %v1996
    %v1998 = vrot.slane %v1997, 2
    %v1999 = vadd.f32 %v1997, %v1998
    %v2000 = vrot.slane %v1999, 1
    %v2001 = vadd.f32 %v1999, %v2000
    %v2002 = vsel %vm1994, %v1993, 0.0
    %v2003 = vrot.slane %v2002, 4
    %v2004 = vadd.f32 %v2002, %v2003
    %v2005 = vrot.slane %v2004, 2
    %v2006 = vadd.f32 %v2004, %v2005
    %v2007 = vrot.slane %v2006, 1
    %v2008 = vadd.f32 %v2006, %v2007
    %v2009 = vpack.c.bf16 %v2001, %v2001
    %v2010 = vpack.c.bf16 %v2008, %v2008
    %v2011 = vld [vmem:[%s11] sm:$0xf]
    %v2012 = vld [vmem:[%s11 + $0x4] sm:$0xf]
    %v2013 = vld [vmem:[%s11 + $0x8] sm:$0xf]
    %v2014 = vld [vmem:[%s11 + $0xc] sm:$0xf]
    %v2015 = vld [vmem:[%s12] sm:$0x1]
    %v2017 = vlaneseq
    %v2018 = vshrl.u32 %v2017, 7
    %v2019 = vsub.s32 0, %v2018
    %v2020 = vrot.slane %v2015, %v2019
    %v2024 = vunpack.c.l.b16 %v2009
    %v2025 = vunpack.c.l.b16 %v2010
    %v2026 = vsel %vm174, %v2025, %v2024
    %v2027 = vpack.c.b16 %v2026, %v2026
    %2028 = vrot.lane.b32.xlu0 %v2027, 32
    %v2029 = vpop.permute.xlu0 %2028
    %v2034 = vunpack.c.l.b16 %v2011
    %v2035 = vunpack.c.l.b16 %v2012
    %v2036 = vunpack.c.l.b16 %v2013
    %v2037 = vunpack.c.l.b16 %v2014
    %v2038 = vpack.c.b16 %v2035, %v2034
    %v2039 = vpack.c.b16 %v2037, %v2036
    %v2043 = vsel %vm204, %v2029, 0
    %2045 = vmatprep.subr.bf16.mxu0 0
    %2046 = vmatpush1.bf16.msra.mxu0 0
    %2047 = vmatprep.subr.bf16.mxu0 0
    %2048 = vmatpush1.bf16.msra.mxu0 0
    %2049 = vmatprep.subr.bf16.mxu0 0
    %2050 = vmatpush1.bf16.msra.mxu0 0
    %2051 = vmatprep.subr.bf16.mxu0 0
    %2052 = vmatpush1.bf16.msra.mxu0 0
    %2053 = vmatprep.subr.bf16.mxu0 0
    %2054 = vmatpush1.bf16.msra.mxu0 0
    %2055 = vmatprep.subr.bf16.mxu0 0
    %2056 = vmatpush1.bf16.msra.mxu0 0
    %2057 = vmatprep.subr.bf16.mxu0 0
    %2058 = vmatpush1.bf16.msra.mxu0 %v2039
    %2059 = vmatprep.subr.bf16.mxu0 0
    %2060 = vmatpush1.bf16.msra.mxu0 %v2038
    %2061 = vmatprep.subr.bf16.mxu0 0
    %2062 = vmatpush2.bf16.msra.mxu0 0
    %2063 = vmatprep.subr.bf16.mxu0 0
    %2064 = vmatpush2.bf16.msra.mxu0 0
    %2065 = vmatprep.subr.bf16.mxu0 0
    %2066 = vmatpush2.bf16.msra.mxu0 0
    %2067 = vmatprep.subr.bf16.mxu0 0
    %2068 = vmatpush2.bf16.msra.mxu0 0
    %2069 = vmatprep.subr.bf16.mxu0 0
    %2070 = vmatpush2.bf16.msra.mxu0 0
    %2071 = vmatprep.subr.bf16.mxu0 0
    %2072 = vmatpush2.bf16.msra.mxu0 0
    %2073 = vmatprep.subr.bf16.mxu0 0
    %2074 = vmatpush2.bf16.msra.mxu0 0
    %2075 = vmatprep.subr.bf16.mxu0 0
    %2076 = vmatpush2.bf16.msra.mxu0 0
    %2077 = vmatprep.mubr.bf16.mxu0 0
    %2078 = vmatmul.mubr.bf16.gmra.mxu0 %v2043
    %v2079 = vpop.f32.mrf.mxu0
    %v2080 = vadd.f32 %v2020, %v2079
    %v2081 = vpop.f32.mrf.mxu0
    %v2082 = vpop.f32.mrf.mxu0
    %v2083 = vpop.f32.mrf.mxu0
    %2084 = vdwg.mxu0
    %vm2085 = vcmask 107520
    %2086 = vst.msk [vmem:[#allocation3] sm:$0x3] %vm2085, %v2080
    %2088 = vrot.lane.b32.xlu0 %v2080, 114
    %v2089 = vpop.permute.xlu0 %2088
    %2091 = vst.msk [vmem:[#allocation5] sm:$0x3] %vm2085, %v2089
    %v2092 = vld [vmem:[%s1] sm:$0x3]
    %v2093 = vmul.f32 %v2080, 0.5
    %v2094 = vmul.f32 %v2093, 1.442695
    %v2095 = vpow.pop %v2094
    %2097 = vrot.lane.b32.xlu0 %v2095, 114
    %v2098 = vpop.permute.xlu0 %2097
    %v2100 = vmul.f32 %v2092, %v2098
    %v2101 = vadd.f32 %v2080, %v2100
    %v2102 = vpack.c.bf16 %v2101, %v2101
    %v2103 = vld [vmem:[%s13] sm:$0xf]
    %v2104 = vld [vmem:[%s13 + $0x4] sm:$0x7]
    %v2105 = vld [vmem:[%s15] sm:$0x1]
    %v2107 = vlaneseq
    %v2108 = vshrl.u32 %v2107, 7
    %v2109 = vsub.s32 0, %v2108
    %v2110 = vrot.slane %v2105, %v2109
    %v2114 = vunpack.c.l.b16 %v2103
    %v2115 = vunpack.c.l.b16 %v2104
    %v2116 = vpack.c.b16 %v2115, %v2114
    %vm2117 = vcmask 113664
    %v2119 = vsel %vm2117, %v2102, 0
    %v2122 = vsel %vm1807, %v2116, 0
    %2124 = vmatprep.subr.bf16.mxu0 0
    %2125 = vmatpush1.bf16.msra.mxu0 0
    %2126 = vmatprep.subr.bf16.mxu0 0
    %2127 = vmatpush1.bf16.msra.mxu0 0
    %2128 = vmatprep.subr.bf16.mxu0 0
    %2129 = vmatpush1.bf16.msra.mxu0 0
    %2130 = vmatprep.subr.bf16.mxu0 0
    %2131 = vmatpush1.bf16.msra.mxu0 0
    %2132 = vmatprep.subr.bf16.mxu0 0
    %2133 = vmatpush1.bf16.msra.mxu0 0
    %2134 = vmatprep.subr.bf16.mxu0 0
    %2135 = vmatpush1.bf16.msra.mxu0 0
    %2136 = vmatprep.subr.bf16.mxu0 0
    %2137 = vmatpush1.bf16.msra.mxu0 0
    %2138 = vmatprep.subr.bf16.mxu0 0
    %2139 = vmatpush1.bf16.msra.mxu0 %v2122
    %2140 = vmatprep.subr.bf16.mxu0 0
    %2141 = vmatpush2.bf16.msra.mxu0 0
    %2142 = vmatprep.subr.bf16.mxu0 0
    %2143 = vmatpush2.bf16.msra.mxu0 0
    %2144 = vmatprep.subr.bf16.mxu0 0
    %2145 = vmatpush2.bf16.msra.mxu0 0
    %2146 = vmatprep.subr.bf16.mxu0 0
    %2147 = vmatpush2.bf16.msra.mxu0 0
    %2148 = vmatprep.subr.bf16.mxu0 0
    %2149 = vmatpush2.bf16.msra.mxu0 0
    %2150 = vmatprep.subr.bf16.mxu0 0
    %2151 = vmatpush2.bf16.msra.mxu0 0
    %2152 = vmatprep.subr.bf16.mxu0 0
    %2153 = vmatpush2.bf16.msra.mxu0 0
    %2154 = vmatprep.subr.bf16.mxu0 0
    %2155 = vmatpush2.bf16.msra.mxu0 0
    %2156 = vmatprep.mubr.bf16.mxu0 0
    %2157 = vmatmul.mubr.bf16.gmra.mxu0 %v2119
    %v2158 = vpop.f32.mrf.mxu0
    %v2159 = vadd.f32 %v2110, %v2158
    %v2160 = vpop.f32.mrf.mxu0
    %v2161 = vpop.f32.mrf.mxu0
    %v2162 = vpop.f32.mrf.mxu0
    %2163 = vdwg.mxu0
    %v2164 = vld [vmem:[%s17] sm:$0x1]
    %v2166 = vlaneseq
    %v2167 = vshrl.u32 %v2166, 7
    %v2168 = vsub.s32 0, %v2167
    %v2169 = vrot.slane %v2164, %v2168
    %v2171 = vld [vmem:[%s14] sm:$0xf]
    %v2172 = vld [vmem:[%s14 + $0x4] sm:$0xf]
    %v2173 = vld [vmem:[%s14 + $0x8] sm:$0xf]
    %v2174 = vld [vmem:[%s14 + $0xc] sm:$0xf]
    %v2175 = vld [vmem:[%s16] sm:$0xf]
    %v2176 = vld [vmem:[%s16 + $0x4] sm:$0xf]
    %v2177 = vld [vmem:[%s16 + $0x8] sm:$0xf]
    %v2178 = vld [vmem:[%s16 + $0xc] sm:$0xf]
    %v2179 = vld [vmem:[%s16 + $0x10] sm:$0xf]
    %v2180 = vld [vmem:[%s16 + $0x14] sm:$0xf]
    %v2181 = vld [vmem:[%s16 + $0x18] sm:$0xf]
    %v2182 = vld [vmem:[%s16 + $0x1c] sm:$0xf]
    %v2183 = vtanh.pop %v2159
    %v2184 = vxor.u32 %v2159, 2147483648
    %v2185 = vmul.f32 %v2184, 1.442695
    %v2186 = vpow.pop %v2185
    %v2187 = vadd.f32 %v2186, 1.0
    %v2188 = vrcp.pop %v2187
    %v2189 = vmul.f32 1.0, %v2188
    %v2190 = vsel %vm79, %v2183, %v2189
    %v2191 = vmul.f32 %v2190, 0.0
    %2193 = vrot.lane.b32.xlu0 %v2190, 64
    %v2194 = vpop.permute.xlu0 %2193
    %v2196 = vmul.f32 %v2190, %v2194
    %2198 = vrot.lane.b32.xlu0 %v2196, 32
    %v2199 = vpop.permute.xlu0 %2198
    %v2201 = vadd.f32 %v2191, %v2199
    %v2202 = vtanh.pop %v2201
    %2204 = vrot.lane.b32.xlu0 %v2202, 64
    %v2205 = vpop.permute.xlu0 %2204
    %v2207 = vmul.f32 %v2190, %v2205
    %2209 = vrot.lane.b32.xlu0 %v2207, 32
    %v2210 = vpop.permute.xlu0 %2209
    %v2212 = vsel %vm204, %v2210, 0.0
    %v2213 = vpack.c.bf16 %v2212, %v2212
    %v2222 = vunpack.c.l.b16 %v2175
    %v2223 = vunpack.c.l.b16 %v2176
    %v2224 = vunpack.c.l.b16 %v2177
    %v2225 = vunpack.c.l.b16 %v2178
    %v2226 = vunpack.c.l.b16 %v2179
    %v2227 = vunpack.c.l.b16 %v2180
    %v2228 = vunpack.c.l.b16 %v2181
    %v2229 = vunpack.c.l.b16 %v2182
    %v2230 = vpack.c.b16 %v2223, %v2222
    %v2231 = vpack.c.b16 %v2225, %v2224
    %v2232 = vpack.c.b16 %v2227, %v2226
    %v2233 = vpack.c.b16 %v2229, %v2228
    %v2239 = vsel %vm231, %v2213, 0
    %2241 = vmatprep.subr.bf16.mxu0 0
    %2242 = vmatpush1.bf16.msra.mxu0 0
    %2243 = vmatprep.subr.bf16.mxu0 0
    %2244 = vmatpush1.bf16.msra.mxu0 0
    %2245 = vmatprep.subr.bf16.mxu0 0
    %2246 = vmatpush1.bf16.msra.mxu0 0
    %2247 = vmatprep.subr.bf16.mxu0 0
    %2248 = vmatpush1.bf16.msra.mxu0 0
    %2249 = vmatprep.subr.bf16.mxu0 0
    %2250 = vmatpush1.bf16.msra.mxu0 %v2233
    %2251 = vmatprep.subr.bf16.mxu0 0
    %2252 = vmatpush1.bf16.msra.mxu0 %v2232
    %2253 = vmatprep.subr.bf16.mxu0 0
    %2254 = vmatpush1.bf16.msra.mxu0 %v2231
    %2255 = vmatprep.subr.bf16.mxu0 0
    %2256 = vmatpush1.bf16.msra.mxu0 %v2230
    %2257 = vmatprep.subr.bf16.mxu0 0
    %2258 = vmatpush2.bf16.msra.mxu0 0
    %2259 = vmatprep.subr.bf16.mxu0 0
    %2260 = vmatpush2.bf16.msra.mxu0 0
    %2261 = vmatprep.subr.bf16.mxu0 0
    %2262 = vmatpush2.bf16.msra.mxu0 0
    %2263 = vmatprep.subr.bf16.mxu0 0
    %2264 = vmatpush2.bf16.msra.mxu0 0
    %2265 = vmatprep.subr.bf16.mxu0 0
    %2266 = vmatpush2.bf16.msra.mxu0 0
    %2267 = vmatprep.subr.bf16.mxu0 0
    %2268 = vmatpush2.bf16.msra.mxu0 0
    %2269 = vmatprep.subr.bf16.mxu0 0
    %2270 = vmatpush2.bf16.msra.mxu0 0
    %2271 = vmatprep.subr.bf16.mxu0 0
    %2272 = vmatpush2.bf16.msra.mxu0 0
    %2273 = vmatprep.mubr.bf16.mxu0 0
    %2274 = vmatmul.mubr.bf16.gmra.mxu0 %v2239
    %v2275 = vpop.f32.mrf.mxu0
    %v2276 = vadd.f32 %v2169, %v2275
    %v2277 = vpop.f32.mrf.mxu0
    %v2278 = vpop.f32.mrf.mxu0
    %v2279 = vpop.f32.mrf.mxu0
    %2280 = vdwg.mxu0
    %v2281 = vtanh.pop %v2276
    %v2282 = vxor.u32 %v2276, 2147483648
    %v2283 = vmul.f32 %v2282, 1.442695
    %v2284 = vpow.pop %v2283
    %v2285 = vadd.f32 %v2284, 1.0
    %v2286 = vrcp.pop %v2285
    %v2287 = vmul.f32 1.0, %v2286
    %v2288 = vsel %vm79, %v2281, %v2287
    %v2289 = vmul.f32 %v2288, 0.0
    %2291 = vrot.lane.b32.xlu0 %v2288, 64
    %v2292 = vpop.permute.xlu0 %2291
    %v2294 = vmul.f32 %v2288, %v2292
    %2296 = vrot.lane.b32.xlu0 %v2294, 32
    %v2297 = vpop.permute.xlu0 %2296
    %v2299 = vadd.f32 %v2289, %v2297
    %v2300 = vtanh.pop %v2299
    %2302 = vrot.lane.b32.xlu0 %v2300, 64
    %v2303 = vpop.permute.xlu0 %2302
    %v2305 = vmul.f32 %v2288, %v2303
    %v2306 = vpack.c.bf16 %v2207, %v2207
    %2308 = vrot.lane.b32.xlu0 %v2306, 32
    %v2309 = vpop.permute.xlu0 %2308
    %v2314 = vunpack.c.l.b16 %v2171
    %v2315 = vunpack.c.l.b16 %v2172
    %v2316 = vunpack.c.l.b16 %v2173
    %v2317 = vunpack.c.l.b16 %v2174
    %v2318 = vpack.c.b16 %v2315, %v2314
    %v2319 = vpack.c.b16 %v2317, %v2316
    %v2323 = vsel %vm204, %v2309, 0
    %2325 = vmatprep.subr.bf16.mxu0 0
    %2326 = vmatpush1.bf16.msra.mxu0 0
    %2327 = vmatprep.subr.bf16.mxu0 0
    %2328 = vmatpush1.bf16.msra.mxu0 0
    %2329 = vmatprep.subr.bf16.mxu0 0
    %2330 = vmatpush1.bf16.msra.mxu0 0
    %2331 = vmatprep.subr.bf16.mxu0 0
    %2332 = vmatpush1.bf16.msra.mxu0 0
    %2333 = vmatprep.subr.bf16.mxu0 0
    %2334 = vmatpush1.bf16.msra.mxu0 0
    %2335 = vmatprep.subr.bf16.mxu0 0
    %2336 = vmatpush1.bf16.msra.mxu0 0
    %2337 = vmatprep.subr.bf16.mxu0 0
    %2338 = vmatpush1.bf16.msra.mxu0 %v2319
    %2339 = vmatprep.subr.bf16.mxu0 0
    %2340 = vmatpush1.bf16.msra.mxu0 %v2318
    %2341 = vmatprep.subr.bf16.mxu0 0
    %2342 = vmatpush2.bf16.msra.mxu0 0
    %2343 = vmatprep.subr.bf16.mxu0 0
    %2344 = vmatpush2.bf16.msra.mxu0 0
    %2345 = vmatprep.subr.bf16.mxu0 0
    %2346 = vmatpush2.bf16.msra.mxu0 0
    %2347 = vmatprep.subr.bf16.mxu0 0
    %2348 = vmatpush2.bf16.msra.mxu0 0
    %2349 = vmatprep.subr.bf16.mxu0 0
    %2350 = vmatpush2.bf16.msra.mxu0 0
    %2351 = vmatprep.subr.bf16.mxu0 0
    %2352 = vmatpush2.bf16.msra.mxu0 0
    %2353 = vmatprep.subr.bf16.mxu0 0
    %2354 = vmatpush2.bf16.msra.mxu0 0
    %2355 = vmatprep.subr.bf16.mxu0 0
    %2356 = vmatpush2.bf16.msra.mxu0 0
    %2357 = vmatprep.mubr.bf16.mxu0 0
    %2358 = vmatmul.mubr.bf16.gmra.mxu0 %v2323
    %v2359 = vpop.f32.mrf.mxu0
    %v2360 = vadd.f32 0.0, %v2359
    %v2361 = vpop.f32.mrf.mxu0
    %v2362 = vpop.f32.mrf.mxu0
    %v2363 = vpop.f32.mrf.mxu0
    %2364 = vdwg.mxu0
    %v2365 = vadd.f32 %v2159, %v2360
    %v2366 = vtanh.pop %v2365
    %v2367 = vxor.u32 %v2365, 2147483648
    %v2368 = vmul.f32 %v2367, 1.442695
    %v2369 = vpow.pop %v2368
    %v2370 = vadd.f32 %v2369, 1.0
    %v2371 = vrcp.pop %v2370
    %v2372 = vmul.f32 1.0, %v2371
    %v2373 = vsel %vm79, %v2366, %v2372
    %v2374 = vmul.f32 %v2373, %v2201
    %2376 = vrot.lane.b32.xlu0 %v2373, 64
    %v2377 = vpop.permute.xlu0 %2376
    %v2379 = vmul.f32 %v2373, %v2377
    %2381 = vrot.lane.b32.xlu0 %v2379, 32
    %v2382 = vpop.permute.xlu0 %2381
    %v2384 = vadd.f32 %v2374, %v2382
    %v2385 = vtanh.pop %v2384
    %2387 = vrot.lane.b32.xlu0 %v2385, 64
    %v2388 = vpop.permute.xlu0 %2387
    %v2390 = vmul.f32 %v2373, %v2388
    %2392 = vrot.lane.b32.xlu0 %v2390, 32
    %v2393 = vpop.permute.xlu0 %2392
    %2396 = vrot.lane.b32.xlu0 %v2305, 64
    %v2397 = vpop.permute.xlu0 %2396
    %v2399 = vsel %vm204, %v2393, %v2397
    %v2400 = vpack.c.bf16 %v2399, %v2399
    %v2402 = vsel %vm231, %v2400, 0
    %2404 = vmatprep.subr.bf16.mxu0 0
    %2405 = vmatpush1.bf16.msra.mxu0 0
    %2406 = vmatprep.subr.bf16.mxu0 0
    %2407 = vmatpush1.bf16.msra.mxu0 0
    %2408 = vmatprep.subr.bf16.mxu0 0
    %2409 = vmatpush1.bf16.msra.mxu0 0
    %2410 = vmatprep.subr.bf16.mxu0 0
    %2411 = vmatpush1.bf16.msra.mxu0 0
    %2412 = vmatprep.subr.bf16.mxu0 0
    %2413 = vmatpush1.bf16.msra.mxu0 %v2233
    %2414 = vmatprep.subr.bf16.mxu0 0
    %2415 = vmatpush1.bf16.msra.mxu0 %v2232
    %2416 = vmatprep.subr.bf16.mxu0 0
    %2417 = vmatpush1.bf16.msra.mxu0 %v2231
    %2418 = vmatprep.subr.bf16.mxu0 0
    %2419 = vmatpush1.bf16.msra.mxu0 %v2230
    %2420 = vmatprep.subr.bf16.mxu0 0
    %2421 = vmatpush2.bf16.msra.mxu0 0
    %2422 = vmatprep.subr.bf16.mxu0 0
    %2423 = vmatpush2.bf16.msra.mxu0 0
    %2424 = vmatprep.subr.bf16.mxu0 0
    %2425 = vmatpush2.bf16.msra.mxu0 0
    %2426 = vmatprep.subr.bf16.mxu0 0
    %2427 = vmatpush2.bf16.msra.mxu0 0
    %2428 = vmatprep.subr.bf16.mxu0 0
    %2429 = vmatpush2.bf16.msra.mxu0 0
    %2430 = vmatprep.subr.bf16.mxu0 0
    %2431 = vmatpush2.bf16.msra.mxu0 0
    %2432 = vmatprep.subr.bf16.mxu0 0
    %2433 = vmatpush2.bf16.msra.mxu0 0
    %2434 = vmatprep.subr.bf16.mxu0 0
    %2435 = vmatpush2.bf16.msra.mxu0 0
    %2436 = vmatprep.mubr.bf16.mxu0 0
    %2437 = vmatmul.mubr.bf16.gmra.mxu0 %v2402
    %v2438 = vpop.f32.mrf.mxu0
    %v2439 = vadd.f32 %v2169, %v2438
    %v2440 = vpop.f32.mrf.mxu0
    %v2441 = vpop.f32.mrf.mxu0
    %v2442 = vpop.f32.mrf.mxu0
    %2443 = vdwg.mxu0
    %v2444 = vtanh.pop %v2439
    %v2445 = vxor.u32 %v2439, 2147483648
    %v2446 = vmul.f32 %v2445, 1.442695
    %v2447 = vpow.pop %v2446
    %v2448 = vadd.f32 %v2447, 1.0
    %v2449 = vrcp.pop %v2448
    %v2450 = vmul.f32 1.0, %v2449
    %v2451 = vsel %vm79, %v2444, %v2450
    %v2452 = vmul.f32 %v2451, %v2299
    %2454 = vrot.lane.b32.xlu0 %v2451, 64
    %v2455 = vpop.permute.xlu0 %2454
    %v2457 = vmul.f32 %v2451, %v2455
    %2459 = vrot.lane.b32.xlu0 %v2457, 32
    %v2460 = vpop.permute.xlu0 %2459
    %v2462 = vadd.f32 %v2452, %v2460
    %v2463 = vtanh.pop %v2462
    %2465 = vrot.lane.b32.xlu0 %v2463, 64
    %v2466 = vpop.permute.xlu0 %2465
    %v2468 = vmul.f32 %v2451, %v2466
    %v2469 = vpack.c.bf16 %v2390, %v2390
    %2471 = vrot.lane.b32.xlu0 %v2469, 32
    %v2472 = vpop.permute.xlu0 %2471
    %v2474 = vsel %vm204, %v2472, 0
    %2476 = vmatprep.subr.bf16.mxu0 0
    %2477 = vmatpush1.bf16.msra.mxu0 0
    %2478 = vmatprep.subr.bf16.mxu0 0
    %2479 = vmatpush1.bf16.msra.mxu0 0
    %2480 = vmatprep.subr.bf16.mxu0 0
    %2481 = vmatpush1.bf16.msra.mxu0 0
    %2482 = vmatprep.subr.bf16.mxu0 0
    %2483 = vmatpush1.bf16.msra.mxu0 0
    %2484 = vmatprep.subr.bf16.mxu0 0
    %2485 = vmatpush1.bf16.msra.mxu0 0
    %2486 = vmatprep.subr.bf16.mxu0 0
    %2487 = vmatpush1.bf16.msra.mxu0 0
    %2488 = vmatprep.subr.bf16.mxu0 0
    %2489 = vmatpush1.bf16.msra.mxu0 %v2319
    %2490 = vmatprep.subr.bf16.mxu0 0
    %2491 = vmatpush1.bf16.msra.mxu0 %v2318
    %2492 = vmatprep.subr.bf16.mxu0 0
    %2493 = vmatpush2.bf16.msra.mxu0 0
    %2494 = vmatprep.subr.bf16.mxu0 0
    %2495 = vmatpush2.bf16.msra.mxu0 0
    %2496 = vmatprep.subr.bf16.mxu0 0
    %2497 = vmatpush2.bf16.msra.mxu0 0
    %2498 = vmatprep.subr.bf16.mxu0 0
    %2499 = vmatpush2.bf16.msra.mxu0 0
    %2500 = vmatprep.subr.bf16.mxu0 0
    %2501 = vmatpush2.bf16.msra.mxu0 0
    %2502 = vmatprep.subr.bf16.mxu0 0
    %2503 = vmatpush2.bf16.msra.mxu0 0
    %2504 = vmatprep.subr.bf16.mxu0 0
    %2505 = vmatpush2.bf16.msra.mxu0 0
    %2506 = vmatprep.subr.bf16.mxu0 0
    %2507 = vmatpush2.bf16.msra.mxu0 0
    %2508 = vmatprep.mubr.bf16.mxu0 0
    %2509 = vmatmul.mubr.bf16.gmra.mxu0 %v2474
    %v2510 = vpop.f32.mrf.mxu0
    %v2511 = vadd.f32 0.0, %v2510
    %v2512 = vpop.f32.mrf.mxu0
    %v2513 = vpop.f32.mrf.mxu0
    %v2514 = vpop.f32.mrf.mxu0
    %2515 = vdwg.mxu0
    %v2516 = vadd.f32 %v2159, %v2511
    %v2517 = vtanh.pop %v2516
    %v2518 = vxor.u32 %v2516, 2147483648
    %v2519 = vmul.f32 %v2518, 1.442695
    %v2520 = vpow.pop %v2519
    %v2521 = vadd.f32 %v2520, 1.0
    %v2522 = vrcp.pop %v2521
    %v2523 = vmul.f32 1.0, %v2522
    %v2524 = vsel %vm79, %v2517, %v2523
    %v2525 = vmul.f32 %v2524, %v2384
    %2527 = vrot.lane.b32.xlu0 %v2524, 64
    %v2528 = vpop.permute.xlu0 %2527
    %v2530 = vmul.f32 %v2524, %v2528
    %2532 = vrot.lane.b32.xlu0 %v2530, 32
    %v2533 = vpop.permute.xlu0 %2532
    %v2535 = vadd.f32 %v2525, %v2533
    %v2536 = vtanh.pop %v2535
    %2538 = vrot.lane.b32.xlu0 %v2536, 64
    %v2539 = vpop.permute.xlu0 %2538
    %v2541 = vmul.f32 %v2524, %v2539
    %2543 = vrot.lane.b32.xlu0 %v2541, 32
    %v2544 = vpop.permute.xlu0 %2543
    %2547 = vrot.lane.b32.xlu0 %v2468, 64
    %v2548 = vpop.permute.xlu0 %2547
    %v2550 = vsel %vm204, %v2544, %v2548
    %v2551 = vpack.c.bf16 %v2550, %v2550
    %v2553 = vsel %vm231, %v2551, 0
    %2555 = vmatprep.subr.bf16.mxu0 0
    %2556 = vmatpush1.bf16.msra.mxu0 0
    %2557 = vmatprep.subr.bf16.mxu0 0
    %2558 = vmatpush1.bf16.msra.mxu0 0
    %2559 = vmatprep.subr.bf16.mxu0 0
    %2560 = vmatpush1.bf16.msra.mxu0 0
    %2561 = vmatprep.subr.bf16.mxu0 0
    %2562 = vmatpush1.bf16.msra.mxu0 0
    %2563 = vmatprep.subr.bf16.mxu0 0
    %2564 = vmatpush1.bf16.msra.mxu0 %v2233
    %2565 = vmatprep.subr.bf16.mxu0 0
    %2566 = vmatpush1.bf16.msra.mxu0 %v2232
    %2567 = vmatprep.subr.bf16.mxu0 0
    %2568 = vmatpush1.bf16.msra.mxu0 %v2231
    %2569 = vmatprep.subr.bf16.mxu0 0
    %2570 = vmatpush1.bf16.msra.mxu0 %v2230
    %2571 = vmatprep.subr.bf16.mxu0 0
    %2572 = vmatpush2.bf16.msra.mxu0 0
    %2573 = vmatprep.subr.bf16.mxu0 0
    %2574 = vmatpush2.bf16.msra.mxu0 0
    %2575 = vmatprep.subr.bf16.mxu0 0
    %2576 = vmatpush2.bf16.msra.mxu0 0
    %2577 = vmatprep.subr.bf16.mxu0 0
    %2578 = vmatpush2.bf16.msra.mxu0 0
    %2579 = vmatprep.subr.bf16.mxu0 0
    %2580 = vmatpush2.bf16.msra.mxu0 0
    %2581 = vmatprep.subr.bf16.mxu0 0
    %2582 = vmatpush2.bf16.msra.mxu0 0
    %2583 = vmatprep.subr.bf16.mxu0 0
    %2584 = vmatpush2.bf16.msra.mxu0 0
    %2585 = vmatprep.subr.bf16.mxu0 0
    %2586 = vmatpush2.bf16.msra.mxu0 0
    %2587 = vmatprep.mubr.bf16.mxu0 0
    %2588 = vmatmul.mubr.bf16.gmra.mxu0 %v2553
    %v2589 = vpop.f32.mrf.mxu0
    %v2590 = vadd.f32 %v2169, %v2589
    %v2591 = vpop.f32.mrf.mxu0
    %v2592 = vpop.f32.mrf.mxu0
    %v2593 = vpop.f32.mrf.mxu0
    %2594 = vdwg.mxu0
    %v2595 = vtanh.pop %v2590
    %v2596 = vxor.u32 %v2590, 2147483648
    %v2597 = vmul.f32 %v2596, 1.442695
    %v2598 = vpow.pop %v2597
    %v2599 = vadd.f32 %v2598, 1.0
    %v2600 = vrcp.pop %v2599
    %v2601 = vmul.f32 1.0, %v2600
    %v2602 = vsel %vm79, %v2595, %v2601
    %v2603 = vmul.f32 %v2602, %v2462
    %2605 = vrot.lane.b32.xlu0 %v2602, 64
    %v2606 = vpop.permute.xlu0 %2605
    %v2608 = vmul.f32 %v2602, %v2606
    %2610 = vrot.lane.b32.xlu0 %v2608, 32
    %v2611 = vpop.permute.xlu0 %2610
    %v2613 = vadd.f32 %v2603, %v2611
    %v2614 = vtanh.pop %v2613
    %2616 = vrot.lane.b32.xlu0 %v2614, 64
    %v2617 = vpop.permute.xlu0 %2616
    %v2619 = vmul.f32 %v2602, %v2617
    %v2620 = vpack.c.bf16 %v2541, %v2541
    %2622 = vrot.lane.b32.xlu0 %v2620, 32
    %v2623 = vpop.permute.xlu0 %2622
    %v2625 = vsel %vm204, %v2623, 0
    %2627 = vmatprep.subr.bf16.mxu0 0
    %2628 = vmatpush1.bf16.msra.mxu0 0
    %2629 = vmatprep.subr.bf16.mxu0 0
    %2630 = vmatpush1.bf16.msra.mxu0 0
    %2631 = vmatprep.subr.bf16.mxu0 0
    %2632 = vmatpush1.bf16.msra.mxu0 0
    %2633 = vmatprep.subr.bf16.mxu0 0
    %2634 = vmatpush1.bf16.msra.mxu0 0
    %2635 = vmatprep.subr.bf16.mxu0 0
    %2636 = vmatpush1.bf16.msra.mxu0 0
    %2637 = vmatprep.subr.bf16.mxu0 0
    %2638 = vmatpush1.bf16.msra.mxu0 0
    %2639 = vmatprep.subr.bf16.mxu0 0
    %2640 = vmatpush1.bf16.msra.mxu0 %v2319
    %2641 = vmatprep.subr.bf16.mxu0 0
    %2642 = vmatpush1.bf16.msra.mxu0 %v2318
    %2643 = vmatprep.subr.bf16.mxu0 0
    %2644 = vmatpush2.bf16.msra.mxu0 0
    %2645 = vmatprep.subr.bf16.mxu0 0
    %2646 = vmatpush2.bf16.msra.mxu0 0
    %2647 = vmatprep.subr.bf16.mxu0 0
    %2648 = vmatpush2.bf16.msra.mxu0 0
    %2649 = vmatprep.subr.bf16.mxu0 0
    %2650 = vmatpush2.bf16.msra.mxu0 0
    %2651 = vmatprep.subr.bf16.mxu0 0
    %2652 = vmatpush2.bf16.msra.mxu0 0
    %2653 = vmatprep.subr.bf16.mxu0 0
    %2654 = vmatpush2.bf16.msra.mxu0 0
    %2655 = vmatprep.subr.bf16.mxu0 0
    %2656 = vmatpush2.bf16.msra.mxu0 0
    %2657 = vmatprep.subr.bf16.mxu0 0
    %2658 = vmatpush2.bf16.msra.mxu0 0
    %2659 = vmatprep.mubr.bf16.mxu0 0
    %2660 = vmatmul.mubr.bf16.gmra.mxu0 %v2625
    %v2661 = vpop.f32.mrf.mxu0
    %v2662 = vadd.f32 0.0, %v2661
    %v2663 = vpop.f32.mrf.mxu0
    %v2664 = vpop.f32.mrf.mxu0
    %v2665 = vpop.f32.mrf.mxu0
    %2666 = vdwg.mxu0
    %v2667 = vadd.f32 %v2159, %v2662
    %v2668 = vtanh.pop %v2667
    %v2669 = vxor.u32 %v2667, 2147483648
    %v2670 = vmul.f32 %v2669, 1.442695
    %v2671 = vpow.pop %v2670
    %v2672 = vadd.f32 %v2671, 1.0
    %v2673 = vrcp.pop %v2672
    %v2674 = vmul.f32 1.0, %v2673
    %v2675 = vsel %vm79, %v2668, %v2674
    %v2676 = vmul.f32 %v2675, %v2535
    %2678 = vrot.lane.b32.xlu0 %v2675, 64
    %v2679 = vpop.permute.xlu0 %2678
    %v2681 = vmul.f32 %v2675, %v2679
    %2683 = vrot.lane.b32.xlu0 %v2681, 32
    %v2684 = vpop.permute.xlu0 %2683
    %v2686 = vadd.f32 %v2676, %v2684
    %v2687 = vtanh.pop %v2686
    %2689 = vrot.lane.b32.xlu0 %v2687, 64
    %v2690 = vpop.permute.xlu0 %2689
    %v2692 = vmul.f32 %v2675, %v2690
    %2694 = vrot.lane.b32.xlu0 %v2692, 32
    %v2695 = vpop.permute.xlu0 %2694
    %2698 = vrot.lane.b32.xlu0 %v2619, 64
    %v2699 = vpop.permute.xlu0 %2698
    %v2701 = vsel %vm204, %v2695, %v2699
    %v2702 = vpack.c.bf16 %v2701, %v2701
    %v2704 = vsel %vm231, %v2702, 0
    %2706 = vmatprep.subr.bf16.mxu0 0
    %2707 = vmatpush1.bf16.msra.mxu0 0
    %2708 = vmatprep.subr.bf16.mxu0 0
    %2709 = vmatpush1.bf16.msra.mxu0 0
    %2710 = vmatprep.subr.bf16.mxu0 0
    %2711 = vmatpush1.bf16.msra.mxu0 0
    %2712 = vmatprep.subr.bf16.mxu0 0
    %2713 = vmatpush1.bf16.msra.mxu0 0
    %2714 = vmatprep.subr.bf16.mxu0 0
    %2715 = vmatpush1.bf16.msra.mxu0 %v2233
    %2716 = vmatprep.subr.bf16.mxu0 0
    %2717 = vmatpush1.bf16.msra.mxu0 %v2232
    %2718 = vmatprep.subr.bf16.mxu0 0
    %2719 = vmatpush1.bf16.msra.mxu0 %v2231
    %2720 = vmatprep.subr.bf16.mxu0 0
    %2721 = vmatpush1.bf16.msra.mxu0 %v2230
    %2722 = vmatprep.subr.bf16.mxu0 0
    %2723 = vmatpush2.bf16.msra.mxu0 0
    %2724 = vmatprep.subr.bf16.mxu0 0
    %2725 = vmatpush2.bf16.msra.mxu0 0
    %2726 = vmatprep.subr.bf16.mxu0 0
    %2727 = vmatpush2.bf16.msra.mxu0 0
    %2728 = vmatprep.subr.bf16.mxu0 0
    %2729 = vmatpush2.bf16.msra.mxu0 0
    %2730 = vmatprep.subr.bf16.mxu0 0
    %2731 = vmatpush2.bf16.msra.mxu0 0
    %2732 = vmatprep.subr.bf16.mxu0 0
    %2733 = vmatpush2.bf16.msra.mxu0 0
    %2734 = vmatprep.subr.bf16.mxu0 0
    %2735 = vmatpush2.bf16.msra.mxu0 0
    %2736 = vmatprep.subr.bf16.mxu0 0
    %2737 = vmatpush2.bf16.msra.mxu0 0
    %2738 = vmatprep.mubr.bf16.mxu0 0
    %2739 = vmatmul.mubr.bf16.gmra.mxu0 %v2704
    %v2740 = vpop.f32.mrf.mxu0
    %v2741 = vadd.f32 %v2169, %v2740
    %v2742 = vpop.f32.mrf.mxu0
    %v2743 = vpop.f32.mrf.mxu0
    %v2744 = vpop.f32.mrf.mxu0
    %2745 = vdwg.mxu0
    %v2746 = vtanh.pop %v2741
    %v2747 = vxor.u32 %v2741, 2147483648
    %v2748 = vmul.f32 %v2747, 1.442695
    %v2749 = vpow.pop %v2748
    %v2750 = vadd.f32 %v2749, 1.0
    %v2751 = vrcp.pop %v2750
    %v2752 = vmul.f32 1.0, %v2751
    %v2753 = vsel %vm79, %v2746, %v2752
    %v2754 = vmul.f32 %v2753, %v2613
    %2756 = vrot.lane.b32.xlu0 %v2753, 64
    %v2757 = vpop.permute.xlu0 %2756
    %v2759 = vmul.f32 %v2753, %v2757
    %2761 = vrot.lane.b32.xlu0 %v2759, 32
    %v2762 = vpop.permute.xlu0 %2761
    %v2764 = vadd.f32 %v2754, %v2762
    %v2765 = vtanh.pop %v2764
    %2767 = vrot.lane.b32.xlu0 %v2765, 64
    %v2768 = vpop.permute.xlu0 %2767
    %v2770 = vmul.f32 %v2753, %v2768
    %v2771 = vpack.c.bf16 %v2692, %v2692
    %2773 = vrot.lane.b32.xlu0 %v2771, 32
    %v2774 = vpop.permute.xlu0 %2773
    %v2776 = vsel %vm204, %v2774, 0
    %2778 = vmatprep.subr.bf16.mxu0 0
    %2779 = vmatpush1.bf16.msra.mxu0 0
    %2780 = vmatprep.subr.bf16.mxu0 0
    %2781 = vmatpush1.bf16.msra.mxu0 0
    %2782 = vmatprep.subr.bf16.mxu0 0
    %2783 = vmatpush1.bf16.msra.mxu0 0
    %2784 = vmatprep.subr.bf16.mxu0 0
    %2785 = vmatpush1.bf16.msra.mxu0 0
    %2786 = vmatprep.subr.bf16.mxu0 0
    %2787 = vmatpush1.bf16.msra.mxu0 0
    %2788 = vmatprep.subr.bf16.mxu0 0
    %2789 = vmatpush1.bf16.msra.mxu0 0
    %2790 = vmatprep.subr.bf16.mxu0 0
    %2791 = vmatpush1.bf16.msra.mxu0 %v2319
    %2792 = vmatprep.subr.bf16.mxu0 0
    %2793 = vmatpush1.bf16.msra.mxu0 %v2318
    %2794 = vmatprep.subr.bf16.mxu0 0
    %2795 = vmatpush2.bf16.msra.mxu0 0
    %2796 = vmatprep.subr.bf16.mxu0 0
    %2797 = vmatpush2.bf16.msra.mxu0 0
    %2798 = vmatprep.subr.bf16.mxu0 0
    %2799 = vmatpush2.bf16.msra.mxu0 0
    %2800 = vmatprep.subr.bf16.mxu0 0
    %2801 = vmatpush2.bf16.msra.mxu0 0
    %2802 = vmatprep.subr.bf16.mxu0 0
    %2803 = vmatpush2.bf16.msra.mxu0 0
    %2804 = vmatprep.subr.bf16.mxu0 0
    %2805 = vmatpush2.bf16.msra.mxu0 0
    %2806 = vmatprep.subr.bf16.mxu0 0
    %2807 = vmatpush2.bf16.msra.mxu0 0
    %2808 = vmatprep.subr.bf16.mxu0 0
    %2809 = vmatpush2.bf16.msra.mxu0 0
    %2810 = vmatprep.mubr.bf16.mxu0 0
    %2811 = vmatmul.mubr.bf16.gmra.mxu0 %v2776
    %v2812 = vpop.f32.mrf.mxu0
    %v2813 = vadd.f32 0.0, %v2812
    %v2814 = vpop.f32.mrf.mxu0
    %v2815 = vpop.f32.mrf.mxu0
    %v2816 = vpop.f32.mrf.mxu0
    %2817 = vdwg.mxu0
    %v2818 = vadd.f32 %v2159, %v2813
    %v2819 = vtanh.pop %v2818
    %v2820 = vxor.u32 %v2818, 2147483648
    %v2821 = vmul.f32 %v2820, 1.442695
    %v2822 = vpow.pop %v2821
    %v2823 = vadd.f32 %v2822, 1.0
    %v2824 = vrcp.pop %v2823
    %v2825 = vmul.f32 1.0, %v2824
    %v2826 = vsel %vm79, %v2819, %v2825
    %v2827 = vmul.f32 %v2826, %v2686
    %2829 = vrot.lane.b32.xlu0 %v2826, 64
    %v2830 = vpop.permute.xlu0 %2829
    %v2832 = vmul.f32 %v2826, %v2830
    %2834 = vrot.lane.b32.xlu0 %v2832, 32
    %v2835 = vpop.permute.xlu0 %2834
    %v2837 = vadd.f32 %v2827, %v2835
    %v2838 = vtanh.pop %v2837
    %2840 = vrot.lane.b32.xlu0 %v2838, 64
    %v2841 = vpop.permute.xlu0 %2840
    %v2843 = vmul.f32 %v2826, %v2841
    %2845 = vrot.lane.b32.xlu0 %v2843, 32
    %v2846 = vpop.permute.xlu0 %2845
    %2849 = vrot.lane.b32.xlu0 %v2770, 64
    %v2850 = vpop.permute.xlu0 %2849
    %v2852 = vsel %vm204, %v2846, %v2850
    %v2853 = vpack.c.bf16 %v2852, %v2852
    %v2855 = vsel %vm231, %v2853, 0
    %2857 = vmatprep.subr.bf16.mxu0 0
    %2858 = vmatpush1.bf16.msra.mxu0 0
    %2859 = vmatprep.subr.bf16.mxu0 0
    %2860 = vmatpush1.bf16.msra.mxu0 0
    %2861 = vmatprep.subr.bf16.mxu0 0
    %2862 = vmatpush1.bf16.msra.mxu0 0
    %2863 = vmatprep.subr.bf16.mxu0 0
    %2864 = vmatpush1.bf16.msra.mxu0 0
    %2865 = vmatprep.subr.bf16.mxu0 0
    %2866 = vmatpush1.bf16.msra.mxu0 %v2233
    %2867 = vmatprep.subr.bf16.mxu0 0
    %2868 = vmatpush1.bf16.msra.mxu0 %v2232
    %2869 = vmatprep.subr.bf16.mxu0 0
    %2870 = vmatpush1.bf16.msra.mxu0 %v2231
    %2871 = vmatprep.subr.bf16.mxu0 0
    %2872 = vmatpush1.bf16.msra.mxu0 %v2230
    %2873 = vmatprep.subr.bf16.mxu0 0
    %2874 = vmatpush2.bf16.msra.mxu0 0
    %2875 = vmatprep.subr.bf16.mxu0 0
    %2876 = vmatpush2.bf16.msra.mxu0 0
    %2877 = vmatprep.subr.bf16.mxu0 0
    %2878 = vmatpush2.bf16.msra.mxu0 0
    %2879 = vmatprep.subr.bf16.mxu0 0
    %2880 = vmatpush2.bf16.msra.mxu0 0
    %2881 = vmatprep.subr.bf16.mxu0 0
    %2882 = vmatpush2.bf16.msra.mxu0 0
    %2883 = vmatprep.subr.bf16.mxu0 0
    %2884 = vmatpush2.bf16.msra.mxu0 0
    %2885 = vmatprep.subr.bf16.mxu0 0
    %2886 = vmatpush2.bf16.msra.mxu0 0
    %2887 = vmatprep.subr.bf16.mxu0 0
    %2888 = vmatpush2.bf16.msra.mxu0 0
    %2889 = vmatprep.mubr.bf16.mxu0 0
    %2890 = vmatmul.mubr.bf16.gmra.mxu0 %v2855
    %v2891 = vpop.f32.mrf.mxu0
    %v2892 = vadd.f32 %v2169, %v2891
    %v2893 = vpop.f32.mrf.mxu0
    %v2894 = vpop.f32.mrf.mxu0
    %v2895 = vpop.f32.mrf.mxu0
    %2896 = vdwg.mxu0
    %v2897 = vtanh.pop %v2892
    %v2898 = vxor.u32 %v2892, 2147483648
    %v2899 = vmul.f32 %v2898, 1.442695
    %v2900 = vpow.pop %v2899
    %v2901 = vadd.f32 %v2900, 1.0
    %v2902 = vrcp.pop %v2901
    %v2903 = vmul.f32 1.0, %v2902
    %v2904 = vsel %vm79, %v2897, %v2903
    %v2905 = vmul.f32 %v2904, %v2764
    %2907 = vrot.lane.b32.xlu0 %v2904, 64
    %v2908 = vpop.permute.xlu0 %2907
    %v2910 = vmul.f32 %v2904, %v2908
    %2912 = vrot.lane.b32.xlu0 %v2910, 32
    %v2913 = vpop.permute.xlu0 %2912
    %v2915 = vadd.f32 %v2905, %v2913
    %v2916 = vtanh.pop %v2915
    %2918 = vrot.lane.b32.xlu0 %v2916, 64
    %v2919 = vpop.permute.xlu0 %2918
    %v2921 = vmul.f32 %v2904, %v2919
    %v2922 = vpack.c.bf16 %v2843, %v2843
    %2924 = vrot.lane.b32.xlu0 %v2922, 32
    %v2925 = vpop.permute.xlu0 %2924
    %v2927 = vsel %vm204, %v2925, 0
    %2929 = vmatprep.subr.bf16.mxu0 0
    %2930 = vmatpush1.bf16.msra.mxu0 0
    %2931 = vmatprep.subr.bf16.mxu0 0
    %2932 = vmatpush1.bf16.msra.mxu0 0
    %2933 = vmatprep.subr.bf16.mxu0 0
    %2934 = vmatpush1.bf16.msra.mxu0 0
    %2935 = vmatprep.subr.bf16.mxu0 0
    %2936 = vmatpush1.bf16.msra.mxu0 0
    %2937 = vmatprep.subr.bf16.mxu0 0
    %2938 = vmatpush1.bf16.msra.mxu0 0
    %2939 = vmatprep.subr.bf16.mxu0 0
    %2940 = vmatpush1.bf16.msra.mxu0 0
    %2941 = vmatprep.subr.bf16.mxu0 0
    %2942 = vmatpush1.bf16.msra.mxu0 %v2319
    %2943 = vmatprep.subr.bf16.mxu0 0
    %2944 = vmatpush1.bf16.msra.mxu0 %v2318
    %2945 = vmatprep.subr.bf16.mxu0 0
    %2946 = vmatpush2.bf16.msra.mxu0 0
    %2947 = vmatprep.subr.bf16.mxu0 0
    %2948 = vmatpush2.bf16.msra.mxu0 0
    %2949 = vmatprep.subr.bf16.mxu0 0
    %2950 = vmatpush2.bf16.msra.mxu0 0
    %2951 = vmatprep.subr.bf16.mxu0 0
    %2952 = vmatpush2.bf16.msra.mxu0 0
    %2953 = vmatprep.subr.bf16.mxu0 0
    %2954 = vmatpush2.bf16.msra.mxu0 0
    %2955 = vmatprep.subr.bf16.mxu0 0
    %2956 = vmatpush2.bf16.msra.mxu0 0
    %2957 = vmatprep.subr.bf16.mxu0 0
    %2958 = vmatpush2.bf16.msra.mxu0 0
    %2959 = vmatprep.subr.bf16.mxu0 0
    %2960 = vmatpush2.bf16.msra.mxu0 0
    %2961 = vmatprep.mubr.bf16.mxu0 0
    %2962 = vmatmul.mubr.bf16.gmra.mxu0 %v2927
    %v2963 = vpop.f32.mrf.mxu0
    %v2964 = vadd.f32 0.0, %v2963
    %v2965 = vpop.f32.mrf.mxu0
    %v2966 = vpop.f32.mrf.mxu0
    %v2967 = vpop.f32.mrf.mxu0
    %2968 = vdwg.mxu0
    %v2969 = vadd.f32 %v2159, %v2964
    %v2970 = vtanh.pop %v2969
    %v2971 = vxor.u32 %v2969, 2147483648
    %v2972 = vmul.f32 %v2971, 1.442695
    %v2973 = vpow.pop %v2972
    %v2974 = vadd.f32 %v2973, 1.0
    %v2975 = vrcp.pop %v2974
    %v2976 = vmul.f32 1.0, %v2975
    %v2977 = vsel %vm79, %v2970, %v2976
    %v2978 = vmul.f32 %v2977, %v2837
    %2980 = vrot.lane.b32.xlu0 %v2977, 64
    %v2981 = vpop.permute.xlu0 %2980
    %v2983 = vmul.f32 %v2977, %v2981
    %2985 = vrot.lane.b32.xlu0 %v2983, 32
    %v2986 = vpop.permute.xlu0 %2985
    %v2988 = vadd.f32 %v2978, %v2986
    %v2989 = vtanh.pop %v2988
    %2991 = vrot.lane.b32.xlu0 %v2989, 64
    %v2992 = vpop.permute.xlu0 %2991
    %v2994 = vmul.f32 %v2977, %v2992
    %2996 = vrot.lane.b32.xlu0 %v2994, 32
    %v2997 = vpop.permute.xlu0 %2996
    %3000 = vrot.lane.b32.xlu0 %v2921, 64
    %v3001 = vpop.permute.xlu0 %3000
    %v3003 = vsel %vm204, %v2997, %v3001
    %v3004 = vpack.c.bf16 %v3003, %v3003
    %v3006 = vsel %vm231, %v3004, 0
    %3008 = vmatprep.subr.bf16.mxu0 0
    %3009 = vmatpush1.bf16.msra.mxu0 0
    %3010 = vmatprep.subr.bf16.mxu0 0
    %3011 = vmatpush1.bf16.msra.mxu0 0
    %3012 = vmatprep.subr.bf16.mxu0 0
    %3013 = vmatpush1.bf16.msra.mxu0 0
    %3014 = vmatprep.subr.bf16.mxu0 0
    %3015 = vmatpush1.bf16.msra.mxu0 0
    %3016 = vmatprep.subr.bf16.mxu0 0
    %3017 = vmatpush1.bf16.msra.mxu0 %v2233
    %3018 = vmatprep.subr.bf16.mxu0 0
    %3019 = vmatpush1.bf16.msra.mxu0 %v2232
    %3020 = vmatprep.subr.bf16.mxu0 0
    %3021 = vmatpush1.bf16.msra.mxu0 %v2231
    %3022 = vmatprep.subr.bf16.mxu0 0
    %3023 = vmatpush1.bf16.msra.mxu0 %v2230
    %3024 = vmatprep.subr.bf16.mxu0 0
    %3025 = vmatpush2.bf16.msra.mxu0 0
    %3026 = vmatprep.subr.bf16.mxu0 0
    %3027 = vmatpush2.bf16.msra.mxu0 0
    %3028 = vmatprep.subr.bf16.mxu0 0
    %3029 = vmatpush2.bf16.msra.mxu0 0
    %3030 = vmatprep.subr.bf16.mxu0 0
    %3031 = vmatpush2.bf16.msra.mxu0 0
    %3032 = vmatprep.subr.bf16.mxu0 0
    %3033 = vmatpush2.bf16.msra.mxu0 0
    %3034 = vmatprep.subr.bf16.mxu0 0
    %3035 = vmatpush2.bf16.msra.mxu0 0
    %3036 = vmatprep.subr.bf16.mxu0 0
    %3037 = vmatpush2.bf16.msra.mxu0 0
    %3038 = vmatprep.subr.bf16.mxu0 0
    %3039 = vmatpush2.bf16.msra.mxu0 0
    %3040 = vmatprep.mubr.bf16.mxu0 0
    %3041 = vmatmul.mubr.bf16.gmra.mxu0 %v3006
    %v3042 = vpop.f32.mrf.mxu0
    %v3043 = vadd.f32 %v2169, %v3042
    %v3044 = vpop.f32.mrf.mxu0
    %v3045 = vpop.f32.mrf.mxu0
    %v3046 = vpop.f32.mrf.mxu0
    %3047 = vdwg.mxu0
    %v3048 = vtanh.pop %v3043
    %v3049 = vxor.u32 %v3043, 2147483648
    %v3050 = vmul.f32 %v3049, 1.442695
    %v3051 = vpow.pop %v3050
    %v3052 = vadd.f32 %v3051, 1.0
    %v3053 = vrcp.pop %v3052
    %v3054 = vmul.f32 1.0, %v3053
    %v3055 = vsel %vm79, %v3048, %v3054
    %v3056 = vmul.f32 %v3055, %v2915
    %3058 = vrot.lane.b32.xlu0 %v3055, 64
    %v3059 = vpop.permute.xlu0 %3058
    %v3061 = vmul.f32 %v3055, %v3059
    %3063 = vrot.lane.b32.xlu0 %v3061, 32
    %v3064 = vpop.permute.xlu0 %3063
    %v3066 = vadd.f32 %v3056, %v3064
    %v3067 = vtanh.pop %v3066
    %3069 = vrot.lane.b32.xlu0 %v3067, 64
    %v3070 = vpop.permute.xlu0 %3069
    %v3072 = vmul.f32 %v3055, %v3070
    %v3073 = vpack.c.bf16 %v2994, %v2994
    %3075 = vrot.lane.b32.xlu0 %v3073, 32
    %v3076 = vpop.permute.xlu0 %3075
    %v3078 = vsel %vm204, %v3076, 0
    %3080 = vmatprep.subr.bf16.mxu0 0
    %3081 = vmatpush1.bf16.msra.mxu0 0
    %3082 = vmatprep.subr.bf16.mxu0 0
    %3083 = vmatpush1.bf16.msra.mxu0 0
    %3084 = vmatprep.subr.bf16.mxu0 0
    %3085 = vmatpush1.bf16.msra.mxu0 0
    %3086 = vmatprep.subr.bf16.mxu0 0
    %3087 = vmatpush1.bf16.msra.mxu0 0
    %3088 = vmatprep.subr.bf16.mxu0 0
    %3089 = vmatpush1.bf16.msra.mxu0 0
    %3090 = vmatprep.subr.bf16.mxu0 0
    %3091 = vmatpush1.bf16.msra.mxu0 0
    %3092 = vmatprep.subr.bf16.mxu0 0
    %3093 = vmatpush1.bf16.msra.mxu0 %v2319
    %3094 = vmatprep.subr.bf16.mxu0 0
    %3095 = vmatpush1.bf16.msra.mxu0 %v2318
    %3096 = vmatprep.subr.bf16.mxu0 0
    %3097 = vmatpush2.bf16.msra.mxu0 0
    %3098 = vmatprep.subr.bf16.mxu0 0
    %3099 = vmatpush2.bf16.msra.mxu0 0
    %3100 = vmatprep.subr.bf16.mxu0 0
    %3101 = vmatpush2.bf16.msra.mxu0 0
    %3102 = vmatprep.subr.bf16.mxu0 0
    %3103 = vmatpush2.bf16.msra.mxu0 0
    %3104 = vmatprep.subr.bf16.mxu0 0
    %3105 = vmatpush2.bf16.msra.mxu0 0
    %3106 = vmatprep.subr.bf16.mxu0 0
    %3107 = vmatpush2.bf16.msra.mxu0 0
    %3108 = vmatprep.subr.bf16.mxu0 0
    %3109 = vmatpush2.bf16.msra.mxu0 0
    %3110 = vmatprep.subr.bf16.mxu0 0
    %3111 = vmatpush2.bf16.msra.mxu0 0
    %3112 = vmatprep.mubr.bf16.mxu0 0
    %3113 = vmatmul.mubr.bf16.gmra.mxu0 %v3078
    %v3114 = vpop.f32.mrf.mxu0
    %v3115 = vadd.f32 0.0, %v3114
    %v3116 = vpop.f32.mrf.mxu0
    %v3117 = vpop.f32.mrf.mxu0
    %v3118 = vpop.f32.mrf.mxu0
    %3119 = vdwg.mxu0
    %v3120 = vadd.f32 %v2159, %v3115
    %v3121 = vtanh.pop %v3120
    %v3122 = vxor.u32 %v3120, 2147483648
    %v3123 = vmul.f32 %v3122, 1.442695
    %v3124 = vpow.pop %v3123
    %v3125 = vadd.f32 %v3124, 1.0
    %v3126 = vrcp.pop %v3125
    %v3127 = vmul.f32 1.0, %v3126
    %v3128 = vsel %vm79, %v3121, %v3127
    %v3129 = vmul.f32 %v3128, %v2988
    %3131 = vrot.lane.b32.xlu0 %v3128, 64
    %v3132 = vpop.permute.xlu0 %3131
    %v3134 = vmul.f32 %v3128, %v3132
    %3136 = vrot.lane.b32.xlu0 %v3134, 32
    %v3137 = vpop.permute.xlu0 %3136
    %v3139 = vadd.f32 %v3129, %v3137
    %v3140 = vtanh.pop %v3139
    %3142 = vrot.lane.b32.xlu0 %v3140, 64
    %v3143 = vpop.permute.xlu0 %3142
    %v3145 = vmul.f32 %v3128, %v3143
    %3147 = vrot.lane.b32.xlu0 %v3145, 32
    %v3148 = vpop.permute.xlu0 %3147
    %3151 = vrot.lane.b32.xlu0 %v3072, 64
    %v3152 = vpop.permute.xlu0 %3151
    %v3154 = vsel %vm204, %v3148, %v3152
    %v3155 = vpack.c.bf16 %v3154, %v3154
    %v3157 = vsel %vm231, %v3155, 0
    %3159 = vmatprep.subr.bf16.mxu0 0
    %3160 = vmatpush1.bf16.msra.mxu0 0
    %3161 = vmatprep.subr.bf16.mxu0 0
    %3162 = vmatpush1.bf16.msra.mxu0 0
    %3163 = vmatprep.subr.bf16.mxu0 0
    %3164 = vmatpush1.bf16.msra.mxu0 0
    %3165 = vmatprep.subr.bf16.mxu0 0
    %3166 = vmatpush1.bf16.msra.mxu0 0
    %3167 = vmatprep.subr.bf16.mxu0 0
    %3168 = vmatpush1.bf16.msra.mxu0 %v2233
    %3169 = vmatprep.subr.bf16.mxu0 0
    %3170 = vmatpush1.bf16.msra.mxu0 %v2232
    %3171 = vmatprep.subr.bf16.mxu0 0
    %3172 = vmatpush1.bf16.msra.mxu0 %v2231
    %3173 = vmatprep.subr.bf16.mxu0 0
    %3174 = vmatpush1.bf16.msra.mxu0 %v2230
    %3175 = vmatprep.subr.bf16.mxu0 0
    %3176 = vmatpush2.bf16.msra.mxu0 0
    %3177 = vmatprep.subr.bf16.mxu0 0
    %3178 = vmatpush2.bf16.msra.mxu0 0
    %3179 = vmatprep.subr.bf16.mxu0 0
    %3180 = vmatpush2.bf16.msra.mxu0 0
    %3181 = vmatprep.subr.bf16.mxu0 0
    %3182 = vmatpush2.bf16.msra.mxu0 0
    %3183 = vmatprep.subr.bf16.mxu0 0
    %3184 = vmatpush2.bf16.msra.mxu0 0
    %3185 = vmatprep.subr.bf16.mxu0 0
    %3186 = vmatpush2.bf16.msra.mxu0 0
    %3187 = vmatprep.subr.bf16.mxu0 0
    %3188 = vmatpush2.bf16.msra.mxu0 0
    %3189 = vmatprep.subr.bf16.mxu0 0
    %3190 = vmatpush2.bf16.msra.mxu0 0
    %3191 = vmatprep.mubr.bf16.mxu0 0
    %3192 = vmatmul.mubr.bf16.gmra.mxu0 %v3157
    %v3193 = vpop.f32.mrf.mxu0
    %v3194 = vadd.f32 %v2169, %v3193
    %v3195 = vpop.f32.mrf.mxu0
    %v3196 = vpop.f32.mrf.mxu0
    %v3197 = vpop.f32.mrf.mxu0
    %3198 = vdwg.mxu0
    %v3199 = vtanh.pop %v3194
    %v3200 = vxor.u32 %v3194, 2147483648
    %v3201 = vmul.f32 %v3200, 1.442695
    %v3202 = vpow.pop %v3201
    %v3203 = vadd.f32 %v3202, 1.0
    %v3204 = vrcp.pop %v3203
    %v3205 = vmul.f32 1.0, %v3204
    %v3206 = vsel %vm79, %v3199, %v3205
    %v3207 = vmul.f32 %v3206, %v3066
    %3209 = vrot.lane.b32.xlu0 %v3206, 64
    %v3210 = vpop.permute.xlu0 %3209
    %v3212 = vmul.f32 %v3206, %v3210
    %3214 = vrot.lane.b32.xlu0 %v3212, 32
    %v3215 = vpop.permute.xlu0 %3214
    %v3217 = vadd.f32 %v3207, %v3215
    %v3218 = vtanh.pop %v3217
    %3220 = vrot.lane.b32.xlu0 %v3218, 64
    %v3221 = vpop.permute.xlu0 %3220
    %v3223 = vmul.f32 %v3206, %v3221
    %v3224 = vpack.c.bf16 %v3145, %v3145
    %3226 = vrot.lane.b32.xlu0 %v3224, 32
    %v3227 = vpop.permute.xlu0 %3226
    %v3229 = vsel %vm204, %v3227, 0
    %3231 = vmatprep.subr.bf16.mxu0 0
    %3232 = vmatpush1.bf16.msra.mxu0 0
    %3233 = vmatprep.subr.bf16.mxu0 0
    %3234 = vmatpush1.bf16.msra.mxu0 0
    %3235 = vmatprep.subr.bf16.mxu0 0
    %3236 = vmatpush1.bf16.msra.mxu0 0
    %3237 = vmatprep.subr.bf16.mxu0 0
    %3238 = vmatpush1.bf16.msra.mxu0 0
    %3239 = vmatprep.subr.bf16.mxu0 0
    %3240 = vmatpush1.bf16.msra.mxu0 0
    %3241 = vmatprep.subr.bf16.mxu0 0
    %3242 = vmatpush1.bf16.msra.mxu0 0
    %3243 = vmatprep.subr.bf16.mxu0 0
    %3244 = vmatpush1.bf16.msra.mxu0 %v2319
    %3245 = vmatprep.subr.bf16.mxu0 0
    %3246 = vmatpush1.bf16.msra.mxu0 %v2318
    %3247 = vmatprep.subr.bf16.mxu0 0
    %3248 = vmatpush2.bf16.msra.mxu0 0
    %3249 = vmatprep.subr.bf16.mxu0 0
    %3250 = vmatpush2.bf16.msra.mxu0 0
    %3251 = vmatprep.subr.bf16.mxu0 0
    %3252 = vmatpush2.bf16.msra.mxu0 0
    %3253 = vmatprep.subr.bf16.mxu0 0
    %3254 = vmatpush2.bf16.msra.mxu0 0
    %3255 = vmatprep.subr.bf16.mxu0 0
    %3256 = vmatpush2.bf16.msra.mxu0 0
    %3257 = vmatprep.subr.bf16.mxu0 0
    %3258 = vmatpush2.bf16.msra.mxu0 0
    %3259 = vmatprep.subr.bf16.mxu0 0
    %3260 = vmatpush2.bf16.msra.mxu0 0
    %3261 = vmatprep.subr.bf16.mxu0 0
    %3262 = vmatpush2.bf16.msra.mxu0 0
    %3263 = vmatprep.mubr.bf16.mxu0 0
    %3264 = vmatmul.mubr.bf16.gmra.mxu0 %v3229
    %v3265 = vpop.f32.mrf.mxu0
    %v3266 = vadd.f32 0.0, %v3265
    %v3267 = vpop.f32.mrf.mxu0
    %v3268 = vpop.f32.mrf.mxu0
    %v3269 = vpop.f32.mrf.mxu0
    %3270 = vdwg.mxu0
    %v3271 = vadd.f32 %v2159, %v3266
    %v3272 = vtanh.pop %v3271
    %v3273 = vxor.u32 %v3271, 2147483648
    %v3274 = vmul.f32 %v3273, 1.442695
    %v3275 = vpow.pop %v3274
    %v3276 = vadd.f32 %v3275, 1.0
    %v3277 = vrcp.pop %v3276
    %v3278 = vmul.f32 1.0, %v3277
    %v3279 = vsel %vm79, %v3272, %v3278
    %v3280 = vmul.f32 %v3279, %v3139
    %3282 = vrot.lane.b32.xlu0 %v3279, 64
    %v3283 = vpop.permute.xlu0 %3282
    %v3285 = vmul.f32 %v3279, %v3283
    %3287 = vrot.lane.b32.xlu0 %v3285, 32
    %v3288 = vpop.permute.xlu0 %3287
    %v3290 = vadd.f32 %v3280, %v3288
    %v3291 = vtanh.pop %v3290
    %3293 = vrot.lane.b32.xlu0 %v3291, 64
    %v3294 = vpop.permute.xlu0 %3293
    %v3296 = vmul.f32 %v3279, %v3294
    %3298 = vrot.lane.b32.xlu0 %v3296, 32
    %v3299 = vpop.permute.xlu0 %3298
    %3302 = vrot.lane.b32.xlu0 %v3223, 64
    %v3303 = vpop.permute.xlu0 %3302
    %v3305 = vsel %vm204, %v3299, %v3303
    %v3306 = vpack.c.bf16 %v3305, %v3305
    %v3308 = vsel %vm231, %v3306, 0
    %3310 = vmatprep.subr.bf16.mxu0 0
    %3311 = vmatpush1.bf16.msra.mxu0 0
    %3312 = vmatprep.subr.bf16.mxu0 0
    %3313 = vmatpush1.bf16.msra.mxu0 0
    %3314 = vmatprep.subr.bf16.mxu0 0
    %3315 = vmatpush1.bf16.msra.mxu0 0
    %3316 = vmatprep.subr.bf16.mxu0 0
    %3317 = vmatpush1.bf16.msra.mxu0 0
    %3318 = vmatprep.subr.bf16.mxu0 0
    %3319 = vmatpush1.bf16.msra.mxu0 %v2233
    %3320 = vmatprep.subr.bf16.mxu0 0
    %3321 = vmatpush1.bf16.msra.mxu0 %v2232
    %3322 = vmatprep.subr.bf16.mxu0 0
    %3323 = vmatpush1.bf16.msra.mxu0 %v2231
    %3324 = vmatprep.subr.bf16.mxu0 0
    %3325 = vmatpush1.bf16.msra.mxu0 %v2230
    %3326 = vmatprep.subr.bf16.mxu0 0
    %3327 = vmatpush2.bf16.msra.mxu0 0
    %3328 = vmatprep.subr.bf16.mxu0 0
    %3329 = vmatpush2.bf16.msra.mxu0 0
    %3330 = vmatprep.subr.bf16.mxu0 0
    %3331 = vmatpush2.bf16.msra.mxu0 0
    %3332 = vmatprep.subr.bf16.mxu0 0
    %3333 = vmatpush2.bf16.msra.mxu0 0
    %3334 = vmatprep.subr.bf16.mxu0 0
    %3335 = vmatpush2.bf16.msra.mxu0 0
    %3336 = vmatprep.subr.bf16.mxu0 0
    %3337 = vmatpush2.bf16.msra.mxu0 0
    %3338 = vmatprep.subr.bf16.mxu0 0
    %3339 = vmatpush2.bf16.msra.mxu0 0
    %3340 = vmatprep.subr.bf16.mxu0 0
    %3341 = vmatpush2.bf16.msra.mxu0 0
    %3342 = vmatprep.mubr.bf16.mxu0 0
    %3343 = vmatmul.mubr.bf16.gmra.mxu0 %v3308
    %v3344 = vpop.f32.mrf.mxu0
    %v3345 = vadd.f32 %v2169, %v3344
    %v3346 = vpop.f32.mrf.mxu0
    %v3347 = vpop.f32.mrf.mxu0
    %v3348 = vpop.f32.mrf.mxu0
    %3349 = vdwg.mxu0
    %v3350 = vtanh.pop %v3345
    %v3351 = vxor.u32 %v3345, 2147483648
    %v3352 = vmul.f32 %v3351, 1.442695
    %v3353 = vpow.pop %v3352
    %v3354 = vadd.f32 %v3353, 1.0
    %v3355 = vrcp.pop %v3354
    %v3356 = vmul.f32 1.0, %v3355
    %v3357 = vsel %vm79, %v3350, %v3356
    %v3358 = vmul.f32 %v3357, %v3217
    %3360 = vrot.lane.b32.xlu0 %v3357, 64
    %v3361 = vpop.permute.xlu0 %3360
    %v3363 = vmul.f32 %v3357, %v3361
    %3365 = vrot.lane.b32.xlu0 %v3363, 32
    %v3366 = vpop.permute.xlu0 %3365
    %v3368 = vadd.f32 %v3358, %v3366
    %v3369 = vtanh.pop %v3368
    %3371 = vrot.lane.b32.xlu0 %v3369, 64
    %v3372 = vpop.permute.xlu0 %3371
    %v3374 = vmul.f32 %v3357, %v3372
    %v3376 = vunpack.c.l.s4 1966171168
    %v3377 = vunpack.c.0.s8 %v3376
    %v3378 = vlaneseq
    %v3379 = vshrl.u32 %v3378, 7
    %v3380 = vsub.s32 %v3377, %v3379
    %v3381 = vrot.slane %v2305, %v3380
    %v3382 = vcombine.high %v3381, %v3381
    %v3384 = vunpack.c.l.s4 1966171168
    %v3385 = vunpack.c.0.s8 %v3384
    %v3386 = vlaneseq
    %v3387 = vshrl.u32 %v3386, 7
    %v3388 = vsub.s32 %v3385, %v3387
    %v3389 = vrot.slane %v3381, %v3388
    %v3391 = vunpack.c.l.s4 1966171168
    %v3392 = vunpack.c.0.s8 %v3391
    %v3393 = vlaneseq
    %v3394 = vshrl.u32 %v3393, 7
    %v3395 = vsub.s32 %v3392, %v3394
    %v3396 = vrot.slane %v3382, %v3395
    %v3400 = vunpack.c.l.s4 1966171168
    %v3401 = vunpack.c.0.s8 %v3400
    %v3402 = vlaneseq
    %v3403 = vshrl.u32 %v3402, 7
    %v3404 = vsub.s32 %v3401, %v3403
    %v3405 = vrot.slane %v2468, %v3404
    %v3406 = vcombine.high %v3405, %v3405
    %v3408 = vunpack.c.l.s4 1966171168
    %v3409 = vunpack.c.0.s8 %v3408
    %v3410 = vlaneseq
    %v3411 = vshrl.u32 %v3410, 7
    %v3412 = vsub.s32 %v3409, %v3411
    %v3413 = vrot.slane %v3405, %v3412
    %v3415 = vunpack.c.l.s4 1966171168
    %v3416 = vunpack.c.0.s8 %v3415
    %v3417 = vlaneseq
    %v3418 = vshrl.u32 %v3417, 7
    %v3419 = vsub.s32 %v3416, %v3418
    %v3420 = vrot.slane %v3406, %v3419
    %v3422 = vunpack.c.l.s4 1966171168
    %v3423 = vunpack.c.0.s8 %v3422
    %v3424 = vlaneseq
    %v3425 = vshrl.u32 %v3424, 7
    %v3426 = vsub.s32 %v3423, %v3425
    %v3427 = vrot.slane %v2619, %v3426
    %v3428 = vcombine.high %v3427, %v3427
    %v3430 = vunpack.c.l.s4 1966171168
    %v3431 = vunpack.c.0.s8 %v3430
    %v3432 = vlaneseq
    %v3433 = vshrl.u32 %v3432, 7
    %v3434 = vsub.s32 %v3431, %v3433
    %v3435 = vrot.slane %v3427, %v3434
    %v3437 = vunpack.c.l.s4 1966171168
    %v3438 = vunpack.c.0.s8 %v3437
    %v3439 = vlaneseq
    %v3440 = vshrl.u32 %v3439, 7
    %v3441 = vsub.s32 %v3438, %v3440
    %v3442 = vrot.slane %v3428, %v3441
    %v3444 = vunpack.c.l.s4 1966171168
    %v3445 = vunpack.c.0.s8 %v3444
    %v3446 = vlaneseq
    %v3447 = vshrl.u32 %v3446, 7
    %v3448 = vsub.s32 %v3445, %v3447
    %v3449 = vrot.slane %v2770, %v3448
    %v3450 = vcombine.high %v3449, %v3449
    %v3452 = vunpack.c.l.s4 1966171168
    %v3453 = vunpack.c.0.s8 %v3452
    %v3454 = vlaneseq
    %v3455 = vshrl.u32 %v3454, 7
    %v3456 = vsub.s32 %v3453, %v3455
    %v3457 = vrot.slane %v3449, %v3456
    %v3459 = vunpack.c.l.s4 1966171168
    %v3460 = vunpack.c.0.s8 %v3459
    %v3461 = vlaneseq
    %v3462 = vshrl.u32 %v3461, 7
    %v3463 = vsub.s32 %v3460, %v3462
    %v3464 = vrot.slane %v3450, %v3463
    %v3466 = vunpack.c.l.s4 1966171168
    %v3467 = vunpack.c.0.s8 %v3466
    %v3468 = vlaneseq
    %v3469 = vshrl.u32 %v3468, 7
    %v3470 = vsub.s32 %v3467, %v3469
    %v3471 = vrot.slane %v2921, %v3470
    %v3472 = vcombine.high %v3471, %v3471
    %v3474 = vunpack.c.l.s4 1966171168
    %v3475 = vunpack.c.0.s8 %v3474
    %v3476 = vlaneseq
    %v3477 = vshrl.u32 %v3476, 7
    %v3478 = vsub.s32 %v3475, %v3477
    %v3479 = vrot.slane %v3471, %v3478
    %v3481 = vunpack.c.l.s4 1966171168
    %v3482 = vunpack.c.0.s8 %v3481
    %v3483 = vlaneseq
    %v3484 = vshrl.u32 %v3483, 7
    %v3485 = vsub.s32 %v3482, %v3484
    %v3486 = vrot.slane %v3472, %v3485
    %v3488 = vunpack.c.l.s4 1966171168
    %v3489 = vunpack.c.0.s8 %v3488
    %v3490 = vlaneseq
    %v3491 = vshrl.u32 %v3490, 7
    %v3492 = vsub.s32 %v3489, %v3491
    %v3493 = vrot.slane %v3072, %v3492
    %v3494 = vcombine.high %v3493, %v3493
    %v3496 = vunpack.c.l.s4 1966171168
    %v3497 = vunpack.c.0.s8 %v3496
    %v3498 = vlaneseq
    %v3499 = vshrl.u32 %v3498, 7
    %v3500 = vsub.s32 %v3497, %v3499
    %v3501 = vrot.slane %v3493, %v3500
    %v3503 = vunpack.c.l.s4 1966171168
    %v3504 = vunpack.c.0.s8 %v3503
    %v3505 = vlaneseq
    %v3506 = vshrl.u32 %v3505, 7
    %v3507 = vsub.s32 %v3504, %v3506
    %v3508 = vrot.slane %v3494, %v3507
    %v3510 = vunpack.c.l.s4 1966171168
    %v3511 = vunpack.c.0.s8 %v3510
    %v3512 = vlaneseq
    %v3513 = vshrl.u32 %v3512, 7
    %v3514 = vsub.s32 %v3511, %v3513
    %v3515 = vrot.slane %v3223, %v3514
    %v3516 = vcombine.high %v3515, %v3515
    %v3518 = vunpack.c.l.s4 1966171168
    %v3519 = vunpack.c.0.s8 %v3518
    %v3520 = vlaneseq
    %v3521 = vshrl.u32 %v3520, 7
    %v3522 = vsub.s32 %v3519, %v3521
    %v3523 = vrot.slane %v3515, %v3522
    %v3525 = vunpack.c.l.s4 1966171168
    %v3526 = vunpack.c.0.s8 %v3525
    %v3527 = vlaneseq
    %v3528 = vshrl.u32 %v3527, 7
    %v3529 = vsub.s32 %v3526, %v3528
    %v3530 = vrot.slane %v3516, %v3529
    %v3533 = vunpack.c.l.s4 1966171168
    %v3534 = vunpack.c.0.s8 %v3533
    %v3535 = vlaneseq
    %v3536 = vshrl.u32 %v3535, 7
    %v3537 = vsub.s32 %v3534, %v3536
    %v3538 = vrot.slane %v3374, %v3537
    %v3539 = vcombine.high %v3538, %v3538
    %v3541 = vunpack.c.l.s4 1966171168
    %v3542 = vunpack.c.0.s8 %v3541
    %v3543 = vlaneseq
    %v3544 = vshrl.u32 %v3543, 7
    %v3545 = vsub.s32 %v3542, %v3544
    %v3546 = vrot.slane %v3538, %v3545
    %v3548 = vunpack.c.l.s4 1966171168
    %v3549 = vunpack.c.0.s8 %v3548
    %v3550 = vlaneseq
    %v3551 = vshrl.u32 %v3550, 7
    %v3552 = vsub.s32 %v3549, %v3551
    %v3553 = vrot.slane %v3539, %v3552
    %v3554 = vlaneseq
    %v3555 = vshrl.u32 %v3554, 7
    %v3556 = vsub.s32 0, %v3555
    %v3557 = vrot.slane %v3413, %v3556
    %v3558 = vlaneseq
    %v3559 = vshrl.u32 %v3558, 7
    %v3560 = vsub.s32 0, %v3559
    %v3561 = vrot.slane %v3420, %v3560
    %v3564 = vlaneseq
    %v3565 = vshrl.u32 %v3564, 7
    %v3566 = vsub.s32 0, %v3565
    %v3567 = vrot.slane %v3435, %v3566
    %v3568 = vlaneseq
    %v3569 = vshrl.u32 %v3568, 7
    %v3570 = vsub.s32 0, %v3569
    %v3571 = vrot.slane %v3442, %v3570
    %v3574 = vlaneseq
    %v3575 = vshrl.u32 %v3574, 7
    %v3576 = vsub.s32 0, %v3575
    %v3577 = vrot.slane %v3457, %v3576
    %v3578 = vlaneseq
    %v3579 = vshrl.u32 %v3578, 7
    %v3580 = vsub.s32 0, %v3579
    %v3581 = vrot.slane %v3464, %v3580
    %v3584 = vlaneseq
    %v3585 = vshrl.u32 %v3584, 7
    %v3586 = vsub.s32 0, %v3585
    %v3587 = vrot.slane %v3479, %v3586
    %v3588 = vlaneseq
    %v3589 = vshrl.u32 %v3588, 7
    %v3590 = vsub.s32 0, %v3589
    %v3591 = vrot.slane %v3486, %v3590
    %v3594 = vlaneseq
    %v3595 = vshrl.u32 %v3594, 7
    %v3596 = vsub.s32 0, %v3595
    %v3597 = vrot.slane %v3501, %v3596
    %v3598 = vlaneseq
    %v3599 = vshrl.u32 %v3598, 7
    %v3600 = vsub.s32 0, %v3599
    %v3601 = vrot.slane %v3508, %v3600
    %v3604 = vlaneseq
    %v3605 = vshrl.u32 %v3604, 7
    %v3606 = vsub.s32 0, %v3605
    %v3607 = vrot.slane %v3523, %v3606
    %v3608 = vlaneseq
    %v3609 = vshrl.u32 %v3608, 7
    %v3610 = vsub.s32 0, %v3609
    %v3611 = vrot.slane %v3530, %v3610
    %v3614 = vlaneseq
    %v3615 = vshrl.u32 %v3614, 7
    %v3616 = vsub.s32 0, %v3615
    %v3617 = vrot.slane %v3546, %v3616
    %v3618 = vlaneseq
    %v3619 = vshrl.u32 %v3618, 7
    %v3620 = vsub.s32 0, %v3619
    %v3621 = vrot.slane %v3553, %v3620
    %v3624 = vsel %vm1790, %v3389, %v3557
    %v3625 = vsel %vm1790, %v3396, %v3561
    %v3626 = vsel %vm93, %v3624, %v3567
    %v3627 = vsel %vm93, %v3625, %v3571
    %v3628 = vsel %vm1795, %v3626, %v3577
    %v3629 = vsel %vm1795, %v3627, %v3581
    %v3630 = vsel %vm1798, %v3628, %v3587
    %v3631 = vsel %vm1798, %v3629, %v3591
    %v3632 = vsel %vm1801, %v3630, %v3597
    %v3633 = vsel %vm1801, %v3631, %v3601
    %v3634 = vsel %vm1804, %v3632, %v3607
    %v3635 = vsel %vm1804, %v3633, %v3611
    %v3636 = vsel %vm1807, %v3634, %v3617
    %v3637 = vsel %vm1807, %v3635, %v3621
    %v3638 = vpack.c.bf16 %v3637, %v3636
    %v3639 = vld [vmem:[%s18] sm:$0xf]
    %v3640 = vld [vmem:[%s18 + $0x4] sm:$0xf]
    %v3641 = vld [vmem:[%s18 + $0x8] sm:$0xf]
    %v3642 = vld [vmem:[%s18 + $0xc] sm:$0xf]
    %v3643 = vld [vmem:[%s19] sm:$0x1]
    %v3645 = vlaneseq
    %v3646 = vshrl.u32 %v3645, 7
    %v3647 = vsub.s32 0, %v3646
    %v3648 = vrot.slane %v3643, %v3647
    %3651 = vrot.lane.b32.xlu0 %v3638, 32
    %v3652 = vpop.permute.xlu0 %3651
    %v3657 = vunpack.c.l.b16 %v3639
    %v3658 = vunpack.c.l.b16 %v3640
    %v3659 = vunpack.c.l.b16 %v3641
    %v3660 = vunpack.c.l.b16 %v3642
    %v3661 = vpack.c.b16 %v3658, %v3657
    %v3662 = vpack.c.b16 %v3660, %v3659
    %v3666 = vsel %vm204, %v3652, 0
    %3668 = vmatprep.subr.bf16.mxu0 0
    %3669 = vmatpush1.bf16.msra.mxu0 0
    %3670 = vmatprep.subr.bf16.mxu0 0
    %3671 = vmatpush1.bf16.msra.mxu0 0
    %3672 = vmatprep.subr.bf16.mxu0 0
    %3673 = vmatpush1.bf16.msra.mxu0 0
    %3674 = vmatprep.subr.bf16.mxu0 0
    %3675 = vmatpush1.bf16.msra.mxu0 0
    %3676 = vmatprep.subr.bf16.mxu0 0
    %3677 = vmatpush1.bf16.msra.mxu0 0
    %3678 = vmatprep.subr.bf16.mxu0 0
    %3679 = vmatpush1.bf16.msra.mxu0 0
    %3680 = vmatprep.subr.bf16.mxu0 0
    %3681 = vmatpush1.bf16.msra.mxu0 %v3662
    %3682 = vmatprep.subr.bf16.mxu0 0
    %3683 = vmatpush1.bf16.msra.mxu0 %v3661
    %3684 = vmatprep.subr.bf16.mxu0 0
    %3685 = vmatpush2.bf16.msra.mxu0 0
    %3686 = vmatprep.subr.bf16.mxu0 0
    %3687 = vmatpush2.bf16.msra.mxu0 0
    %3688 = vmatprep.subr.bf16.mxu0 0
    %3689 = vmatpush2.bf16.msra.mxu0 0
    %3690 = vmatprep.subr.bf16.mxu0 0
    %3691 = vmatpush2.bf16.msra.mxu0 0
    %3692 = vmatprep.subr.bf16.mxu0 0
    %3693 = vmatpush2.bf16.msra.mxu0 0
    %3694 = vmatprep.subr.bf16.mxu0 0
    %3695 = vmatpush2.bf16.msra.mxu0 0
    %3696 = vmatprep.subr.bf16.mxu0 0
    %3697 = vmatpush2.bf16.msra.mxu0 0
    %3698 = vmatprep.subr.bf16.mxu0 0
    %3699 = vmatpush2.bf16.msra.mxu0 0
    %3700 = vmatprep.mubr.bf16.mxu0 0
    %3701 = vmatmul.mubr.bf16.gmra.mxu0 %v3666
    %v3702 = vpop.f32.mrf.mxu0
    %v3703 = vadd.f32 %v3648, %v3702
    %v3704 = vpop.f32.mrf.mxu0
    %v3705 = vpop.f32.mrf.mxu0
    %v3706 = vadd.f32 %v3648, %v3705
    %v3707 = vpop.f32.mrf.mxu0
    %3708 = vdwg.mxu0
    %3709 = vst.msk [vmem:[%s20] sm:$0xff] %vm89, %v3703
    %3710 = vst.msk [vmem:[%s20 + $0x8] sm:$0xff] %vm89, %v3706
    // Predicated region
    $region82: #{temporal_vae_forward.1} parent=1 // pred_check
      _
    $region83: #{temporal_vae_forward.1} parent=1 // pred_check_branch
      %3712 = sbr.rel (0) target = $region85
    $region84: #{temporal_vae_forward.1} parent=1 // pred_region
      _
    $region85: #{temporal_vae_forward.1} parent=1 // pred_fallthru
      _
    // Predicated region
    $region86: #{temporal_vae_forward.1} parent=1 // pred_check
      _
    $region87: #{temporal_vae_forward.1} parent=1 // pred_check_branch
      %3714 = sbr.rel (0) target = $region89
    $region88: #{temporal_vae_forward.1} parent=1 // pred_region
      %s3716 = ssub.s32 32, 32
      %3717 = vsyncadd [#allocation4], %s3716
      %s3719 = sshll.u32 [#allocation3], 4
      %s3720 = int_to_ptr.vmem [resolvable:$true] %s3719
      %3722 = dma.vmem_to_hbm [thread:$0]  %s3720, 32, %s21, [#allocation4]
    $region89: #{temporal_vae_forward.1} parent=1 // pred_fallthru
      _
    // Predicated region
    $region90: #{temporal_vae_forward.1} parent=1 // pred_check
      _
    $region91: #{temporal_vae_forward.1} parent=1 // pred_check_branch
      %3724 = sbr.rel (0) target = $region93
    $region92: #{temporal_vae_forward.1} parent=1 // pred_region
      %s3726 = ssub.s32 32, 32
      %3727 = vsyncadd [#allocation6], %s3726
      %s3729 = sshll.u32 [#allocation5], 4
      %s3730 = int_to_ptr.vmem [resolvable:$true] %s3729
      %3732 = dma.vmem_to_hbm [thread:$0]  %s3730, 32, %s22, [#allocation6]
    $region93: #{temporal_vae_forward.1} parent=1 // pred_fallthru
      _
    // Predicated region
    $region94: #{temporal_vae_forward.1} parent=1 // pred_check
      _
    $region95: #{temporal_vae_forward.1} parent=1 // pred_check_branch
      %3734 = sbr.rel (0) target = $region97
    $region96: #{temporal_vae_forward.1} parent=1 // pred_region
      _
    $region97: #{temporal_vae_forward.1} parent=1 // pred_fallthru
      _
    // Predicated region
    $region98: #{temporal_vae_forward.1} parent=1 // pred_check
      _
    $region99: #{temporal_vae_forward.1} parent=1 // pred_check_branch
      %3736 = sbr.rel (0) target = $region101
    $region100: #{temporal_vae_forward.1} parent=1 // pred_region
      %3737 = dma.done [#allocation4], 32
    $region101: #{temporal_vae_forward.1} parent=1 // pred_fallthru
      _
    // Predicated region
    $region102: #{temporal_vae_forward.1} parent=1 // pred_check
      _
    $region103: #{temporal_vae_forward.1} parent=1 // pred_check_branch
      %3739 = sbr.rel (0) target = $region105
    $region104: #{temporal_vae_forward.1} parent=1 // pred_region
      %3740 = dma.done [#allocation6], 32
    $region105: #{temporal_vae_forward.1} parent=1 // pred_fallthru
      _
    %3741 = vsyncpa [#allocation4], 1
    %3742 = vsyncpa [#allocation6], 1

</llo_original>
